<compile_context>
chip_gen: v5e
topology: v5e:2x2
jax: 0.10.0
libtpu: 0.0.40
codegen_flags: <defaults>
</compile_context>

<pallas_src>
from functools import partial

import jax
import jax.numpy as jnp
from jax.experimental import pallas as pl
from jax.experimental.pallas import tpu as pltpu

# ----------------------- module hyper-parameters (small) --------------------
M_DIM     = 32                     # latent feature dim (columns of M)
HEADS     = 2
DIM_HEADS = 16
INNER_DIM = HEADS * DIM_HEADS      # 32
X_DIM     = 16                     # node feature dim d (input to shared to_kv)
E         = 8                      # latents per instance (rows of M)
N         = 16                     # nodes per instance (rows of X)
B         = 32                     # batched graph instances
BLOCK_B   = 16                     # instances per grid step -> 128 rows/matmul


# ------------------------------- Pallas kernel -------------------------------
def cross_att_kernel(m_ref, x_ref, mask_ref, w_ref, out_ref, *,
                     heads, dim_heads, m_dim, x_dim, inner_dim):
    """cross_att forward for one block of BLOCK_B instances.

    m_ref:    (bb, e, M_dim)     x_ref: (bb, n, d)     mask_ref: (bb, e, n) 0/1
    w_ref:    packed weight slab [wq; wk; wv; wo; bo] stacked along sublanes
    out_ref:  (bb, e, M_dim)
    """
    bb, e, _ = m_ref.shape
    _, n, _ = x_ref.shape

    # ---- unpack packed weight slab (static sublane slices, one DMA) --------
    o = 0
    wq = w_ref[o:o + m_dim, :inner_dim]; o += m_dim            # (M_dim, inner)
    wk = w_ref[o:o + x_dim, :inner_dim]; o += x_dim            # (d, inner)
    wv = w_ref[o:o + x_dim, :inner_dim]; o += x_dim            # (d, inner)
    wo = w_ref[o:o + inner_dim, :m_dim]; o += inner_dim        # (inner, M_dim)
    bo = w_ref[o:o + 1, :m_dim]                                # (1, M_dim)

    # ---- projections: one wide MXU matmul each (bb*e = 128 sublane rows) ---
    # TODO(synk): cast matmul inputs to bfloat16 (keep preferred_element_type
    # = f32) for HBM-byte / MXU-density wins at scale; kept f32 here so the
    # demo matches the f32 reference to ~1e-5.
    m2 = m_ref[...].reshape(bb * e, m_dim)
    x2 = x_ref[...].reshape(bb * n, x_dim)
    q = jnp.dot(m2, wq, preferred_element_type=jnp.float32).reshape(bb, e, inner_dim)
    k = jnp.dot(x2, wk, preferred_element_type=jnp.float32).reshape(bb, n, inner_dim)
    v = jnp.dot(x2, wv, preferred_element_type=jnp.float32).reshape(bb, n, inner_dim)

    mask = mask_ref[...]                                       # (bb, e, n)
    scale = dim_heads ** -0.5
    neg = jnp.float32(-1e9)

    acc = None
    for h in range(heads):                                     # tiny static loop
        lo, hi = h * dim_heads, (h + 1) * dim_heads
        qh, kh, vh = q[:, :, lo:hi], k[:, :, lo:hi], v[:, :, lo:hi]
        # contract last dims of both operands -> no XLU transpose on the path
        sim = jnp.einsum('bed,bnd->ben', qh, kh,
                         preferred_element_type=jnp.float32) * scale
        sim = jnp.where(mask > 0, sim, neg)                    # hard masked_fill
        sim = sim - jnp.max(sim, axis=-1, keepdims=True)
        p = jnp.exp(sim)
        p = p / jnp.sum(p, axis=-1, keepdims=True)             # exact softmax
        oh = jnp.einsum('ben,bnd->bed', p, vh,
                        preferred_element_type=jnp.float32)    # (bb, e, dh)
        contrib = jnp.dot(oh.reshape(bb * e, dim_heads), wo[lo:hi, :],
                          preferred_element_type=jnp.float32)  # (bb*e, M_dim)
        acc = contrib if acc is None else acc + contrib        # init from head 0

    out_ref[...] = (acc + bo).reshape(bb, e, m_dim)


# ------------------------------ pallas_call glue -----------------------------
def cross_att_forward(M, X, mask, wq, to_kv_w, wo, bo, *, block_b=BLOCK_B):
    """Batched cross_att.  M:(B,e,M_dim)  X:(B,n,d)  mask:(B,e,n) float {0,1}."""
    b, e, m_dim = M.shape
    _, n, x_dim = X.shape
    inner = wq.shape[1]
    block_b = min(block_b, b)
    assert b % block_b == 0, "demo wrapper assumes B % block_b == 0"

    # Pack all weights into one sublane-stacked slab (single prologue DMA).
    # Lanes padded to a common width so heterogeneous widths concatenate.
    width = max(inner, m_dim)
    pad_c = lambda a: jnp.pad(a, ((0, 0), (0, width - a.shape[1])))
    wk, wv = to_kv_w[:, :inner], to_kv_w[:, inner:]
    w_slab = jnp.concatenate([pad_c(wq), pad_c(wk), pad_c(wv),
                              pad_c(wo), pad_c(bo)], axis=0)

    kernel = partial(cross_att_kernel, heads=HEADS, dim_heads=DIM_HEADS,
                     m_dim=m_dim, x_dim=x_dim, inner_dim=inner)

    # NOTE: per-step footprint is ~60 KB, far below the 16/32 MiB scoped-VMEM
    # defaults (v5e / v6e+v7x) even with double buffering -> no
    # vmem_limit_bytes override needed.
    # TODO(synk): if output writeback ever dominates, group 4 instances along
    # lanes in the wrapper so the output's last dim is 128 (unmasked vst).
    return pl.pallas_call(
        kernel,
        out_shape=jax.ShapeDtypeStruct((b, e, m_dim), jnp.float32),
        grid=(b // block_b,),
        in_specs=[
            pl.BlockSpec((block_b, e, m_dim), lambda i: (i, 0, 0)),   # M block
            pl.BlockSpec((block_b, n, x_dim), lambda i: (i, 0, 0)),   # X block
            pl.BlockSpec((block_b, e, n),     lambda i: (i, 0, 0)),   # mask
            pl.BlockSpec(w_slab.shape,        lambda i: (0, 0)),      # weights
        ],
        out_specs=pl.BlockSpec((block_b, e, m_dim), lambda i: (i, 0, 0)),
        compiler_params=pltpu.CompilerParams(
            dimension_semantics=("parallel",)),   # v7x: batch across both TCs
    )(M, X, mask, w_slab)


# ------------------------------ pure-JAX reference ---------------------------
def _reference(M, X, mask_bool, wq, to_kv_w, wo, bo):
    inner = wq.shape[1]
    heads, dh = HEADS, DIM_HEADS

    def one(m, x, msk):
        q = m @ wq
        kv = x @ to_kv_w
        k, v = kv[:, :inner], kv[:, inner:]
        e_, n_ = m.shape[0], x.shape[0]
        q3 = q.reshape(e_, heads, dh)
        k3 = k.reshape(n_, heads, dh)
        v3 = v.reshape(n_, heads, dh)
        sim = jnp.einsum('ihd,jhd->hij', q3, k3) * dh ** -0.5
        sim = jnp.where(msk[None], sim, -1e9)
        p = jax.nn.softmax(sim, axis=-1)
        o = jnp.einsum('hij,jhd->ihd', p, v3).reshape(e_, inner)
        return o @ wo + bo[0]

    return jax.vmap(one)(M, X, mask_bool)


# ------------------------------------ main -----------------------------------
if __name__ == "__main__":
    key = jax.random.PRNGKey(0)
    ks = iter(jax.random.split(key, 16))

    def randn(shape, scale=0.05):
        return (scale * jax.random.normal(next(ks), shape)).astype(jnp.float32)

    # batched inputs
    M0 = randn((B, E, M_DIM), 1.0)
    X0 = randn((B, N, X_DIM), 1.0)
    mask_bool = jax.random.uniform(next(ks), (B, E, N)) > 0.3
    mask_bool = mask_bool.at[:, :, 0].set(True)    # every query sees >= 1 key
    mask_f = mask_bool.astype(jnp.float32)

    # shared/per-module parameters (deterministic synthetic init)
    wq = randn((M_DIM, INNER_DIM))                 # to_q   (bias=False)
    to_kv_w = randn((X_DIM, 2 * INNER_DIM))        # shared to_kv (bias=False)
    wo = randn((INNER_DIM, M_DIM))                 # mutl_heads weight (in, out)
    bo = randn((1, M_DIM))                         # mutl_heads bias

    out = cross_att_forward(M0, X0, mask_f, wq, to_kv_w, wo, bo)
    out = jax.block_until_ready(out)

    ref = _reference(M0, X0, mask_bool, wq, to_kv_w, wo, bo)
    assert out.shape == (B, E, M_DIM)
    assert jnp.allclose(out, ref, atol=1e-4, rtol=1e-4), "mismatch vs reference"

    print("KERNEL_OK")
</pallas_src>

<mosaic_0001>
module attributes {stable_mosaic.version = 11 : i64} {
  func.func @cross_att_kernel(%arg0: i32, %arg1: memref<16x8x32xf32, #tpu.memory_space<vmem>>, %arg2: memref<16x16x16xf32, #tpu.memory_space<vmem>>, %arg3: memref<16x8x16xf32, #tpu.memory_space<vmem>>, %arg4: memref<97x32xf32, #tpu.memory_space<vmem>>, %arg5: memref<16x8x32xf32, #tpu.memory_space<vmem>>) attributes {dimension_semantics = [#tpu.dimension_semantics<parallel>], iteration_bounds = array<i64: 2>, scalar_prefetch = 0 : i64, scratch_operands = 0 : i64, tpu.core_type = #tpu.core_type<tc>, window_params = [{transform_indices = @transform_0, window_bounds = array<i64: 16, 8, 32>}, {transform_indices = @transform_1, window_bounds = array<i64: 16, 16, 16>}, {transform_indices = @transform_2, window_bounds = array<i64: 16, 8, 16>}, {pipeline_mode = #tpu.pipeline_mode<synchronous>, transform_indices = @transform_3, window_bounds = array<i64: 97, 32>}, {transform_indices = @transform_4, window_bounds = array<i64: 16, 8, 32>}]} {
    %c0 = arith.constant 0 : index
    %c0_0 = arith.constant 0 : index
    %0 = vector.load %arg4[%c0, %c0_0] : memref<97x32xf32, #tpu.memory_space<vmem>>, vector<32x32xf32>
    %c32 = arith.constant 32 : index
    %c0_1 = arith.constant 0 : index
    %1 = vector.load %arg4[%c32, %c0_1] : memref<97x32xf32, #tpu.memory_space<vmem>>, vector<16x32xf32>
    %c48 = arith.constant 48 : index
    %c0_2 = arith.constant 0 : index
    %2 = vector.load %arg4[%c48, %c0_2] : memref<97x32xf32, #tpu.memory_space<vmem>>, vector<16x32xf32>
    %c64 = arith.constant 64 : index
    %c0_3 = arith.constant 0 : index
    %3 = vector.load %arg4[%c64, %c0_3] : memref<97x32xf32, #tpu.memory_space<vmem>>, vector<32x32xf32>
    %c96 = arith.constant 96 : index
    %c0_4 = arith.constant 0 : index
    %4 = vector.load %arg4[%c96, %c0_4] : memref<97x32xf32, #tpu.memory_space<vmem>>, vector<1x32xf32>
    %c0_5 = arith.constant 0 : index
    %c0_6 = arith.constant 0 : index
    %c0_7 = arith.constant 0 : index
    %5 = vector.load %arg1[%c0_5, %c0_6, %c0_7] : memref<16x8x32xf32, #tpu.memory_space<vmem>>, vector<16x8x32xf32>
    %6 = vector.shape_cast %5 : vector<16x8x32xf32> to vector<128x32xf32>
    %c0_8 = arith.constant 0 : index
    %c0_9 = arith.constant 0 : index
    %c0_10 = arith.constant 0 : index
    %7 = vector.load %arg2[%c0_8, %c0_9, %c0_10] : memref<16x16x16xf32, #tpu.memory_space<vmem>>, vector<16x16x16xf32>
    %8 = vector.shape_cast %7 : vector<16x16x16xf32> to vector<256x16xf32>
    %cst = arith.constant dense<0.000000e+00> : vector<128x32xf32>
    %9 = tpu.matmul %6, %0, %cst {dimension_numbers = #tpu.dot_dimension_numbers<[1], [0], [0], [1], [0, 0, 1, 1], [], []>} : vector<128x32xf32>, vector<32x32xf32>, vector<128x32xf32> -> vector<128x32xf32>
    %10 = vector.shape_cast %9 : vector<128x32xf32> to vector<16x8x32xf32>
    %cst_11 = arith.constant dense<0.000000e+00> : vector<256x32xf32>
    %11 = tpu.matmul %8, %1, %cst_11 {dimension_numbers = #tpu.dot_dimension_numbers<[1], [0], [0], [1], [0, 0, 1, 1], [], []>} : vector<256x16xf32>, vector<16x32xf32>, vector<256x32xf32> -> vector<256x32xf32>
    %12 = vector.shape_cast %11 : vector<256x32xf32> to vector<16x16x32xf32>
    %cst_12 = arith.constant dense<0.000000e+00> : vector<256x32xf32>
    %13 = tpu.matmul %8, %2, %cst_12 {dimension_numbers = #tpu.dot_dimension_numbers<[1], [0], [0], [1], [0, 0, 1, 1], [], []>} : vector<256x16xf32>, vector<16x32xf32>, vector<256x32xf32> -> vector<256x32xf32>
    %14 = vector.shape_cast %13 : vector<256x32xf32> to vector<16x16x32xf32>
    %c0_13 = arith.constant 0 : index
    %c0_14 = arith.constant 0 : index
    %c0_15 = arith.constant 0 : index
    %15 = vector.load %arg3[%c0_13, %c0_14, %c0_15] : memref<16x8x16xf32, #tpu.memory_space<vmem>>, vector<16x8x16xf32>
    %16 = vector.extract_strided_slice %10 {offsets = [0, 0, 0], sizes = [16, 8, 16], strides = [1, 1, 1]} : vector<16x8x32xf32> to vector<16x8x16xf32>
    %17 = vector.extract_strided_slice %12 {offsets = [0, 0, 0], sizes = [16, 16, 16], strides = [1, 1, 1]} : vector<16x16x32xf32> to vector<16x16x16xf32>
    %18 = vector.extract_strided_slice %14 {offsets = [0, 0, 0], sizes = [16, 16, 16], strides = [1, 1, 1]} : vector<16x16x32xf32> to vector<16x16x16xf32>
    "tpu.trace_start"() <{level = 10 : i32, message = "bed,bnd->ben"}> : () -> ()
    %cst_16 = arith.constant dense<0.000000e+00> : vector<16x8x16xf32>
    %19 = tpu.matmul %16, %17, %cst_16 {dimension_numbers = #tpu.dot_dimension_numbers<[2], [2], [1], [1], [0, 0, 0, 1, 1, 1], [0], [0]>} : vector<16x8x16xf32>, vector<16x16x16xf32>, vector<16x8x16xf32> -> vector<16x8x16xf32>
    "tpu.trace_stop"() : () -> ()
    %cst_17 = arith.constant 2.500000e-01 : f32
    %20 = vector.broadcast %cst_17 : f32 to vector<16x8x16xf32>
    %21 = arith.mulf %19, %20 : vector<16x8x16xf32>
    %cst_18 = arith.constant 0.000000e+00 : f32
    %22 = vector.broadcast %cst_18 : f32 to vector<16x8x16xf32>
    %23 = arith.cmpf ogt, %15, %22 : vector<16x8x16xf32>
    %cst_19 = arith.constant -1.000000e+09 : f32
    %24 = vector.broadcast %cst_19 : f32 to vector<16x8x16xf32>
    %25 = arith.select %23, %21, %24 : vector<16x8x16xi1>, vector<16x8x16xf32>
    %cst_20 = arith.constant dense<0xFF800000> : vector<16x8xf32>
    %26 = vector.multi_reduction <maximumf>, %25, %cst_20 [2] : vector<16x8x16xf32> to vector<16x8xf32>
    %27 = vector.shape_cast %26 : vector<16x8xf32> to vector<16x8x1xf32>
    %28 = vector.broadcast %27 : vector<16x8x1xf32> to vector<16x8x16xf32>
    %29 = arith.subf %25, %28 : vector<16x8x16xf32>
    %30 = math.exp %29 : vector<16x8x16xf32>
    %cst_21 = arith.constant dense<0.000000e+00> : vector<16x8xf32>
    %31 = vector.multi_reduction <add>, %30, %cst_21 [2] : vector<16x8x16xf32> to vector<16x8xf32>
    %32 = vector.shape_cast %31 : vector<16x8xf32> to vector<16x8x1xf32>
    %33 = vector.broadcast %32 : vector<16x8x1xf32> to vector<16x8x16xf32>
    %34 = arith.divf %30, %33 : vector<16x8x16xf32>
    "tpu.trace_start"() <{level = 10 : i32, message = "ben,bnd->bed"}> : () -> ()
    %cst_22 = arith.constant dense<0.000000e+00> : vector<16x8x16xf32>
    %35 = tpu.matmul %34, %18, %cst_22 {dimension_numbers = #tpu.dot_dimension_numbers<[2], [1], [1], [2], [0, 0, 0, 1, 1, 2], [0], [0]>} : vector<16x8x16xf32>, vector<16x16x16xf32>, vector<16x8x16xf32> -> vector<16x8x16xf32>
    "tpu.trace_stop"() : () -> ()
    %36 = vector.shape_cast %35 : vector<16x8x16xf32> to vector<128x16xf32>
    %37 = vector.extract_strided_slice %3 {offsets = [0, 0], sizes = [16, 32], strides = [1, 1]} : vector<32x32xf32> to vector<16x32xf32>
    %cst_23 = arith.constant dense<0.000000e+00> : vector<128x32xf32>
    %38 = tpu.matmul %36, %37, %cst_23 {dimension_numbers = #tpu.dot_dimension_numbers<[1], [0], [0], [1], [0, 0, 1, 1], [], []>} : vector<128x16xf32>, vector<16x32xf32>, vector<128x32xf32> -> vector<128x32xf32>
    %39 = vector.extract_strided_slice %10 {offsets = [0, 0, 16], sizes = [16, 8, 16], strides = [1, 1, 1]} : vector<16x8x32xf32> to vector<16x8x16xf32>
    %40 = vector.extract_strided_slice %12 {offsets = [0, 0, 16], sizes = [16, 16, 16], strides = [1, 1, 1]} : vector<16x16x32xf32> to vector<16x16x16xf32>
    %41 = vector.extract_strided_slice %14 {offsets = [0, 0, 16], sizes = [16, 16, 16], strides = [1, 1, 1]} : vector<16x16x32xf32> to vector<16x16x16xf32>
    "tpu.trace_start"() <{level = 10 : i32, message = "bed,bnd->ben"}> : () -> ()
    %cst_24 = arith.constant dense<0.000000e+00> : vector<16x8x16xf32>
    %42 = tpu.matmul %39, %40, %cst_24 {dimension_numbers = #tpu.dot_dimension_numbers<[2], [2], [1], [1], [0, 0, 0, 1, 1, 1], [0], [0]>} : vector<16x8x16xf32>, vector<16x16x16xf32>, vector<16x8x16xf32> -> vector<16x8x16xf32>
    "tpu.trace_stop"() : () -> ()
    %cst_25 = arith.constant 2.500000e-01 : f32
    %43 = vector.broadcast %cst_25 : f32 to vector<16x8x16xf32>
    %44 = arith.mulf %42, %43 : vector<16x8x16xf32>
    %cst_26 = arith.constant 0.000000e+00 : f32
    %45 = vector.broadcast %cst_26 : f32 to vector<16x8x16xf32>
    %46 = arith.cmpf ogt, %15, %45 : vector<16x8x16xf32>
    %cst_27 = arith.constant -1.000000e+09 : f32
    %47 = vector.broadcast %cst_27 : f32 to vector<16x8x16xf32>
    %48 = arith.select %46, %44, %47 : vector<16x8x16xi1>, vector<16x8x16xf32>
    %cst_28 = arith.constant dense<0xFF800000> : vector<16x8xf32>
    %49 = vector.multi_reduction <maximumf>, %48, %cst_28 [2] : vector<16x8x16xf32> to vector<16x8xf32>
    %50 = vector.shape_cast %49 : vector<16x8xf32> to vector<16x8x1xf32>
    %51 = vector.broadcast %50 : vector<16x8x1xf32> to vector<16x8x16xf32>
    %52 = arith.subf %48, %51 : vector<16x8x16xf32>
    %53 = math.exp %52 : vector<16x8x16xf32>
    %cst_29 = arith.constant dense<0.000000e+00> : vector<16x8xf32>
    %54 = vector.multi_reduction <add>, %53, %cst_29 [2] : vector<16x8x16xf32> to vector<16x8xf32>
    %55 = vector.shape_cast %54 : vector<16x8xf32> to vector<16x8x1xf32>
    %56 = vector.broadcast %55 : vector<16x8x1xf32> to vector<16x8x16xf32>
    %57 = arith.divf %53, %56 : vector<16x8x16xf32>
    "tpu.trace_start"() <{level = 10 : i32, message = "ben,bnd->bed"}> : () -> ()
    %cst_30 = arith.constant dense<0.000000e+00> : vector<16x8x16xf32>
    %58 = tpu.matmul %57, %41, %cst_30 {dimension_numbers = #tpu.dot_dimension_numbers<[2], [1], [1], [2], [0, 0, 0, 1, 1, 2], [0], [0]>} : vector<16x8x16xf32>, vector<16x16x16xf32>, vector<16x8x16xf32> -> vector<16x8x16xf32>
    "tpu.trace_stop"() : () -> ()
    %59 = vector.shape_cast %58 : vector<16x8x16xf32> to vector<128x16xf32>
    %60 = vector.extract_strided_slice %3 {offsets = [16, 0], sizes = [16, 32], strides = [1, 1]} : vector<32x32xf32> to vector<16x32xf32>
    %cst_31 = arith.constant dense<0.000000e+00> : vector<128x32xf32>
    %61 = tpu.matmul %59, %60, %cst_31 {dimension_numbers = #tpu.dot_dimension_numbers<[1], [0], [0], [1], [0, 0, 1, 1], [], []>} : vector<128x16xf32>, vector<16x32xf32>, vector<128x32xf32> -> vector<128x32xf32>
    %62 = arith.addf %38, %61 : vector<128x32xf32>
    %63 = vector.broadcast %4 : vector<1x32xf32> to vector<128x32xf32>
    %64 = arith.addf %62, %63 : vector<128x32xf32>
    %65 = vector.shape_cast %64 : vector<128x32xf32> to vector<16x8x32xf32>
    %c0_32 = arith.constant 0 : index
    %c0_33 = arith.constant 0 : index
    %c0_34 = arith.constant 0 : index
    %66 = vector.load %arg5[%c0_32, %c0_33, %c0_34] : memref<16x8x32xf32, #tpu.memory_space<vmem>>, vector<16x8x32xf32>
    tpu.vector_store %arg5[%c0_32, %c0_33, %c0_34], %65 {strides = array<i32>} : memref<16x8x32xf32, #tpu.memory_space<vmem>>, vector<16x8x32xf32>,
    return
  }
  func.func @transform_0(%arg0: i32) -> (i32, i32, i32) {
    %c0_i32 = arith.constant 0 : i32
    %c0_i32_0 = arith.constant 0 : i32
    %c0_i32_1 = arith.constant 0 : i32
    return %arg0, %c0_i32, %c0_i32_0 : i32, i32, i32
  }
  func.func @transform_1(%arg0: i32) -> (i32, i32, i32) {
    %c0_i32 = arith.constant 0 : i32
    %c0_i32_0 = arith.constant 0 : i32
    %c0_i32_1 = arith.constant 0 : i32
    return %arg0, %c0_i32, %c0_i32_0 : i32, i32, i32
  }
  func.func @transform_2(%arg0: i32) -> (i32, i32, i32) {
    %c0_i32 = arith.constant 0 : i32
    %c0_i32_0 = arith.constant 0 : i32
    %c0_i32_1 = arith.constant 0 : i32
    return %arg0, %c0_i32, %c0_i32_0 : i32, i32, i32
  }
  func.func @transform_3(%arg0: i32) -> (i32, i32) {
    %c0_i32 = arith.constant 0 : i32
    %c0_i32_0 = arith.constant 0 : i32
    %c0_i32_1 = arith.constant 0 : i32
    return %c0_i32, %c0_i32_0 : i32, i32
  }
  func.func @transform_4(%arg0: i32) -> (i32, i32, i32) {
    %c0_i32 = arith.constant 0 : i32
    %c0_i32_0 = arith.constant 0 : i32
    %c0_i32_1 = arith.constant 0 : i32
    return %arg0, %c0_i32, %c0_i32_0 : i32, i32, i32
  }
}

</mosaic_0001>

<llo_original>
// kernel: tpu_custom_call.1
$region0: #{tpu_custom_call.1}
  #allocation0 [shape = 'u32[]', space=smem, size = 0x4, offset = 0x4, fixed_abs, tag = 'smem constant byte address 0x4 - core index']
  #allocation1 [shape = 'u32[72,128]{1,0:T(1,128)}', space=vmem, size = 0x9000, scoped, tag = 'internal scratch']
  %s0 = inlined_call_operand.vmem [shape: f32[32,8,32], index: 0, kind: input, shape index: {}]
  %s1 = inlined_call_operand.vmem [shape: f32[32,16,16], index: 1, kind: input, shape index: {}]
  %s2 = inlined_call_operand.vmem [shape: f32[32,8,16], index: 2, kind: input, shape index: {}]
  %s3 = inlined_call_operand.vmem [shape: f32[97,32], index: 3, kind: input, shape index: {}]
  %s4 = inlined_call_operand.hbm [shape: f32[32,8,32], index: 4, kind: output, shape index: {}]
  %s5 = sld [smem:[#allocation0]]
  $region49: #{tpu_custom_call.1} parent=0
    _
  %s7 = ssub.s32 1, %s5
  %s8 = scalar_select 0, %s7, %s5
  $region1: #{tpu_custom_call.1} parent=0
    #allocation2 [shape = 'u8[131072]{0}', space=vmem, size = 0x20000, scoped, tag = 'output window, operand 0']
    #allocation3 [shape = 's32[2]{0}', space=sflag, size = 0x8, scoped, tag = 'scoped memory for tpu_custom_call.1']
    %9 = vsyncpa [#allocation3], 0
    %s10 = scalar_lea.sflag [#allocation3], 1
    %11 = vsyncpa %s10, 0
    loop: start=0, step=1, limit=4
    $region2: #{tpu_custom_call.1} parent=1 // loop_pre_header
      _
    $region3: #{tpu_custom_call.1} parent=1 // loop_header
      %s13 = sphi 0, %s17
      %p14 = scmp.ge.s32.totalorder %s13, 4
      %s23 = sphi 0, %s25
      %s26 = sphi 0, %s23
      %s27 = sphi 0, %s26
      %s43 = sphi 0, %s27
      %s49 = sphi 0, %s51
      %s52 = sphi 0, %s49
      %s53 = sphi 0, %s52
      %s69 = sphi 0, %s53
      %s75 = sphi 0, %s77
      %s78 = sphi 0, %s75
      %s79 = sphi 0, %s78
      %s95 = sphi 0, %s79
      %s99 = sphi 0, %s99
      %s101 = sphi 0, %s99
      %s102 = sphi 0, %s101
      %s116 = sphi 0, %s102
      %s122 = sphi 0, %s124
      %s125 = sphi 0, %s122
      %s126 = sphi 0, %s125
      %s142 = sphi 0, %s126
    $region4: #{tpu_custom_call.1} parent=1 // loop_header_branch
      %16 = sbr.rel (%p14) target = $region8
    $region5: #{tpu_custom_call.1} parent=1 // loop_body
      %s18 = ssub.s32 %s13, 1
      %s19 = ssub.s32 %s13, 2
      %s20 = sadd.s32 %s13, 1
      %s21 = ssub.s32 %s13, %s20
      %p22 = scmp.eq.s32.totalorder %s21, 0
      %s24 = sadd.s32 %s23, 1
      %s25 = scalar_select %p22, %s23, %s24
      %p28 = pneg %p22
      %p29 = scmp.eq.s32.totalorder %s13, 1
      %p30 = por %p28, %p29
      %p31 = scmp.ne.s32.totalorder %s23, %s26
      %p32 = scmp.eq.s32.totalorder %s13, 0
      %p33 = por %p31, %p32
      %p34 = scmp.ne.s32.totalorder %s23, %s26
      %p35 = scmp.eq.s32.totalorder %s18, 1
      %p36 = por %p34, %p35
      %p37 = scmp.ne.s32.totalorder %s26, %s27
      %p38 = scmp.eq.s32.totalorder %s18, 0
      %p39 = por %p37, %p38
      %p40 = scmp.ne.s32.totalorder %s26, %s27
      %p41 = scmp.eq.s32.totalorder %s19, 1
      %p42 = por %p40, %p41
      %p44 = scmp.ne.s32.totalorder %s27, %s43
      %p45 = scmp.eq.s32.totalorder %s19, 0
      %p46 = por %p44, %p45
      %s47 = ssub.s32 %s13, %s20
      %p48 = scmp.eq.s32.totalorder %s47, 0
      %s50 = sadd.s32 %s49, 1
      %s51 = scalar_select %p48, %s49, %s50
      %p54 = pneg %p48
      %p55 = scmp.eq.s32.totalorder %s13, 1
      %p56 = por %p54, %p55
      %p57 = scmp.ne.s32.totalorder %s49, %s52
      %p58 = scmp.eq.s32.totalorder %s13, 0
      %p59 = por %p57, %p58
      %p60 = scmp.ne.s32.totalorder %s49, %s52
      %p61 = scmp.eq.s32.totalorder %s18, 1
      %p62 = por %p60, %p61
      %p63 = scmp.ne.s32.totalorder %s52, %s53
      %p64 = scmp.eq.s32.totalorder %s18, 0
      %p65 = por %p63, %p64
      %p66 = scmp.ne.s32.totalorder %s52, %s53
      %p67 = scmp.eq.s32.totalorder %s19, 1
      %p68 = por %p66, %p67
      %p70 = scmp.ne.s32.totalorder %s53, %s69
      %p71 = scmp.eq.s32.totalorder %s19, 0
      %p72 = por %p70, %p71
      %s73 = ssub.s32 %s13, %s20
      %p74 = scmp.eq.s32.totalorder %s73, 0
      %s76 = sadd.s32 %s75, 1
      %s77 = scalar_select %p74, %s75, %s76
      %p80 = pneg %p74
      %p81 = scmp.eq.s32.totalorder %s13, 1
      %p82 = por %p80, %p81
      %p83 = scmp.ne.s32.totalorder %s75, %s78
      %p84 = scmp.eq.s32.totalorder %s13, 0
      %p85 = por %p83, %p84
      %p86 = scmp.ne.s32.totalorder %s75, %s78
      %p87 = scmp.eq.s32.totalorder %s18, 1
      %p88 = por %p86, %p87
      %p89 = scmp.ne.s32.totalorder %s78, %s79
      %p90 = scmp.eq.s32.totalorder %s18, 0
      %p91 = por %p89, %p90
      %p92 = scmp.ne.s32.totalorder %s78, %s79
      %p93 = scmp.eq.s32.totalorder %s19, 1
      %p94 = por %p92, %p93
      %p96 = scmp.ne.s32.totalorder %s79, %s95
      %p97 = scmp.eq.s32.totalorder %s19, 0
      %p98 = por %p96, %p97
      %s100 = sadd.s32 %s99, 1
      %p103 = scmp.eq.s32.totalorder %s13, 1
      %p104 = scmp.ne.s32.totalorder %s99, %s101
      %p105 = scmp.eq.s32.totalorder %s13, 0
      %p106 = por %p104, %p105
      %p107 = scmp.ne.s32.totalorder %s99, %s101
      %p108 = scmp.eq.s32.totalorder %s18, 1
      %p109 = por %p107, %p108
      %p110 = scmp.ne.s32.totalorder %s101, %s102
      %p111 = scmp.eq.s32.totalorder %s18, 0
      %p112 = por %p110, %p111
      %p113 = scmp.ne.s32.totalorder %s101, %s102
      %p114 = scmp.eq.s32.totalorder %s19, 1
      %p115 = por %p113, %p114
      %p117 = scmp.ne.s32.totalorder %s102, %s116
      %p118 = scmp.eq.s32.totalorder %s19, 0
      %p119 = por %p117, %p118
      %s120 = ssub.s32 %s13, %s20
      %p121 = scmp.eq.s32.totalorder %s120, 0
      %s123 = sadd.s32 %s122, 1
      %s124 = scalar_select %p121, %s122, %s123
      %p127 = pneg %p121
      %p128 = scmp.eq.s32.totalorder %s13, 1
      %p129 = por %p127, %p128
      %p130 = scmp.ne.s32.totalorder %s122, %s125
      %p131 = scmp.eq.s32.totalorder %s13, 0
      %p132 = por %p130, %p131
      %p133 = scmp.ne.s32.totalorder %s122, %s125
      %p134 = scmp.eq.s32.totalorder %s18, 1
      %p135 = por %p133, %p134
      %p136 = scmp.ne.s32.totalorder %s125, %s126
      %p137 = scmp.eq.s32.totalorder %s18, 0
      %p138 = por %p136, %p137
      %p139 = scmp.ne.s32.totalorder %s125, %s126
      %p140 = scmp.eq.s32.totalorder %s19, 1
      %p141 = por %p139, %p140
      %p143 = scmp.ne.s32.totalorder %s126, %s142
      %p144 = scmp.eq.s32.totalorder %s19, 0
      %p145 = por %p143, %p144
      %p146 = scmp.le.s32.totalorder 1, %s13
      %p147 = scmp.lt.s32.totalorder %s13, 3
      %p148 = pnand %p146, %p147
      %p149 = pneg %p148
      // Predicated region
      $region9: #{tpu_custom_call.1} parent=5 // pred_check
        _
      $region10: #{tpu_custom_call.1} parent=5 // pred_check_branch
        %151 = sbr.rel (%p148) target = $region12
      $region11: #{tpu_custom_call.1} parent=5 // pred_region
        %s152 = ssub.s32 %s13, 1
        // Predicated region
        $region13: #{tpu_custom_call.1} parent=11 // pred_check
          %p153 = pneg %p112
        $region14: #{tpu_custom_call.1} parent=11 // pred_check_branch
          %155 = sbr.rel (%p153) target = $region16
        $region15: #{tpu_custom_call.1} parent=11 // pred_region
          _
        $region16: #{tpu_custom_call.1} parent=11 // pred_fallthru
          _
      $region12: #{tpu_custom_call.1} parent=5 // pred_fallthru
        _
      %p156 = scmp.lt.s32.totalorder %s13, 2
      // Predicated region
      $region17: #{tpu_custom_call.1} parent=5 // pred_check
        %p157 = pneg %p156
      $region18: #{tpu_custom_call.1} parent=5 // pred_check_branch
        %159 = sbr.rel (%p157) target = $region20
      $region19: #{tpu_custom_call.1} parent=5 // pred_region
        // Predicated region
        $region21: #{tpu_custom_call.1} parent=19 // pred_check
          %p160 = pneg %p33
        $region22: #{tpu_custom_call.1} parent=19 // pred_check_branch
          %162 = sbr.rel (%p160) target = $region24
        $region23: #{tpu_custom_call.1} parent=19 // pred_region
          %s163 = smul.u32 16, %s13
          %p164 = scmp.lt.s32.totalorder %s163, 31
          %s165 = scalar_select %p164, %s163, 31
          %s166 = smul.addr %s165, 8
          %s167 = scalar_lea.vmem %s0, %s166
          %s168 = smul.u32 16, %s13
        $region24: #{tpu_custom_call.1} parent=19 // pred_fallthru
          _
        // Predicated region
        $region25: #{tpu_custom_call.1} parent=19 // pred_check
          %p169 = pneg %p59
        $region26: #{tpu_custom_call.1} parent=19 // pred_check_branch
          %171 = sbr.rel (%p169) target = $region28
        $region27: #{tpu_custom_call.1} parent=19 // pred_region
          %s172 = smul.u32 16, %s13
          %p173 = scmp.lt.s32.totalorder %s172, 31
          %s174 = scalar_select %p173, %s172, 31
          %s175 = smul.addr %s174, 2
          %s176 = smul.addr %s175, 8
          %s177 = scalar_lea.vmem %s1, %s176
          %s178 = smul.u32 16, %s13
        $region28: #{tpu_custom_call.1} parent=19 // pred_fallthru
          _
        // Predicated region
        $region29: #{tpu_custom_call.1} parent=19 // pred_check
          %p179 = pneg %p85
        $region30: #{tpu_custom_call.1} parent=19 // pred_check_branch
          %181 = sbr.rel (%p179) target = $region32
        $region31: #{tpu_custom_call.1} parent=19 // pred_region
          %s182 = smul.u32 16, %s13
          %p183 = scmp.lt.s32.totalorder %s182, 31
          %s184 = scalar_select %p183, %s182, 31
          %s185 = smul.addr %s184, 8
          %s186 = scalar_lea.vmem %s2, %s185
          %s187 = smul.u32 16, %s13
        $region32: #{tpu_custom_call.1} parent=19 // pred_fallthru
          _
      $region20: #{tpu_custom_call.1} parent=5 // pred_fallthru
        _
      %p188 = scmp.le.s32.totalorder 1, %s13
      %p189 = scmp.lt.s32.totalorder %s13, 3
      %p190 = pnand %p188, %p189
      %p191 = pneg %p190
      // Predicated region
      $region33: #{tpu_custom_call.1} parent=5 // pred_check
        _
      $region34: #{tpu_custom_call.1} parent=5 // pred_check_branch
        %193 = sbr.rel (%p190) target = $region36
      $region35: #{tpu_custom_call.1} parent=5 // pred_region
        %s194 = ssub.s32 %s13, 1
        %s195 = smul.u32 16, %s18
        %p196 = scmp.lt.s32.totalorder %s195, 31
        %s197 = scalar_select %p196, %s195, 31
        %s198 = smul.addr %s197, 8
        %s199 = scalar_lea.vmem %s0, %s198
        %p200 = pneg %p39
        %p201 = pneg %p36
        %s202 = smul.u32 16, %s18
        %p203 = scmp.lt.s32.totalorder %s202, 31
        %s204 = scalar_select %p203, %s202, 31
        %s205 = smul.addr %s204, 2
        %s206 = smul.addr %s205, 8
        %s207 = scalar_lea.vmem %s1, %s206
        %p208 = pneg %p65
        %p209 = pneg %p62
        %s210 = smul.u32 16, %s18
        %p211 = scmp.lt.s32.totalorder %s210, 31
        %s212 = scalar_select %p211, %s210, 31
        %s213 = smul.addr %s212, 8
        %s214 = scalar_lea.vmem %s2, %s213
        %p215 = pneg %p91
        %p216 = pneg %p88
        %p217 = pneg %p112
        %p218 = pneg %p109
        %p219 = pneg %p138
        %p220 = pneg %p135
        %s221 = sand.u32 %s125, 1
        %s222 = scalar_lea.sflag [#allocation3], %s221
        %s223 = sand.u32 %s125, 1
        %s224 = smul.addr %s223, 128
        %s225 = scalar_lea.vmem [#allocation2], %s224
        %s226 = smul.u32 16, %s18
        %p227 = scmp.lt.s32.totalorder %s226, 31
        %s228 = scalar_select %p227, %s226, 31
        %s229 = smul.addr %s228, 8
        %s230 = scalar_lea.vmem %s0, %s229
        %s231 = smul.u32 16, %s18
        %s232 = smul.u32 16, %s18
        %p233 = scmp.lt.s32.totalorder %s232, 31
        %s234 = scalar_select %p233, %s232, 31
        %s235 = smul.addr %s234, 2
        %s236 = smul.addr %s235, 8
        %s237 = scalar_lea.vmem %s1, %s236
        %s238 = smul.u32 16, %s18
        %s239 = smul.u32 16, %s18
        %p240 = scmp.lt.s32.totalorder %s239, 31
        %s241 = scalar_select %p240, %s239, 31
        %s242 = smul.addr %s241, 8
        %s243 = scalar_lea.vmem %s2, %s242
        %s244 = smul.u32 16, %s18
        %s245 = smul.u32 16, %s18
        %v246 = vld [vmem:[%s3] sm:$0xff]
        %v247 = vld [vmem:[%s3 + $0x8] sm:$0xff]
        %v248 = vld [vmem:[%s3 + $0x10] sm:$0xff]
        %v249 = vld [vmem:[%s3 + $0x18] sm:$0xff]
        %v250 = vld [vmem:[%s3 + $0x20] sm:$0xff]
        %v251 = vld [vmem:[%s3 + $0x28] sm:$0xff]
        %v252 = vld [vmem:[%s3 + $0x30] sm:$0xff]
        %v253 = vld [vmem:[%s3 + $0x38] sm:$0xff]
        %v254 = vld [vmem:[%s3 + $0x40] sm:$0xff]
        %v255 = vld [vmem:[%s3 + $0x48] sm:$0xff]
        %v256 = vld [vmem:[%s3 + $0x50] sm:$0xff]
        %v257 = vld [vmem:[%s3 + $0x58] sm:$0xff]
        %v258 = vld [vmem:[%s3 + $0x60] sm:$0x1]
        %v259 = vld [vmem:[%s230] sm:$0xff]
        %v260 = vld [vmem:[%s230 + $0x8] sm:$0xff]
        %v261 = vld [vmem:[%s230 + $0x10] sm:$0xff]
        %v262 = vld [vmem:[%s230 + $0x18] sm:$0xff]
        %v263 = vld [vmem:[%s230 + $0x20] sm:$0xff]
        %v264 = vld [vmem:[%s230 + $0x28] sm:$0xff]
        %v265 = vld [vmem:[%s230 + $0x30] sm:$0xff]
        %v266 = vld [vmem:[%s230 + $0x38] sm:$0xff]
        %v267 = vld [vmem:[%s230 + $0x40] sm:$0xff]
        %v268 = vld [vmem:[%s230 + $0x48] sm:$0xff]
        %v269 = vld [vmem:[%s230 + $0x50] sm:$0xff]
        %v270 = vld [vmem:[%s230 + $0x58] sm:$0xff]
        %v271 = vld [vmem:[%s230 + $0x60] sm:$0xff]
        %v272 = vld [vmem:[%s230 + $0x68] sm:$0xff]
        %v273 = vld [vmem:[%s230 + $0x70] sm:$0xff]
        %v274 = vld [vmem:[%s230 + $0x78] sm:$0xff]
        %v275 = vld [vmem:[%s237] sm:$0xff]
        %v276 = vld [vmem:[%s237 + $0x8] sm:$0xff]
        %v277 = vld [vmem:[%s237 + $0x10] sm:$0xff]
        %v278 = vld [vmem:[%s237 + $0x18] sm:$0xff]
        %v279 = vld [vmem:[%s237 + $0x20] sm:$0xff]
        %v280 = vld [vmem:[%s237 + $0x28] sm:$0xff]
        %v281 = vld [vmem:[%s237 + $0x30] sm:$0xff]
        %v282 = vld [vmem:[%s237 + $0x38] sm:$0xff]
        %v283 = vld [vmem:[%s237 + $0x40] sm:$0xff]
        %v284 = vld [vmem:[%s237 + $0x48] sm:$0xff]
        %v285 = vld [vmem:[%s237 + $0x50] sm:$0xff]
        %v286 = vld [vmem:[%s237 + $0x58] sm:$0xff]
        %v287 = vld [vmem:[%s237 + $0x60] sm:$0xff]
        %v288 = vld [vmem:[%s237 + $0x68] sm:$0xff]
        %v289 = vld [vmem:[%s237 + $0x70] sm:$0xff]
        %v290 = vld [vmem:[%s237 + $0x78] sm:$0xff]
        %v291 = vld [vmem:[%s237 + $0x80] sm:$0xff]
        %v292 = vld [vmem:[%s237 + $0x88] sm:$0xff]
        %v293 = vld [vmem:[%s237 + $0x90] sm:$0xff]
        %v294 = vld [vmem:[%s237 + $0x98] sm:$0xff]
        %v295 = vld [vmem:[%s237 + $0xa0] sm:$0xff]
        %v296 = vld [vmem:[%s237 + $0xa8] sm:$0xff]
        %v297 = vld [vmem:[%s237 + $0xb0] sm:$0xff]
        %v298 = vld [vmem:[%s237 + $0xb8] sm:$0xff]
        %v299 = vld [vmem:[%s237 + $0xc0] sm:$0xff]
        %v300 = vld [vmem:[%s237 + $0xc8] sm:$0xff]
        %v301 = vld [vmem:[%s237 + $0xd0] sm:$0xff]
        %v302 = vld [vmem:[%s237 + $0xd8] sm:$0xff]
        %v303 = vld [vmem:[%s237 + $0xe0] sm:$0xff]
        %v304 = vld [vmem:[%s237 + $0xe8] sm:$0xff]
        %v305 = vld [vmem:[%s237 + $0xf0] sm:$0xff]
        %v306 = vld [vmem:[%s237 + $0xf8] sm:$0xff]
        %vm307 = vcmask 261120
        %v309 = vsel %vm307, %v259, 0
        %v312 = vsel %vm307, %v260, 0
        %v315 = vsel %vm307, %v261, 0
        %v318 = vsel %vm307, %v262, 0
        %v321 = vsel %vm307, %v263, 0
        %v324 = vsel %vm307, %v264, 0
        %v327 = vsel %vm307, %v265, 0
        %v330 = vsel %vm307, %v266, 0
        %v333 = vsel %vm307, %v267, 0
        %v336 = vsel %vm307, %v268, 0
        %v339 = vsel %vm307, %v269, 0
        %v342 = vsel %vm307, %v270, 0
        %v345 = vsel %vm307, %v271, 0
        %v348 = vsel %vm307, %v272, 0
        %v351 = vsel %vm307, %v273, 0
        %v354 = vsel %vm307, %v274, 0
        %356 = vmatpush.msra.mxu0 0.0
        %357 = vmatpush.msra.mxu0 0.0
        %358 = vmatpush.msra.mxu0 0.0
        %359 = vmatpush.msra.mxu0 0.0
        %360 = vmatpush.msra.mxu0 0.0
        %361 = vmatpush.msra.mxu0 0.0
        %362 = vmatpush.msra.mxu0 0.0
        %363 = vmatpush.msra.mxu0 0.0
        %364 = vmatpush.msra.mxu0 0.0
        %365 = vmatpush.msra.mxu0 0.0
        %366 = vmatpush.msra.mxu0 0.0
        %367 = vmatpush.msra.mxu0 0.0
        %368 = vmatpush.msra.mxu0 %v249
        %369 = vmatpush.msra.mxu0 %v248
        %370 = vmatpush.msra.mxu0 %v247
        %371 = vmatpush.msra.mxu0 %v246
        %372 = vmatmul.f32.gmra.mxu0 %v309
        %v373 = vpop.f32.mrf.mxu0
        %v374 = vadd.f32 0.0, %v373
        %375 = vmatmul.f32.gmra.mxu0 %v312
        %v376 = vpop.f32.mrf.mxu0
        %v377 = vadd.f32 0.0, %v376
        %378 = vmatmul.f32.gmra.mxu0 %v315
        %v379 = vpop.f32.mrf.mxu0
        %v380 = vadd.f32 0.0, %v379
        %381 = vmatmul.f32.gmra.mxu0 %v318
        %v382 = vpop.f32.mrf.mxu0
        %v383 = vadd.f32 0.0, %v382
        %384 = vmatmul.f32.gmra.mxu0 %v321
        %v385 = vpop.f32.mrf.mxu0
        %v386 = vadd.f32 0.0, %v385
        %387 = vmatmul.f32.gmra.mxu0 %v324
        %v388 = vpop.f32.mrf.mxu0
        %v389 = vadd.f32 0.0, %v388
        %390 = vmatmul.f32.gmra.mxu0 %v327
        %v391 = vpop.f32.mrf.mxu0
        %v392 = vadd.f32 0.0, %v391
        %393 = vmatmul.f32.gmra.mxu0 %v330
        %v394 = vpop.f32.mrf.mxu0
        %v395 = vadd.f32 0.0, %v394
        %396 = vmatmul.f32.gmra.mxu0 %v333
        %v397 = vpop.f32.mrf.mxu0
        %v398 = vadd.f32 0.0, %v397
        %399 = vmatmul.f32.gmra.mxu0 %v336
        %v400 = vpop.f32.mrf.mxu0
        %v401 = vadd.f32 0.0, %v400
        %402 = vmatmul.f32.gmra.mxu0 %v339
        %v403 = vpop.f32.mrf.mxu0
        %v404 = vadd.f32 0.0, %v403
        %405 = vmatmul.f32.gmra.mxu0 %v342
        %v406 = vpop.f32.mrf.mxu0
        %v407 = vadd.f32 0.0, %v406
        %408 = vmatmul.f32.gmra.mxu0 %v345
        %v409 = vpop.f32.mrf.mxu0
        %v410 = vadd.f32 0.0, %v409
        %411 = vmatmul.f32.gmra.mxu0 %v348
        %v412 = vpop.f32.mrf.mxu0
        %v413 = vadd.f32 0.0, %v412
        %414 = vmatmul.f32.gmra.mxu0 %v351
        %v415 = vpop.f32.mrf.mxu0
        %v416 = vadd.f32 0.0, %v415
        %417 = vmatmul.f32.gmra.mxu0 %v354
        %v418 = vpop.f32.mrf.mxu0
        %v419 = vadd.f32 0.0, %v418
        %420 = vdwg.mxu0
        %vm421 = vcmask 130048
        %v423 = vsel %vm421, %v275, 0
        %v426 = vsel %vm421, %v276, 0
        %v429 = vsel %vm421, %v277, 0
        %v432 = vsel %vm421, %v278, 0
        %v435 = vsel %vm421, %v279, 0
        %v438 = vsel %vm421, %v280, 0
        %v441 = vsel %vm421, %v281, 0
        %v444 = vsel %vm421, %v282, 0
        %v447 = vsel %vm421, %v283, 0
        %v450 = vsel %vm421, %v284, 0
        %v453 = vsel %vm421, %v285, 0
        %v456 = vsel %vm421, %v286, 0
        %v459 = vsel %vm421, %v287, 0
        %v462 = vsel %vm421, %v288, 0
        %v465 = vsel %vm421, %v289, 0
        %v468 = vsel %vm421, %v290, 0
        %v471 = vsel %vm421, %v291, 0
        %v474 = vsel %vm421, %v292, 0
        %v477 = vsel %vm421, %v293, 0
        %v480 = vsel %vm421, %v294, 0
        %v483 = vsel %vm421, %v295, 0
        %v486 = vsel %vm421, %v296, 0
        %v489 = vsel %vm421, %v297, 0
        %v492 = vsel %vm421, %v298, 0
        %v495 = vsel %vm421, %v299, 0
        %v498 = vsel %vm421, %v300, 0
        %v501 = vsel %vm421, %v301, 0
        %v504 = vsel %vm421, %v302, 0
        %v507 = vsel %vm421, %v303, 0
        %v510 = vsel %vm421, %v304, 0
        %v513 = vsel %vm421, %v305, 0
        %v516 = vsel %vm421, %v306, 0
        %518 = vmatpush.msra.mxu0 0.0
        %519 = vmatpush.msra.mxu0 0.0
        %520 = vmatpush.msra.mxu0 0.0
        %521 = vmatpush.msra.mxu0 0.0
        %522 = vmatpush.msra.mxu0 0.0
        %523 = vmatpush.msra.mxu0 0.0
        %524 = vmatpush.msra.mxu0 0.0
        %525 = vmatpush.msra.mxu0 0.0
        %526 = vmatpush.msra.mxu0 0.0
        %527 = vmatpush.msra.mxu0 0.0
        %528 = vmatpush.msra.mxu0 0.0
        %529 = vmatpush.msra.mxu0 0.0
        %530 = vmatpush.msra.mxu0 0.0
        %531 = vmatpush.msra.mxu0 0.0
        %532 = vmatpush.msra.mxu0 %v251
        %533 = vmatpush.msra.mxu0 %v250
        %534 = vmatmul.f32.gmra.mxu0 %v423
        %v535 = vpop.f32.mrf.mxu0
        %v536 = vadd.f32 0.0, %v535
        %537 = vmatmul.f32.gmra.mxu0 %v426
        %v538 = vpop.f32.mrf.mxu0
        %v539 = vadd.f32 0.0, %v538
        %540 = vmatmul.f32.gmra.mxu0 %v429
        %v541 = vpop.f32.mrf.mxu0
        %v542 = vadd.f32 0.0, %v541
        %543 = vmatmul.f32.gmra.mxu0 %v432
        %v544 = vpop.f32.mrf.mxu0
        %v545 = vadd.f32 0.0, %v544
        %546 = vmatmul.f32.gmra.mxu0 %v435
        %v547 = vpop.f32.mrf.mxu0
        %v548 = vadd.f32 0.0, %v547
        %549 = vmatmul.f32.gmra.mxu0 %v438
        %v550 = vpop.f32.mrf.mxu0
        %v551 = vadd.f32 0.0, %v550
        %552 = vmatmul.f32.gmra.mxu0 %v441
        %v553 = vpop.f32.mrf.mxu0
        %v554 = vadd.f32 0.0, %v553
        %555 = vmatmul.f32.gmra.mxu0 %v444
        %v556 = vpop.f32.mrf.mxu0
        %v557 = vadd.f32 0.0, %v556
        %558 = vmatmul.f32.gmra.mxu0 %v447
        %v559 = vpop.f32.mrf.mxu0
        %v560 = vadd.f32 0.0, %v559
        %561 = vmatmul.f32.gmra.mxu0 %v450
        %v562 = vpop.f32.mrf.mxu0
        %v563 = vadd.f32 0.0, %v562
        %564 = vmatmul.f32.gmra.mxu0 %v453
        %v565 = vpop.f32.mrf.mxu0
        %v566 = vadd.f32 0.0, %v565
        %567 = vmatmul.f32.gmra.mxu0 %v456
        %v568 = vpop.f32.mrf.mxu0
        %v569 = vadd.f32 0.0, %v568
        %570 = vmatmul.f32.gmra.mxu0 %v459
        %v571 = vpop.f32.mrf.mxu0
        %v572 = vadd.f32 0.0, %v571
        %573 = vmatmul.f32.gmra.mxu0 %v462
        %v574 = vpop.f32.mrf.mxu0
        %v575 = vadd.f32 0.0, %v574
        %576 = vmatmul.f32.gmra.mxu0 %v465
        %v577 = vpop.f32.mrf.mxu0
        %v578 = vadd.f32 0.0, %v577
        %579 = vmatmul.f32.gmra.mxu0 %v468
        %v580 = vpop.f32.mrf.mxu0
        %v581 = vadd.f32 0.0, %v580
        %582 = vmatmul.f32.gmra.mxu0 %v471
        %v583 = vpop.f32.mrf.mxu0
        %v584 = vadd.f32 0.0, %v583
        %585 = vmatmul.f32.gmra.mxu0 %v474
        %v586 = vpop.f32.mrf.mxu0
        %v587 = vadd.f32 0.0, %v586
        %588 = vmatmul.f32.gmra.mxu0 %v477
        %v589 = vpop.f32.mrf.mxu0
        %v590 = vadd.f32 0.0, %v589
        %591 = vmatmul.f32.gmra.mxu0 %v480
        %v592 = vpop.f32.mrf.mxu0
        %v593 = vadd.f32 0.0, %v592
        %594 = vmatmul.f32.gmra.mxu0 %v483
        %v595 = vpop.f32.mrf.mxu0
        %v596 = vadd.f32 0.0, %v595
        %597 = vmatmul.f32.gmra.mxu0 %v486
        %v598 = vpop.f32.mrf.mxu0
        %v599 = vadd.f32 0.0, %v598
        %600 = vmatmul.f32.gmra.mxu0 %v489
        %v601 = vpop.f32.mrf.mxu0
        %v602 = vadd.f32 0.0, %v601
        %603 = vmatmul.f32.gmra.mxu0 %v492
        %v604 = vpop.f32.mrf.mxu0
        %v605 = vadd.f32 0.0, %v604
        %606 = vmatmul.f32.gmra.mxu0 %v495
        %v607 = vpop.f32.mrf.mxu0
        %v608 = vadd.f32 0.0, %v607
        %609 = vmatmul.f32.gmra.mxu0 %v498
        %v610 = vpop.f32.mrf.mxu0
        %v611 = vadd.f32 0.0, %v610
        %612 = vmatmul.f32.gmra.mxu0 %v501
        %v613 = vpop.f32.mrf.mxu0
        %v614 = vadd.f32 0.0, %v613
        %615 = vmatmul.f32.gmra.mxu0 %v504
        %v616 = vpop.f32.mrf.mxu0
        %v617 = vadd.f32 0.0, %v616
        %618 = vmatmul.f32.gmra.mxu0 %v507
        %v619 = vpop.f32.mrf.mxu0
        %v620 = vadd.f32 0.0, %v619
        %621 = vmatmul.f32.gmra.mxu0 %v510
        %v622 = vpop.f32.mrf.mxu0
        %v623 = vadd.f32 0.0, %v622
        %624 = vmatmul.f32.gmra.mxu0 %v513
        %v625 = vpop.f32.mrf.mxu0
        %v626 = vadd.f32 0.0, %v625
        %627 = vmatmul.f32.gmra.mxu0 %v516
        %v628 = vpop.f32.mrf.mxu0
        %v629 = vadd.f32 0.0, %v628
        %630 = vdwg.mxu0
        %631 = vmatpush.msra.mxu0 0.0
        %632 = vmatpush.msra.mxu0 0.0
        %633 = vmatpush.msra.mxu0 0.0
        %634 = vmatpush.msra.mxu0 0.0
        %635 = vmatpush.msra.mxu0 0.0
        %636 = vmatpush.msra.mxu0 0.0
        %637 = vmatpush.msra.mxu0 0.0
        %638 = vmatpush.msra.mxu0 0.0
        %639 = vmatpush.msra.mxu0 0.0
        %640 = vmatpush.msra.mxu0 0.0
        %641 = vmatpush.msra.mxu0 0.0
        %642 = vmatpush.msra.mxu0 0.0
        %643 = vmatpush.msra.mxu0 0.0
        %644 = vmatpush.msra.mxu0 0.0
        %645 = vmatpush.msra.mxu0 %v253
        %646 = vmatpush.msra.mxu0 %v252
        %647 = vmatmul.f32.gmra.mxu0 %v423
        %v648 = vpop.f32.mrf.mxu0
        %v649 = vadd.f32 0.0, %v648
        %650 = vmatmul.f32.gmra.mxu0 %v426
        %v651 = vpop.f32.mrf.mxu0
        %v652 = vadd.f32 0.0, %v651
        %653 = vmatmul.f32.gmra.mxu0 %v429
        %v654 = vpop.f32.mrf.mxu0
        %v655 = vadd.f32 0.0, %v654
        %656 = vmatmul.f32.gmra.mxu0 %v432
        %v657 = vpop.f32.mrf.mxu0
        %v658 = vadd.f32 0.0, %v657
        %659 = vmatmul.f32.gmra.mxu0 %v435
        %v660 = vpop.f32.mrf.mxu0
        %v661 = vadd.f32 0.0, %v660
        %662 = vmatmul.f32.gmra.mxu0 %v438
        %v663 = vpop.f32.mrf.mxu0
        %v664 = vadd.f32 0.0, %v663
        %665 = vmatmul.f32.gmra.mxu0 %v441
        %v666 = vpop.f32.mrf.mxu0
        %v667 = vadd.f32 0.0, %v666
        %668 = vmatmul.f32.gmra.mxu0 %v444
        %v669 = vpop.f32.mrf.mxu0
        %v670 = vadd.f32 0.0, %v669
        %671 = vmatmul.f32.gmra.mxu0 %v447
        %v672 = vpop.f32.mrf.mxu0
        %v673 = vadd.f32 0.0, %v672
        %674 = vmatmul.f32.gmra.mxu0 %v450
        %v675 = vpop.f32.mrf.mxu0
        %v676 = vadd.f32 0.0, %v675
        %677 = vmatmul.f32.gmra.mxu0 %v453
        %v678 = vpop.f32.mrf.mxu0
        %v679 = vadd.f32 0.0, %v678
        %680 = vmatmul.f32.gmra.mxu0 %v456
        %v681 = vpop.f32.mrf.mxu0
        %v682 = vadd.f32 0.0, %v681
        %683 = vmatmul.f32.gmra.mxu0 %v459
        %v684 = vpop.f32.mrf.mxu0
        %v685 = vadd.f32 0.0, %v684
        %686 = vmatmul.f32.gmra.mxu0 %v462
        %v687 = vpop.f32.mrf.mxu0
        %v688 = vadd.f32 0.0, %v687
        %689 = vmatmul.f32.gmra.mxu0 %v465
        %v690 = vpop.f32.mrf.mxu0
        %v691 = vadd.f32 0.0, %v690
        %692 = vmatmul.f32.gmra.mxu0 %v468
        %v693 = vpop.f32.mrf.mxu0
        %v694 = vadd.f32 0.0, %v693
        %695 = vmatmul.f32.gmra.mxu0 %v471
        %v696 = vpop.f32.mrf.mxu0
        %v697 = vadd.f32 0.0, %v696
        %698 = vmatmul.f32.gmra.mxu0 %v474
        %v699 = vpop.f32.mrf.mxu0
        %v700 = vadd.f32 0.0, %v699
        %701 = vmatmul.f32.gmra.mxu0 %v477
        %v702 = vpop.f32.mrf.mxu0
        %v703 = vadd.f32 0.0, %v702
        %704 = vmatmul.f32.gmra.mxu0 %v480
        %v705 = vpop.f32.mrf.mxu0
        %v706 = vadd.f32 0.0, %v705
        %707 = vmatmul.f32.gmra.mxu0 %v483
        %v708 = vpop.f32.mrf.mxu0
        %v709 = vadd.f32 0.0, %v708
        %710 = vmatmul.f32.gmra.mxu0 %v486
        %v711 = vpop.f32.mrf.mxu0
        %v712 = vadd.f32 0.0, %v711
        %713 = vmatmul.f32.gmra.mxu0 %v489
        %v714 = vpop.f32.mrf.mxu0
        %v715 = vadd.f32 0.0, %v714
        %716 = vmatmul.f32.gmra.mxu0 %v492
        %v717 = vpop.f32.mrf.mxu0
        %v718 = vadd.f32 0.0, %v717
        %719 = vmatmul.f32.gmra.mxu0 %v495
        %v720 = vpop.f32.mrf.mxu0
        %v721 = vadd.f32 0.0, %v720
        %722 = vmatmul.f32.gmra.mxu0 %v498
        %v723 = vpop.f32.mrf.mxu0
        %v724 = vadd.f32 0.0, %v723
        %725 = vmatmul.f32.gmra.mxu0 %v501
        %v726 = vpop.f32.mrf.mxu0
        %v727 = vadd.f32 0.0, %v726
        %728 = vmatmul.f32.gmra.mxu0 %v504
        %v729 = vpop.f32.mrf.mxu0
        %v730 = vadd.f32 0.0, %v729
        %731 = vmatmul.f32.gmra.mxu0 %v507
        %v732 = vpop.f32.mrf.mxu0
        %v733 = vadd.f32 0.0, %v732
        %734 = vmatmul.f32.gmra.mxu0 %v510
        %v735 = vpop.f32.mrf.mxu0
        %v736 = vadd.f32 0.0, %v735
        %737 = vmatmul.f32.gmra.mxu0 %v513
        %v738 = vpop.f32.mrf.mxu0
        %v739 = vadd.f32 0.0, %v738
        %740 = vmatmul.f32.gmra.mxu0 %v516
        %v741 = vpop.f32.mrf.mxu0
        %v742 = vadd.f32 0.0, %v741
        %743 = vdwg.mxu0
        %v744 = vld [vmem:[%s243] sm:$0xff]
        %v745 = vld [vmem:[%s243 + $0x8] sm:$0xff]
        %v746 = vld [vmem:[%s243 + $0x10] sm:$0xff]
        %v747 = vld [vmem:[%s243 + $0x18] sm:$0xff]
        %v748 = vld [vmem:[%s243 + $0x20] sm:$0xff]
        %v749 = vld [vmem:[%s243 + $0x28] sm:$0xff]
        %v750 = vld [vmem:[%s243 + $0x30] sm:$0xff]
        %v751 = vld [vmem:[%s243 + $0x38] sm:$0xff]
        %v752 = vld [vmem:[%s243 + $0x40] sm:$0xff]
        %v753 = vld [vmem:[%s243 + $0x48] sm:$0xff]
        %v754 = vld [vmem:[%s243 + $0x50] sm:$0xff]
        %v755 = vld [vmem:[%s243 + $0x58] sm:$0xff]
        %v756 = vld [vmem:[%s243 + $0x60] sm:$0xff]
        %v757 = vld [vmem:[%s243 + $0x68] sm:$0xff]
        %v758 = vld [vmem:[%s243 + $0x70] sm:$0xff]
        %v759 = vld [vmem:[%s243 + $0x78] sm:$0xff]
        %v761 = vsel %vm421, %v374, 0
        %v764 = vsel %vm421, %v536, 0
        %v767 = vsel %vm421, %v539, 0
        %769 = vmatpush.xpose.msra.mxu0 0.0
        %770 = vmatpush.xpose.msra.mxu0 0.0
        %771 = vmatpush.xpose.msra.mxu0 0.0
        %772 = vmatpush.xpose.msra.mxu0 0.0
        %773 = vmatpush.xpose.msra.mxu0 0.0
        %774 = vmatpush.xpose.msra.mxu0 0.0
        %775 = vmatpush.xpose.msra.mxu0 0.0
        %776 = vmatpush.xpose.msra.mxu0 0.0
        %777 = vmatpush.xpose.msra.mxu0 0.0
        %778 = vmatpush.xpose.msra.mxu0 0.0
        %779 = vmatpush.xpose.msra.mxu0 0.0
        %780 = vmatpush.xpose.msra.mxu0 0.0
        %781 = vmatpush.xpose.msra.mxu0 0.0
        %782 = vmatpush.xpose.msra.mxu0 0.0
        %783 = vmatpush.xpose.msra.mxu0 %v767
        %784 = vmatpush.xpose.msra.mxu0 %v764
        %785 = vmatmul.f32.gmra.mxu0 %v761
        %v786 = vpop.f32.mrf.mxu0
        %v787 = vadd.f32 0.0, %v786
        %788 = vdwg.mxu0
        %v790 = vsel %vm421, %v377, 0
        %v793 = vsel %vm421, %v542, 0
        %v796 = vsel %vm421, %v545, 0
        %798 = vmatpush.xpose.msra.mxu0 0.0
        %799 = vmatpush.xpose.msra.mxu0 0.0
        %800 = vmatpush.xpose.msra.mxu0 0.0
        %801 = vmatpush.xpose.msra.mxu0 0.0
        %802 = vmatpush.xpose.msra.mxu0 0.0
        %803 = vmatpush.xpose.msra.mxu0 0.0
        %804 = vmatpush.xpose.msra.mxu0 0.0
        %805 = vmatpush.xpose.msra.mxu0 0.0
        %806 = vmatpush.xpose.msra.mxu0 0.0
        %807 = vmatpush.xpose.msra.mxu0 0.0
        %808 = vmatpush.xpose.msra.mxu0 0.0
        %809 = vmatpush.xpose.msra.mxu0 0.0
        %810 = vmatpush.xpose.msra.mxu0 0.0
        %811 = vmatpush.xpose.msra.mxu0 0.0
        %812 = vmatpush.xpose.msra.mxu0 %v796
        %813 = vmatpush.xpose.msra.mxu0 %v793
        %814 = vmatmul.f32.gmra.mxu0 %v790
        %v815 = vpop.f32.mrf.mxu0
        %v816 = vadd.f32 0.0, %v815
        %817 = vdwg.mxu0
        %v819 = vsel %vm421, %v380, 0
        %v822 = vsel %vm421, %v548, 0
        %v825 = vsel %vm421, %v551, 0
        %827 = vmatpush.xpose.msra.mxu0 0.0
        %828 = vmatpush.xpose.msra.mxu0 0.0
        %829 = vmatpush.xpose.msra.mxu0 0.0
        %830 = vmatpush.xpose.msra.mxu0 0.0
        %831 = vmatpush.xpose.msra.mxu0 0.0
        %832 = vmatpush.xpose.msra.mxu0 0.0
        %833 = vmatpush.xpose.msra.mxu0 0.0
        %834 = vmatpush.xpose.msra.mxu0 0.0
        %835 = vmatpush.xpose.msra.mxu0 0.0
        %836 = vmatpush.xpose.msra.mxu0 0.0
        %837 = vmatpush.xpose.msra.mxu0 0.0
        %838 = vmatpush.xpose.msra.mxu0 0.0
        %839 = vmatpush.xpose.msra.mxu0 0.0
        %840 = vmatpush.xpose.msra.mxu0 0.0
        %841 = vmatpush.xpose.msra.mxu0 %v825
        %842 = vmatpush.xpose.msra.mxu0 %v822
        %843 = vmatmul.f32.gmra.mxu0 %v819
        %v844 = vpop.f32.mrf.mxu0
        %v845 = vadd.f32 0.0, %v844
        %846 = vdwg.mxu0
        %v848 = vsel %vm421, %v383, 0
        %v851 = vsel %vm421, %v554, 0
        %v854 = vsel %vm421, %v557, 0
        %856 = vmatpush.xpose.msra.mxu0 0.0
        %857 = vmatpush.xpose.msra.mxu0 0.0
        %858 = vmatpush.xpose.msra.mxu0 0.0
        %859 = vmatpush.xpose.msra.mxu0 0.0
        %860 = vmatpush.xpose.msra.mxu0 0.0
        %861 = vmatpush.xpose.msra.mxu0 0.0
        %862 = vmatpush.xpose.msra.mxu0 0.0
        %863 = vmatpush.xpose.msra.mxu0 0.0
        %864 = vmatpush.xpose.msra.mxu0 0.0
        %865 = vmatpush.xpose.msra.mxu0 0.0
        %866 = vmatpush.xpose.msra.mxu0 0.0
        %867 = vmatpush.xpose.msra.mxu0 0.0
        %868 = vmatpush.xpose.msra.mxu0 0.0
        %869 = vmatpush.xpose.msra.mxu0 0.0
        %870 = vmatpush.xpose.msra.mxu0 %v854
        %871 = vmatpush.xpose.msra.mxu0 %v851
        %872 = vmatmul.f32.gmra.mxu0 %v848
        %v873 = vpop.f32.mrf.mxu0
        %v874 = vadd.f32 0.0, %v873
        %875 = vdwg.mxu0
        %v877 = vsel %vm421, %v386, 0
        %v880 = vsel %vm421, %v560, 0
        %v883 = vsel %vm421, %v563, 0
        %885 = vmatpush.xpose.msra.mxu0 0.0
        %886 = vmatpush.xpose.msra.mxu0 0.0
        %887 = vmatpush.xpose.msra.mxu0 0.0
        %888 = vmatpush.xpose.msra.mxu0 0.0
        %889 = vmatpush.xpose.msra.mxu0 0.0
        %890 = vmatpush.xpose.msra.mxu0 0.0
        %891 = vmatpush.xpose.msra.mxu0 0.0
        %892 = vmatpush.xpose.msra.mxu0 0.0
        %893 = vmatpush.xpose.msra.mxu0 0.0
        %894 = vmatpush.xpose.msra.mxu0 0.0
        %895 = vmatpush.xpose.msra.mxu0 0.0
        %896 = vmatpush.xpose.msra.mxu0 0.0
        %897 = vmatpush.xpose.msra.mxu0 0.0
        %898 = vmatpush.xpose.msra.mxu0 0.0
        %899 = vmatpush.xpose.msra.mxu0 %v883
        %900 = vmatpush.xpose.msra.mxu0 %v880
        %901 = vmatmul.f32.gmra.mxu0 %v877
        %v902 = vpop.f32.mrf.mxu0
        %v903 = vadd.f32 0.0, %v902
        %904 = vdwg.mxu0
        %v906 = vsel %vm421, %v389, 0
        %v909 = vsel %vm421, %v566, 0
        %v912 = vsel %vm421, %v569, 0
        %914 = vmatpush.xpose.msra.mxu0 0.0
        %915 = vmatpush.xpose.msra.mxu0 0.0
        %916 = vmatpush.xpose.msra.mxu0 0.0
        %917 = vmatpush.xpose.msra.mxu0 0.0
        %918 = vmatpush.xpose.msra.mxu0 0.0
        %919 = vmatpush.xpose.msra.mxu0 0.0
        %920 = vmatpush.xpose.msra.mxu0 0.0
        %921 = vmatpush.xpose.msra.mxu0 0.0
        %922 = vmatpush.xpose.msra.mxu0 0.0
        %923 = vmatpush.xpose.msra.mxu0 0.0
        %924 = vmatpush.xpose.msra.mxu0 0.0
        %925 = vmatpush.xpose.msra.mxu0 0.0
        %926 = vmatpush.xpose.msra.mxu0 0.0
        %927 = vmatpush.xpose.msra.mxu0 0.0
        %928 = vmatpush.xpose.msra.mxu0 %v912
        %929 = vmatpush.xpose.msra.mxu0 %v909
        %930 = vmatmul.f32.gmra.mxu0 %v906
        %v931 = vpop.f32.mrf.mxu0
        %v932 = vadd.f32 0.0, %v931
        %933 = vdwg.mxu0
        %v935 = vsel %vm421, %v392, 0
        %v938 = vsel %vm421, %v572, 0
        %v941 = vsel %vm421, %v575, 0
        %943 = vmatpush.xpose.msra.mxu0 0.0
        %944 = vmatpush.xpose.msra.mxu0 0.0
        %945 = vmatpush.xpose.msra.mxu0 0.0
        %946 = vmatpush.xpose.msra.mxu0 0.0
        %947 = vmatpush.xpose.msra.mxu0 0.0
        %948 = vmatpush.xpose.msra.mxu0 0.0
        %949 = vmatpush.xpose.msra.mxu0 0.0
        %950 = vmatpush.xpose.msra.mxu0 0.0
        %951 = vmatpush.xpose.msra.mxu0 0.0
        %952 = vmatpush.xpose.msra.mxu0 0.0
        %953 = vmatpush.xpose.msra.mxu0 0.0
        %954 = vmatpush.xpose.msra.mxu0 0.0
        %955 = vmatpush.xpose.msra.mxu0 0.0
        %956 = vmatpush.xpose.msra.mxu0 0.0
        %957 = vmatpush.xpose.msra.mxu0 %v941
        %958 = vmatpush.xpose.msra.mxu0 %v938
        %959 = vmatmul.f32.gmra.mxu0 %v935
        %v960 = vpop.f32.mrf.mxu0
        %v961 = vadd.f32 0.0, %v960
        %962 = vdwg.mxu0
        %v964 = vsel %vm421, %v395, 0
        %v967 = vsel %vm421, %v578, 0
        %v970 = vsel %vm421, %v581, 0
        %972 = vmatpush.xpose.msra.mxu0 0.0
        %973 = vmatpush.xpose.msra.mxu0 0.0
        %974 = vmatpush.xpose.msra.mxu0 0.0
        %975 = vmatpush.xpose.msra.mxu0 0.0
        %976 = vmatpush.xpose.msra.mxu0 0.0
        %977 = vmatpush.xpose.msra.mxu0 0.0
        %978 = vmatpush.xpose.msra.mxu0 0.0
        %979 = vmatpush.xpose.msra.mxu0 0.0
        %980 = vmatpush.xpose.msra.mxu0 0.0
        %981 = vmatpush.xpose.msra.mxu0 0.0
        %982 = vmatpush.xpose.msra.mxu0 0.0
        %983 = vmatpush.xpose.msra.mxu0 0.0
        %984 = vmatpush.xpose.msra.mxu0 0.0
        %985 = vmatpush.xpose.msra.mxu0 0.0
        %986 = vmatpush.xpose.msra.mxu0 %v970
        %987 = vmatpush.xpose.msra.mxu0 %v967
        %988 = vmatmul.f32.gmra.mxu0 %v964
        %v989 = vpop.f32.mrf.mxu0
        %v990 = vadd.f32 0.0, %v989
        %991 = vdwg.mxu0
        %v993 = vsel %vm421, %v398, 0
        %v996 = vsel %vm421, %v584, 0
        %v999 = vsel %vm421, %v587, 0
        %1001 = vmatpush.xpose.msra.mxu0 0.0
        %1002 = vmatpush.xpose.msra.mxu0 0.0
        %1003 = vmatpush.xpose.msra.mxu0 0.0
        %1004 = vmatpush.xpose.msra.mxu0 0.0
        %1005 = vmatpush.xpose.msra.mxu0 0.0
        %1006 = vmatpush.xpose.msra.mxu0 0.0
        %1007 = vmatpush.xpose.msra.mxu0 0.0
        %1008 = vmatpush.xpose.msra.mxu0 0.0
        %1009 = vmatpush.xpose.msra.mxu0 0.0
        %1010 = vmatpush.xpose.msra.mxu0 0.0
        %1011 = vmatpush.xpose.msra.mxu0 0.0
        %1012 = vmatpush.xpose.msra.mxu0 0.0
        %1013 = vmatpush.xpose.msra.mxu0 0.0
        %1014 = vmatpush.xpose.msra.mxu0 0.0
        %1015 = vmatpush.xpose.msra.mxu0 %v999
        %1016 = vmatpush.xpose.msra.mxu0 %v996
        %1017 = vmatmul.f32.gmra.mxu0 %v993
        %v1018 = vpop.f32.mrf.mxu0
        %v1019 = vadd.f32 0.0, %v1018
        %1020 = vdwg.mxu0
        %v1022 = vsel %vm421, %v401, 0
        %v1025 = vsel %vm421, %v590, 0
        %v1028 = vsel %vm421, %v593, 0
        %1030 = vmatpush.xpose.msra.mxu0 0.0
        %1031 = vmatpush.xpose.msra.mxu0 0.0
        %1032 = vmatpush.xpose.msra.mxu0 0.0
        %1033 = vmatpush.xpose.msra.mxu0 0.0
        %1034 = vmatpush.xpose.msra.mxu0 0.0
        %1035 = vmatpush.xpose.msra.mxu0 0.0
        %1036 = vmatpush.xpose.msra.mxu0 0.0
        %1037 = vmatpush.xpose.msra.mxu0 0.0
        %1038 = vmatpush.xpose.msra.mxu0 0.0
        %1039 = vmatpush.xpose.msra.mxu0 0.0
        %1040 = vmatpush.xpose.msra.mxu0 0.0
        %1041 = vmatpush.xpose.msra.mxu0 0.0
        %1042 = vmatpush.xpose.msra.mxu0 0.0
        %1043 = vmatpush.xpose.msra.mxu0 0.0
        %1044 = vmatpush.xpose.msra.mxu0 %v1028
        %1045 = vmatpush.xpose.msra.mxu0 %v1025
        %1046 = vmatmul.f32.gmra.mxu0 %v1022
        %v1047 = vpop.f32.mrf.mxu0
        %v1048 = vadd.f32 0.0, %v1047
        %1049 = vdwg.mxu0
        %v1051 = vsel %vm421, %v404, 0
        %v1054 = vsel %vm421, %v596, 0
        %v1057 = vsel %vm421, %v599, 0
        %1059 = vmatpush.xpose.msra.mxu0 0.0
        %1060 = vmatpush.xpose.msra.mxu0 0.0
        %1061 = vmatpush.xpose.msra.mxu0 0.0
        %1062 = vmatpush.xpose.msra.mxu0 0.0
        %1063 = vmatpush.xpose.msra.mxu0 0.0
        %1064 = vmatpush.xpose.msra.mxu0 0.0
        %1065 = vmatpush.xpose.msra.mxu0 0.0
        %1066 = vmatpush.xpose.msra.mxu0 0.0
        %1067 = vmatpush.xpose.msra.mxu0 0.0
        %1068 = vmatpush.xpose.msra.mxu0 0.0
        %1069 = vmatpush.xpose.msra.mxu0 0.0
        %1070 = vmatpush.xpose.msra.mxu0 0.0
        %1071 = vmatpush.xpose.msra.mxu0 0.0
        %1072 = vmatpush.xpose.msra.mxu0 0.0
        %1073 = vmatpush.xpose.msra.mxu0 %v1057
        %1074 = vmatpush.xpose.msra.mxu0 %v1054
        %1075 = vmatmul.f32.gmra.mxu0 %v1051
        %v1076 = vpop.f32.mrf.mxu0
        %v1077 = vadd.f32 0.0, %v1076
        %1078 = vdwg.mxu0
        %v1080 = vsel %vm421, %v407, 0
        %v1083 = vsel %vm421, %v602, 0
        %v1086 = vsel %vm421, %v605, 0
        %1088 = vmatpush.xpose.msra.mxu0 0.0
        %1089 = vmatpush.xpose.msra.mxu0 0.0
        %1090 = vmatpush.xpose.msra.mxu0 0.0
        %1091 = vmatpush.xpose.msra.mxu0 0.0
        %1092 = vmatpush.xpose.msra.mxu0 0.0
        %1093 = vmatpush.xpose.msra.mxu0 0.0
        %1094 = vmatpush.xpose.msra.mxu0 0.0
        %1095 = vmatpush.xpose.msra.mxu0 0.0
        %1096 = vmatpush.xpose.msra.mxu0 0.0
        %1097 = vmatpush.xpose.msra.mxu0 0.0
        %1098 = vmatpush.xpose.msra.mxu0 0.0
        %1099 = vmatpush.xpose.msra.mxu0 0.0
        %1100 = vmatpush.xpose.msra.mxu0 0.0
        %1101 = vmatpush.xpose.msra.mxu0 0.0
        %1102 = vmatpush.xpose.msra.mxu0 %v1086
        %1103 = vmatpush.xpose.msra.mxu0 %v1083
        %1104 = vmatmul.f32.gmra.mxu0 %v1080
        %v1105 = vpop.f32.mrf.mxu0
        %v1106 = vadd.f32 0.0, %v1105
        %1107 = vdwg.mxu0
        %v1109 = vsel %vm421, %v410, 0
        %v1112 = vsel %vm421, %v608, 0
        %v1115 = vsel %vm421, %v611, 0
        %1117 = vmatpush.xpose.msra.mxu0 0.0
        %1118 = vmatpush.xpose.msra.mxu0 0.0
        %1119 = vmatpush.xpose.msra.mxu0 0.0
        %1120 = vmatpush.xpose.msra.mxu0 0.0
        %1121 = vmatpush.xpose.msra.mxu0 0.0
        %1122 = vmatpush.xpose.msra.mxu0 0.0
        %1123 = vmatpush.xpose.msra.mxu0 0.0
        %1124 = vmatpush.xpose.msra.mxu0 0.0
        %1125 = vmatpush.xpose.msra.mxu0 0.0
        %1126 = vmatpush.xpose.msra.mxu0 0.0
        %1127 = vmatpush.xpose.msra.mxu0 0.0
        %1128 = vmatpush.xpose.msra.mxu0 0.0
        %1129 = vmatpush.xpose.msra.mxu0 0.0
        %1130 = vmatpush.xpose.msra.mxu0 0.0
        %1131 = vmatpush.xpose.msra.mxu0 %v1115
        %1132 = vmatpush.xpose.msra.mxu0 %v1112
        %1133 = vmatmul.f32.gmra.mxu0 %v1109
        %v1134 = vpop.f32.mrf.mxu0
        %v1135 = vadd.f32 0.0, %v1134
        %1136 = vdwg.mxu0
        %v1138 = vsel %vm421, %v413, 0
        %v1141 = vsel %vm421, %v614, 0
        %v1144 = vsel %vm421, %v617, 0
        %1146 = vmatpush.xpose.msra.mxu0 0.0
        %1147 = vmatpush.xpose.msra.mxu0 0.0
        %1148 = vmatpush.xpose.msra.mxu0 0.0
        %1149 = vmatpush.xpose.msra.mxu0 0.0
        %1150 = vmatpush.xpose.msra.mxu0 0.0
        %1151 = vmatpush.xpose.msra.mxu0 0.0
        %1152 = vmatpush.xpose.msra.mxu0 0.0
        %1153 = vmatpush.xpose.msra.mxu0 0.0
        %1154 = vmatpush.xpose.msra.mxu0 0.0
        %1155 = vmatpush.xpose.msra.mxu0 0.0
        %1156 = vmatpush.xpose.msra.mxu0 0.0
        %1157 = vmatpush.xpose.msra.mxu0 0.0
        %1158 = vmatpush.xpose.msra.mxu0 0.0
        %1159 = vmatpush.xpose.msra.mxu0 0.0
        %1160 = vmatpush.xpose.msra.mxu0 %v1144
        %1161 = vmatpush.xpose.msra.mxu0 %v1141
        %1162 = vmatmul.f32.gmra.mxu0 %v1138
        %v1163 = vpop.f32.mrf.mxu0
        %v1164 = vadd.f32 0.0, %v1163
        %1165 = vdwg.mxu0
        %v1167 = vsel %vm421, %v416, 0
        %v1170 = vsel %vm421, %v620, 0
        %v1173 = vsel %vm421, %v623, 0
        %1175 = vmatpush.xpose.msra.mxu0 0.0
        %1176 = vmatpush.xpose.msra.mxu0 0.0
        %1177 = vmatpush.xpose.msra.mxu0 0.0
        %1178 = vmatpush.xpose.msra.mxu0 0.0
        %1179 = vmatpush.xpose.msra.mxu0 0.0
        %1180 = vmatpush.xpose.msra.mxu0 0.0
        %1181 = vmatpush.xpose.msra.mxu0 0.0
        %1182 = vmatpush.xpose.msra.mxu0 0.0
        %1183 = vmatpush.xpose.msra.mxu0 0.0
        %1184 = vmatpush.xpose.msra.mxu0 0.0
        %1185 = vmatpush.xpose.msra.mxu0 0.0
        %1186 = vmatpush.xpose.msra.mxu0 0.0
        %1187 = vmatpush.xpose.msra.mxu0 0.0
        %1188 = vmatpush.xpose.msra.mxu0 0.0
        %1189 = vmatpush.xpose.msra.mxu0 %v1173
        %1190 = vmatpush.xpose.msra.mxu0 %v1170
        %1191 = vmatmul.f32.gmra.mxu0 %v1167
        %v1192 = vpop.f32.mrf.mxu0
        %v1193 = vadd.f32 0.0, %v1192
        %1194 = vdwg.mxu0
        %v1196 = vsel %vm421, %v419, 0
        %v1199 = vsel %vm421, %v626, 0
        %v1202 = vsel %vm421, %v629, 0
        %1204 = vmatpush.xpose.msra.mxu0 0.0
        %1205 = vmatpush.xpose.msra.mxu0 0.0
        %1206 = vmatpush.xpose.msra.mxu0 0.0
        %1207 = vmatpush.xpose.msra.mxu0 0.0
        %1208 = vmatpush.xpose.msra.mxu0 0.0
        %1209 = vmatpush.xpose.msra.mxu0 0.0
        %1210 = vmatpush.xpose.msra.mxu0 0.0
        %1211 = vmatpush.xpose.msra.mxu0 0.0
        %1212 = vmatpush.xpose.msra.mxu0 0.0
        %1213 = vmatpush.xpose.msra.mxu0 0.0
        %1214 = vmatpush.xpose.msra.mxu0 0.0
        %1215 = vmatpush.xpose.msra.mxu0 0.0
        %1216 = vmatpush.xpose.msra.mxu0 0.0
        %1217 = vmatpush.xpose.msra.mxu0 0.0
        %1218 = vmatpush.xpose.msra.mxu0 %v1202
        %1219 = vmatpush.xpose.msra.mxu0 %v1199
        %1220 = vmatmul.f32.gmra.mxu0 %v1196
        %v1221 = vpop.f32.mrf.mxu0
        %v1222 = vadd.f32 0.0, %v1221
        %1223 = vdwg.mxu0
        %v1224 = vmul.f32 %v787, 0.25
        %v1225 = vmul.f32 %v816, 0.25
        %v1226 = vmul.f32 %v845, 0.25
        %v1227 = vmul.f32 %v874, 0.25
        %v1228 = vmul.f32 %v903, 0.25
        %v1229 = vmul.f32 %v932, 0.25
        %v1230 = vmul.f32 %v961, 0.25
        %v1231 = vmul.f32 %v990, 0.25
        %v1232 = vmul.f32 %v1019, 0.25
        %v1233 = vmul.f32 %v1048, 0.25
        %v1234 = vmul.f32 %v1077, 0.25
        %v1235 = vmul.f32 %v1106, 0.25
        %v1236 = vmul.f32 %v1135, 0.25
        %v1237 = vmul.f32 %v1164, 0.25
        %v1238 = vmul.f32 %v1193, 0.25
        %v1239 = vmul.f32 %v1222, 0.25
        %vm1240 = vcmp.gt.f32.partialorder %v744, 0.0
        %vm1241 = vcmp.gt.f32.partialorder %v745, 0.0
        %vm1242 = vcmp.gt.f32.partialorder %v746, 0.0
        %vm1243 = vcmp.gt.f32.partialorder %v747, 0.0
        %vm1244 = vcmp.gt.f32.partialorder %v748, 0.0
        %vm1245 = vcmp.gt.f32.partialorder %v749, 0.0
        %vm1246 = vcmp.gt.f32.partialorder %v750, 0.0
        %vm1247 = vcmp.gt.f32.partialorder %v751, 0.0
        %vm1248 = vcmp.gt.f32.partialorder %v752, 0.0
        %vm1249 = vcmp.gt.f32.partialorder %v753, 0.0
        %vm1250 = vcmp.gt.f32.partialorder %v754, 0.0
        %vm1251 = vcmp.gt.f32.partialorder %v755, 0.0
        %vm1252 = vcmp.gt.f32.partialorder %v756, 0.0
        %vm1253 = vcmp.gt.f32.partialorder %v757, 0.0
        %vm1254 = vcmp.gt.f32.partialorder %v758, 0.0
        %vm1255 = vcmp.gt.f32.partialorder %v759, 0.0
        %v1256 = vsel %vm1240, %v1224, -1e+09
        %v1257 = vsel %vm1241, %v1225, -1e+09
        %v1258 = vsel %vm1242, %v1226, -1e+09
        %v1259 = vsel %vm1243, %v1227, -1e+09
        %v1260 = vsel %vm1244, %v1228, -1e+09
        %v1261 = vsel %vm1245, %v1229, -1e+09
        %v1262 = vsel %vm1246, %v1230, -1e+09
        %v1263 = vsel %vm1247, %v1231, -1e+09
        %v1264 = vsel %vm1248, %v1232, -1e+09
        %v1265 = vsel %vm1249, %v1233, -1e+09
        %v1266 = vsel %vm1250, %v1234, -1e+09
        %v1267 = vsel %vm1251, %v1235, -1e+09
        %v1268 = vsel %vm1252, %v1236, -1e+09
        %v1269 = vsel %vm1253, %v1237, -1e+09
        %v1270 = vsel %vm1254, %v1238, -1e+09
        %v1271 = vsel %vm1255, %v1239, -1e+09
        %v1272 = vsel %vm421, %v1256, -inf
        %1273 = vmax.xlane.f32.xlu0 %v1272
        %v1274 = vpop.xlane.xlu0 %1273
        %v1275 = vsel %vm421, %v1257, -inf
        %1276 = vmax.xlane.f32.xlu0 %v1275
        %v1277 = vpop.xlane.xlu0 %1276
        %v1278 = vsel %vm421, %v1258, -inf
        %1279 = vmax.xlane.f32.xlu0 %v1278
        %v1280 = vpop.xlane.xlu0 %1279
        %v1281 = vsel %vm421, %v1259, -inf
        %1282 = vmax.xlane.f32.xlu0 %v1281
        %v1283 = vpop.xlane.xlu0 %1282
        %v1284 = vsel %vm421, %v1260, -inf
        %1285 = vmax.xlane.f32.xlu0 %v1284
        %v1286 = vpop.xlane.xlu0 %1285
        %v1287 = vsel %vm421, %v1261, -inf
        %1288 = vmax.xlane.f32.xlu0 %v1287
        %v1289 = vpop.xlane.xlu0 %1288
        %v1290 = vsel %vm421, %v1262, -inf
        %1291 = vmax.xlane.f32.xlu0 %v1290
        %v1292 = vpop.xlane.xlu0 %1291
        %v1293 = vsel %vm421, %v1263, -inf
        %1294 = vmax.xlane.f32.xlu0 %v1293
        %v1295 = vpop.xlane.xlu0 %1294
        %v1296 = vsel %vm421, %v1264, -inf
        %1297 = vmax.xlane.f32.xlu0 %v1296
        %v1298 = vpop.xlane.xlu0 %1297
        %v1299 = vsel %vm421, %v1265, -inf
        %1300 = vmax.xlane.f32.xlu0 %v1299
        %v1301 = vpop.xlane.xlu0 %1300
        %v1302 = vsel %vm421, %v1266, -inf
        %1303 = vmax.xlane.f32.xlu0 %v1302
        %v1304 = vpop.xlane.xlu0 %1303
        %v1305 = vsel %vm421, %v1267, -inf
        %1306 = vmax.xlane.f32.xlu0 %v1305
        %v1307 = vpop.xlane.xlu0 %1306
        %v1308 = vsel %vm421, %v1268, -inf
        %1309 = vmax.xlane.f32.xlu0 %v1308
        %v1310 = vpop.xlane.xlu0 %1309
        %v1311 = vsel %vm421, %v1269, -inf
        %1312 = vmax.xlane.f32.xlu0 %v1311
        %v1313 = vpop.xlane.xlu0 %1312
        %v1314 = vsel %vm421, %v1270, -inf
        %1315 = vmax.xlane.f32.xlu0 %v1314
        %v1316 = vpop.xlane.xlu0 %1315
        %v1317 = vsel %vm421, %v1271, -inf
        %1318 = vmax.xlane.f32.xlu0 %v1317
        %v1319 = vpop.xlane.xlu0 %1318
        %v1320 = vsub.f32 %v1256, %v1274
        %v1321 = vsub.f32 %v1257, %v1277
        %v1322 = vsub.f32 %v1258, %v1280
        %v1323 = vsub.f32 %v1259, %v1283
        %v1324 = vsub.f32 %v1260, %v1286
        %v1325 = vsub.f32 %v1261, %v1289
        %v1326 = vsub.f32 %v1262, %v1292
        %v1327 = vsub.f32 %v1263, %v1295
        %v1328 = vsub.f32 %v1264, %v1298
        %v1329 = vsub.f32 %v1265, %v1301
        %v1330 = vsub.f32 %v1266, %v1304
        %v1331 = vsub.f32 %v1267, %v1307
        %v1332 = vsub.f32 %v1268, %v1310
        %v1333 = vsub.f32 %v1269, %v1313
        %v1334 = vsub.f32 %v1270, %v1316
        %v1335 = vsub.f32 %v1271, %v1319
        %v1336 = vmul.f32 %v1320, 1.442695
        %v1337 = vpow.pop %v1336
        %v1338 = vmul.f32 %v1321, 1.442695
        %v1339 = vpow.pop %v1338
        %v1340 = vmul.f32 %v1322, 1.442695
        %v1341 = vpow.pop %v1340
        %v1342 = vmul.f32 %v1323, 1.442695
        %v1343 = vpow.pop %v1342
        %v1344 = vmul.f32 %v1324, 1.442695
        %v1345 = vpow.pop %v1344
        %v1346 = vmul.f32 %v1325, 1.442695
        %v1347 = vpow.pop %v1346
        %v1348 = vmul.f32 %v1326, 1.442695
        %v1349 = vpow.pop %v1348
        %v1350 = vmul.f32 %v1327, 1.442695
        %v1351 = vpow.pop %v1350
        %v1352 = vmul.f32 %v1328, 1.442695
        %v1353 = vpow.pop %v1352
        %v1354 = vmul.f32 %v1329, 1.442695
        %v1355 = vpow.pop %v1354
        %v1356 = vmul.f32 %v1330, 1.442695
        %v1357 = vpow.pop %v1356
        %v1358 = vmul.f32 %v1331, 1.442695
        %v1359 = vpow.pop %v1358
        %v1360 = vmul.f32 %v1332, 1.442695
        %v1361 = vpow.pop %v1360
        %v1362 = vmul.f32 %v1333, 1.442695
        %v1363 = vpow.pop %v1362
        %v1364 = vmul.f32 %v1334, 1.442695
        %v1365 = vpow.pop %v1364
        %v1366 = vmul.f32 %v1335, 1.442695
        %v1367 = vpow.pop %v1366
        %v1368 = vsel %vm421, %v1337, 0.0
        %1369 = vadd.xlane.f32.xlu0 %v1368
        %v1370 = vpop.xlane.xlu0 %1369
        %v1371 = vsel %vm421, %v1339, 0.0
        %1372 = vadd.xlane.f32.xlu0 %v1371
        %v1373 = vpop.xlane.xlu0 %1372
        %v1374 = vsel %vm421, %v1341, 0.0
        %1375 = vadd.xlane.f32.xlu0 %v1374
        %v1376 = vpop.xlane.xlu0 %1375
        %v1377 = vsel %vm421, %v1343, 0.0
        %1378 = vadd.xlane.f32.xlu0 %v1377
        %v1379 = vpop.xlane.xlu0 %1378
        %v1380 = vsel %vm421, %v1345, 0.0
        %1381 = vadd.xlane.f32.xlu0 %v1380
        %v1382 = vpop.xlane.xlu0 %1381
        %v1383 = vsel %vm421, %v1347, 0.0
        %1384 = vadd.xlane.f32.xlu0 %v1383
        %v1385 = vpop.xlane.xlu0 %1384
        %v1386 = vsel %vm421, %v1349, 0.0
        %1387 = vadd.xlane.f32.xlu0 %v1386
        %v1388 = vpop.xlane.xlu0 %1387
        %v1389 = vsel %vm421, %v1351, 0.0
        %1390 = vadd.xlane.f32.xlu0 %v1389
        %v1391 = vpop.xlane.xlu0 %1390
        %v1392 = vsel %vm421, %v1353, 0.0
        %1393 = vadd.xlane.f32.xlu0 %v1392
        %v1394 = vpop.xlane.xlu0 %1393
        %v1395 = vsel %vm421, %v1355, 0.0
        %1396 = vadd.xlane.f32.xlu0 %v1395
        %v1397 = vpop.xlane.xlu0 %1396
        %v1398 = vsel %vm421, %v1357, 0.0
        %1399 = vadd.xlane.f32.xlu0 %v1398
        %v1400 = vpop.xlane.xlu0 %1399
        %v1401 = vsel %vm421, %v1359, 0.0
        %1402 = vadd.xlane.f32.xlu0 %v1401
        %v1403 = vpop.xlane.xlu0 %1402
        %v1404 = vsel %vm421, %v1361, 0.0
        %1405 = vadd.xlane.f32.xlu0 %v1404
        %v1406 = vpop.xlane.xlu0 %1405
        %v1407 = vsel %vm421, %v1363, 0.0
        %1408 = vadd.xlane.f32.xlu0 %v1407
        %v1409 = vpop.xlane.xlu0 %1408
        %v1410 = vsel %vm421, %v1365, 0.0
        %1411 = vadd.xlane.f32.xlu0 %v1410
        %v1412 = vpop.xlane.xlu0 %1411
        %v1413 = vsel %vm421, %v1367, 0.0
        %1414 = vadd.xlane.f32.xlu0 %v1413
        %v1415 = vpop.xlane.xlu0 %1414
        %v1416 = vrcp.pop %v1370
        %v1417 = vmul.f32 %v1370, %v1416
        %v1418 = vsub.f32 1.0, %v1417
        %v1419 = vmul.f32 %v1416, %v1418
        %v1420 = vadd.f32 %v1416, %v1419
        %vm1421 = vweird.f32 %v1370
        %vm1422 = vweird.f32 %v1416
        %vm1423 = vmor %vm1421, %vm1422
        %v1424 = vsel %vm1423, %v1416, %v1420
        %v1425 = vand.u32 2147483647, %v1370
        %vm1426 = vcmp.eq.f32.partialorder %v1425, 8.507059e+37
        %v1427 = vand.u32 %v1370, 2147483648
        %v1428 = vor.u32 1.1754944e-38, %v1427
        %v1429 = vsel %vm1426, %v1428, %v1424
        %v1430 = vmul.f32 %v1337, %v1429
        %v1431 = vrcp.pop %v1373
        %v1432 = vmul.f32 %v1373, %v1431
        %v1433 = vsub.f32 1.0, %v1432
        %v1434 = vmul.f32 %v1431, %v1433
        %v1435 = vadd.f32 %v1431, %v1434
        %vm1436 = vweird.f32 %v1373
        %vm1437 = vweird.f32 %v1431
        %vm1438 = vmor %vm1436, %vm1437
        %v1439 = vsel %vm1438, %v1431, %v1435
        %v1440 = vand.u32 2147483647, %v1373
        %vm1441 = vcmp.eq.f32.partialorder %v1440, 8.507059e+37
        %v1442 = vand.u32 %v1373, 2147483648
        %v1443 = vor.u32 1.1754944e-38, %v1442
        %v1444 = vsel %vm1441, %v1443, %v1439
        %v1445 = vmul.f32 %v1339, %v1444
        %v1446 = vrcp.pop %v1376
        %v1447 = vmul.f32 %v1376, %v1446
        %v1448 = vsub.f32 1.0, %v1447
        %v1449 = vmul.f32 %v1446, %v1448
        %v1450 = vadd.f32 %v1446, %v1449
        %vm1451 = vweird.f32 %v1376
        %vm1452 = vweird.f32 %v1446
        %vm1453 = vmor %vm1451, %vm1452
        %v1454 = vsel %vm1453, %v1446, %v1450
        %v1455 = vand.u32 2147483647, %v1376
        %vm1456 = vcmp.eq.f32.partialorder %v1455, 8.507059e+37
        %v1457 = vand.u32 %v1376, 2147483648
        %v1458 = vor.u32 1.1754944e-38, %v1457
        %v1459 = vsel %vm1456, %v1458, %v1454
        %v1460 = vmul.f32 %v1341, %v1459
        %v1461 = vrcp.pop %v1379
        %v1462 = vmul.f32 %v1379, %v1461
        %v1463 = vsub.f32 1.0, %v1462
        %v1464 = vmul.f32 %v1461, %v1463
        %v1465 = vadd.f32 %v1461, %v1464
        %vm1466 = vweird.f32 %v1379
        %vm1467 = vweird.f32 %v1461
        %vm1468 = vmor %vm1466, %vm1467
        %v1469 = vsel %vm1468, %v1461, %v1465
        %v1470 = vand.u32 2147483647, %v1379
        %vm1471 = vcmp.eq.f32.partialorder %v1470, 8.507059e+37
        %v1472 = vand.u32 %v1379, 2147483648
        %v1473 = vor.u32 1.1754944e-38, %v1472
        %v1474 = vsel %vm1471, %v1473, %v1469
        %v1475 = vmul.f32 %v1343, %v1474
        %v1476 = vrcp.pop %v1382
        %v1477 = vmul.f32 %v1382, %v1476
        %v1478 = vsub.f32 1.0, %v1477
        %v1479 = vmul.f32 %v1476, %v1478
        %v1480 = vadd.f32 %v1476, %v1479
        %vm1481 = vweird.f32 %v1382
        %vm1482 = vweird.f32 %v1476
        %vm1483 = vmor %vm1481, %vm1482
        %v1484 = vsel %vm1483, %v1476, %v1480
        %v1485 = vand.u32 2147483647, %v1382
        %vm1486 = vcmp.eq.f32.partialorder %v1485, 8.507059e+37
        %v1487 = vand.u32 %v1382, 2147483648
        %v1488 = vor.u32 1.1754944e-38, %v1487
        %v1489 = vsel %vm1486, %v1488, %v1484
        %v1490 = vmul.f32 %v1345, %v1489
        %v1491 = vrcp.pop %v1385
        %v1492 = vmul.f32 %v1385, %v1491
        %v1493 = vsub.f32 1.0, %v1492
        %v1494 = vmul.f32 %v1491, %v1493
        %v1495 = vadd.f32 %v1491, %v1494
        %vm1496 = vweird.f32 %v1385
        %vm1497 = vweird.f32 %v1491
        %vm1498 = vmor %vm1496, %vm1497
        %v1499 = vsel %vm1498, %v1491, %v1495
        %v1500 = vand.u32 2147483647, %v1385
        %vm1501 = vcmp.eq.f32.partialorder %v1500, 8.507059e+37
        %v1502 = vand.u32 %v1385, 2147483648
        %v1503 = vor.u32 1.1754944e-38, %v1502
        %v1504 = vsel %vm1501, %v1503, %v1499
        %v1505 = vmul.f32 %v1347, %v1504
        %v1506 = vrcp.pop %v1388
        %v1507 = vmul.f32 %v1388, %v1506
        %v1508 = vsub.f32 1.0, %v1507
        %v1509 = vmul.f32 %v1506, %v1508
        %v1510 = vadd.f32 %v1506, %v1509
        %vm1511 = vweird.f32 %v1388
        %vm1512 = vweird.f32 %v1506
        %vm1513 = vmor %vm1511, %vm1512
        %v1514 = vsel %vm1513, %v1506, %v1510
        %v1515 = vand.u32 2147483647, %v1388
        %vm1516 = vcmp.eq.f32.partialorder %v1515, 8.507059e+37
        %v1517 = vand.u32 %v1388, 2147483648
        %v1518 = vor.u32 1.1754944e-38, %v1517
        %v1519 = vsel %vm1516, %v1518, %v1514
        %v1520 = vmul.f32 %v1349, %v1519
        %v1521 = vrcp.pop %v1391
        %v1522 = vmul.f32 %v1391, %v1521
        %v1523 = vsub.f32 1.0, %v1522
        %v1524 = vmul.f32 %v1521, %v1523
        %v1525 = vadd.f32 %v1521, %v1524
        %vm1526 = vweird.f32 %v1391
        %vm1527 = vweird.f32 %v1521
        %vm1528 = vmor %vm1526, %vm1527
        %v1529 = vsel %vm1528, %v1521, %v1525
        %v1530 = vand.u32 2147483647, %v1391
        %vm1531 = vcmp.eq.f32.partialorder %v1530, 8.507059e+37
        %v1532 = vand.u32 %v1391, 2147483648
        %v1533 = vor.u32 1.1754944e-38, %v1532
        %v1534 = vsel %vm1531, %v1533, %v1529
        %v1535 = vmul.f32 %v1351, %v1534
        %v1536 = vrcp.pop %v1394
        %v1537 = vmul.f32 %v1394, %v1536
        %v1538 = vsub.f32 1.0, %v1537
        %v1539 = vmul.f32 %v1536, %v1538
        %v1540 = vadd.f32 %v1536, %v1539
        %vm1541 = vweird.f32 %v1394
        %vm1542 = vweird.f32 %v1536
        %vm1543 = vmor %vm1541, %vm1542
        %v1544 = vsel %vm1543, %v1536, %v1540
        %v1545 = vand.u32 2147483647, %v1394
        %vm1546 = vcmp.eq.f32.partialorder %v1545, 8.507059e+37
        %v1547 = vand.u32 %v1394, 2147483648
        %v1548 = vor.u32 1.1754944e-38, %v1547
        %v1549 = vsel %vm1546, %v1548, %v1544
        %v1550 = vmul.f32 %v1353, %v1549
        %v1551 = vrcp.pop %v1397
        %v1552 = vmul.f32 %v1397, %v1551
        %v1553 = vsub.f32 1.0, %v1552
        %v1554 = vmul.f32 %v1551, %v1553
        %v1555 = vadd.f32 %v1551, %v1554
        %vm1556 = vweird.f32 %v1397
        %vm1557 = vweird.f32 %v1551
        %vm1558 = vmor %vm1556, %vm1557
        %v1559 = vsel %vm1558, %v1551, %v1555
        %v1560 = vand.u32 2147483647, %v1397
        %vm1561 = vcmp.eq.f32.partialorder %v1560, 8.507059e+37
        %v1562 = vand.u32 %v1397, 2147483648
        %v1563 = vor.u32 1.1754944e-38, %v1562
        %v1564 = vsel %vm1561, %v1563, %v1559
        %v1565 = vmul.f32 %v1355, %v1564
        %v1566 = vrcp.pop %v1400
        %v1567 = vmul.f32 %v1400, %v1566
        %v1568 = vsub.f32 1.0, %v1567
        %v1569 = vmul.f32 %v1566, %v1568
        %v1570 = vadd.f32 %v1566, %v1569
        %vm1571 = vweird.f32 %v1400
        %vm1572 = vweird.f32 %v1566
        %vm1573 = vmor %vm1571, %vm1572
        %v1574 = vsel %vm1573, %v1566, %v1570
        %v1575 = vand.u32 2147483647, %v1400
        %vm1576 = vcmp.eq.f32.partialorder %v1575, 8.507059e+37
        %v1577 = vand.u32 %v1400, 2147483648
        %v1578 = vor.u32 1.1754944e-38, %v1577
        %v1579 = vsel %vm1576, %v1578, %v1574
        %v1580 = vmul.f32 %v1357, %v1579
        %v1581 = vrcp.pop %v1403
        %v1582 = vmul.f32 %v1403, %v1581
        %v1583 = vsub.f32 1.0, %v1582
        %v1584 = vmul.f32 %v1581, %v1583
        %v1585 = vadd.f32 %v1581, %v1584
        %vm1586 = vweird.f32 %v1403
        %vm1587 = vweird.f32 %v1581
        %vm1588 = vmor %vm1586, %vm1587
        %v1589 = vsel %vm1588, %v1581, %v1585
        %v1590 = vand.u32 2147483647, %v1403
        %vm1591 = vcmp.eq.f32.partialorder %v1590, 8.507059e+37
        %v1592 = vand.u32 %v1403, 2147483648
        %v1593 = vor.u32 1.1754944e-38, %v1592
        %v1594 = vsel %vm1591, %v1593, %v1589
        %v1595 = vmul.f32 %v1359, %v1594
        %v1596 = vrcp.pop %v1406
        %v1597 = vmul.f32 %v1406, %v1596
        %v1598 = vsub.f32 1.0, %v1597
        %v1599 = vmul.f32 %v1596, %v1598
        %v1600 = vadd.f32 %v1596, %v1599
        %vm1601 = vweird.f32 %v1406
        %vm1602 = vweird.f32 %v1596
        %vm1603 = vmor %vm1601, %vm1602
        %v1604 = vsel %vm1603, %v1596, %v1600
        %v1605 = vand.u32 2147483647, %v1406
        %vm1606 = vcmp.eq.f32.partialorder %v1605, 8.507059e+37
        %v1607 = vand.u32 %v1406, 2147483648
        %v1608 = vor.u32 1.1754944e-38, %v1607
        %v1609 = vsel %vm1606, %v1608, %v1604
        %v1610 = vmul.f32 %v1361, %v1609
        %v1611 = vrcp.pop %v1409
        %v1612 = vmul.f32 %v1409, %v1611
        %v1613 = vsub.f32 1.0, %v1612
        %v1614 = vmul.f32 %v1611, %v1613
        %v1615 = vadd.f32 %v1611, %v1614
        %vm1616 = vweird.f32 %v1409
        %vm1617 = vweird.f32 %v1611
        %vm1618 = vmor %vm1616, %vm1617
        %v1619 = vsel %vm1618, %v1611, %v1615
        %v1620 = vand.u32 2147483647, %v1409
        %vm1621 = vcmp.eq.f32.partialorder %v1620, 8.507059e+37
        %v1622 = vand.u32 %v1409, 2147483648
        %v1623 = vor.u32 1.1754944e-38, %v1622
        %v1624 = vsel %vm1621, %v1623, %v1619
        %v1625 = vmul.f32 %v1363, %v1624
        %v1626 = vrcp.pop %v1412
        %v1627 = vmul.f32 %v1412, %v1626
        %v1628 = vsub.f32 1.0, %v1627
        %v1629 = vmul.f32 %v1626, %v1628
        %v1630 = vadd.f32 %v1626, %v1629
        %vm1631 = vweird.f32 %v1412
        %vm1632 = vweird.f32 %v1626
        %vm1633 = vmor %vm1631, %vm1632
        %v1634 = vsel %vm1633, %v1626, %v1630
        %v1635 = vand.u32 2147483647, %v1412
        %vm1636 = vcmp.eq.f32.partialorder %v1635, 8.507059e+37
        %v1637 = vand.u32 %v1412, 2147483648
        %v1638 = vor.u32 1.1754944e-38, %v1637
        %v1639 = vsel %vm1636, %v1638, %v1634
        %v1640 = vmul.f32 %v1365, %v1639
        %v1641 = vrcp.pop %v1415
        %v1642 = vmul.f32 %v1415, %v1641
        %v1643 = vsub.f32 1.0, %v1642
        %v1644 = vmul.f32 %v1641, %v1643
        %v1645 = vadd.f32 %v1641, %v1644
        %vm1646 = vweird.f32 %v1415
        %vm1647 = vweird.f32 %v1641
        %vm1648 = vmor %vm1646, %vm1647
        %v1649 = vsel %vm1648, %v1641, %v1645
        %v1650 = vand.u32 2147483647, %v1415
        %vm1651 = vcmp.eq.f32.partialorder %v1650, 8.507059e+37
        %v1652 = vand.u32 %v1415, 2147483648
        %v1653 = vor.u32 1.1754944e-38, %v1652
        %v1654 = vsel %vm1651, %v1653, %v1649
        %v1655 = vmul.f32 %v1367, %v1654
        %v1657 = vsel %vm421, %v1430, 0
        %1659 = vmatpush.msra.mxu0 0.0
        %1660 = vmatpush.msra.mxu0 0.0
        %1661 = vmatpush.msra.mxu0 0.0
        %1662 = vmatpush.msra.mxu0 0.0
        %1663 = vmatpush.msra.mxu0 0.0
        %1664 = vmatpush.msra.mxu0 0.0
        %1665 = vmatpush.msra.mxu0 0.0
        %1666 = vmatpush.msra.mxu0 0.0
        %1667 = vmatpush.msra.mxu0 0.0
        %1668 = vmatpush.msra.mxu0 0.0
        %1669 = vmatpush.msra.mxu0 0.0
        %1670 = vmatpush.msra.mxu0 0.0
        %1671 = vmatpush.msra.mxu0 0.0
        %1672 = vmatpush.msra.mxu0 0.0
        %1673 = vmatpush.msra.mxu0 %v652
        %1674 = vmatpush.msra.mxu0 %v649
        %1675 = vmatmul.f32.gmra.mxu0 %v1657
        %v1676 = vpop.f32.mrf.mxu0
        %v1677 = vadd.f32 0.0, %v1676
        %1678 = vdwg.mxu0
        %v1680 = vsel %vm421, %v1445, 0
        %1682 = vmatpush.msra.mxu0 0.0
        %1683 = vmatpush.msra.mxu0 0.0
        %1684 = vmatpush.msra.mxu0 0.0
        %1685 = vmatpush.msra.mxu0 0.0
        %1686 = vmatpush.msra.mxu0 0.0
        %1687 = vmatpush.msra.mxu0 0.0
        %1688 = vmatpush.msra.mxu0 0.0
        %1689 = vmatpush.msra.mxu0 0.0
        %1690 = vmatpush.msra.mxu0 0.0
        %1691 = vmatpush.msra.mxu0 0.0
        %1692 = vmatpush.msra.mxu0 0.0
        %1693 = vmatpush.msra.mxu0 0.0
        %1694 = vmatpush.msra.mxu0 0.0
        %1695 = vmatpush.msra.mxu0 0.0
        %1696 = vmatpush.msra.mxu0 %v658
        %1697 = vmatpush.msra.mxu0 %v655
        %1698 = vmatmul.f32.gmra.mxu0 %v1680
        %v1699 = vpop.f32.mrf.mxu0
        %v1700 = vadd.f32 0.0, %v1699
        %1701 = vdwg.mxu0
        %v1703 = vsel %vm421, %v1460, 0
        %1705 = vmatpush.msra.mxu0 0.0
        %1706 = vmatpush.msra.mxu0 0.0
        %1707 = vmatpush.msra.mxu0 0.0
        %1708 = vmatpush.msra.mxu0 0.0
        %1709 = vmatpush.msra.mxu0 0.0
        %1710 = vmatpush.msra.mxu0 0.0
        %1711 = vmatpush.msra.mxu0 0.0
        %1712 = vmatpush.msra.mxu0 0.0
        %1713 = vmatpush.msra.mxu0 0.0
        %1714 = vmatpush.msra.mxu0 0.0
        %1715 = vmatpush.msra.mxu0 0.0
        %1716 = vmatpush.msra.mxu0 0.0
        %1717 = vmatpush.msra.mxu0 0.0
        %1718 = vmatpush.msra.mxu0 0.0
        %1719 = vmatpush.msra.mxu0 %v664
        %1720 = vmatpush.msra.mxu0 %v661
        %1721 = vmatmul.f32.gmra.mxu0 %v1703
        %v1722 = vpop.f32.mrf.mxu0
        %v1723 = vadd.f32 0.0, %v1722
        %1724 = vdwg.mxu0
        %v1726 = vsel %vm421, %v1475, 0
        %1728 = vmatpush.msra.mxu0 0.0
        %1729 = vmatpush.msra.mxu0 0.0
        %1730 = vmatpush.msra.mxu0 0.0
        %1731 = vmatpush.msra.mxu0 0.0
        %1732 = vmatpush.msra.mxu0 0.0
        %1733 = vmatpush.msra.mxu0 0.0
        %1734 = vmatpush.msra.mxu0 0.0
        %1735 = vmatpush.msra.mxu0 0.0
        %1736 = vmatpush.msra.mxu0 0.0
        %1737 = vmatpush.msra.mxu0 0.0
        %1738 = vmatpush.msra.mxu0 0.0
        %1739 = vmatpush.msra.mxu0 0.0
        %1740 = vmatpush.msra.mxu0 0.0
        %1741 = vmatpush.msra.mxu0 0.0
        %1742 = vmatpush.msra.mxu0 %v670
        %1743 = vmatpush.msra.mxu0 %v667
        %1744 = vmatmul.f32.gmra.mxu0 %v1726
        %v1745 = vpop.f32.mrf.mxu0
        %v1746 = vadd.f32 0.0, %v1745
        %1747 = vdwg.mxu0
        %v1749 = vsel %vm421, %v1490, 0
        %1751 = vmatpush.msra.mxu0 0.0
        %1752 = vmatpush.msra.mxu0 0.0
        %1753 = vmatpush.msra.mxu0 0.0
        %1754 = vmatpush.msra.mxu0 0.0
        %1755 = vmatpush.msra.mxu0 0.0
        %1756 = vmatpush.msra.mxu0 0.0
        %1757 = vmatpush.msra.mxu0 0.0
        %1758 = vmatpush.msra.mxu0 0.0
        %1759 = vmatpush.msra.mxu0 0.0
        %1760 = vmatpush.msra.mxu0 0.0
        %1761 = vmatpush.msra.mxu0 0.0
        %1762 = vmatpush.msra.mxu0 0.0
        %1763 = vmatpush.msra.mxu0 0.0
        %1764 = vmatpush.msra.mxu0 0.0
        %1765 = vmatpush.msra.mxu0 %v676
        %1766 = vmatpush.msra.mxu0 %v673
        %1767 = vmatmul.f32.gmra.mxu0 %v1749
        %v1768 = vpop.f32.mrf.mxu0
        %v1769 = vadd.f32 0.0, %v1768
        %1770 = vdwg.mxu0
        %v1772 = vsel %vm421, %v1505, 0
        %1774 = vmatpush.msra.mxu0 0.0
        %1775 = vmatpush.msra.mxu0 0.0
        %1776 = vmatpush.msra.mxu0 0.0
        %1777 = vmatpush.msra.mxu0 0.0
        %1778 = vmatpush.msra.mxu0 0.0
        %1779 = vmatpush.msra.mxu0 0.0
        %1780 = vmatpush.msra.mxu0 0.0
        %1781 = vmatpush.msra.mxu0 0.0
        %1782 = vmatpush.msra.mxu0 0.0
        %1783 = vmatpush.msra.mxu0 0.0
        %1784 = vmatpush.msra.mxu0 0.0
        %1785 = vmatpush.msra.mxu0 0.0
        %1786 = vmatpush.msra.mxu0 0.0
        %1787 = vmatpush.msra.mxu0 0.0
        %1788 = vmatpush.msra.mxu0 %v682
        %1789 = vmatpush.msra.mxu0 %v679
        %1790 = vmatmul.f32.gmra.mxu0 %v1772
        %v1791 = vpop.f32.mrf.mxu0
        %v1792 = vadd.f32 0.0, %v1791
        %1793 = vdwg.mxu0
        %v1795 = vsel %vm421, %v1520, 0
        %1797 = vmatpush.msra.mxu0 0.0
        %1798 = vmatpush.msra.mxu0 0.0
        %1799 = vmatpush.msra.mxu0 0.0
        %1800 = vmatpush.msra.mxu0 0.0
        %1801 = vmatpush.msra.mxu0 0.0
        %1802 = vmatpush.msra.mxu0 0.0
        %1803 = vmatpush.msra.mxu0 0.0
        %1804 = vmatpush.msra.mxu0 0.0
        %1805 = vmatpush.msra.mxu0 0.0
        %1806 = vmatpush.msra.mxu0 0.0
        %1807 = vmatpush.msra.mxu0 0.0
        %1808 = vmatpush.msra.mxu0 0.0
        %1809 = vmatpush.msra.mxu0 0.0
        %1810 = vmatpush.msra.mxu0 0.0
        %1811 = vmatpush.msra.mxu0 %v688
        %1812 = vmatpush.msra.mxu0 %v685
        %1813 = vmatmul.f32.gmra.mxu0 %v1795
        %v1814 = vpop.f32.mrf.mxu0
        %v1815 = vadd.f32 0.0, %v1814
        %1816 = vdwg.mxu0
        %v1818 = vsel %vm421, %v1535, 0
        %1820 = vmatpush.msra.mxu0 0.0
        %1821 = vmatpush.msra.mxu0 0.0
        %1822 = vmatpush.msra.mxu0 0.0
        %1823 = vmatpush.msra.mxu0 0.0
        %1824 = vmatpush.msra.mxu0 0.0
        %1825 = vmatpush.msra.mxu0 0.0
        %1826 = vmatpush.msra.mxu0 0.0
        %1827 = vmatpush.msra.mxu0 0.0
        %1828 = vmatpush.msra.mxu0 0.0
        %1829 = vmatpush.msra.mxu0 0.0
        %1830 = vmatpush.msra.mxu0 0.0
        %1831 = vmatpush.msra.mxu0 0.0
        %1832 = vmatpush.msra.mxu0 0.0
        %1833 = vmatpush.msra.mxu0 0.0
        %1834 = vmatpush.msra.mxu0 %v694
        %1835 = vmatpush.msra.mxu0 %v691
        %1836 = vmatmul.f32.gmra.mxu0 %v1818
        %v1837 = vpop.f32.mrf.mxu0
        %v1838 = vadd.f32 0.0, %v1837
        %1839 = vdwg.mxu0
        %v1841 = vsel %vm421, %v1550, 0
        %1843 = vmatpush.msra.mxu0 0.0
        %1844 = vmatpush.msra.mxu0 0.0
        %1845 = vmatpush.msra.mxu0 0.0
        %1846 = vmatpush.msra.mxu0 0.0
        %1847 = vmatpush.msra.mxu0 0.0
        %1848 = vmatpush.msra.mxu0 0.0
        %1849 = vmatpush.msra.mxu0 0.0
        %1850 = vmatpush.msra.mxu0 0.0
        %1851 = vmatpush.msra.mxu0 0.0
        %1852 = vmatpush.msra.mxu0 0.0
        %1853 = vmatpush.msra.mxu0 0.0
        %1854 = vmatpush.msra.mxu0 0.0
        %1855 = vmatpush.msra.mxu0 0.0
        %1856 = vmatpush.msra.mxu0 0.0
        %1857 = vmatpush.msra.mxu0 %v700
        %1858 = vmatpush.msra.mxu0 %v697
        %1859 = vmatmul.f32.gmra.mxu0 %v1841
        %v1860 = vpop.f32.mrf.mxu0
        %v1861 = vadd.f32 0.0, %v1860
        %1862 = vdwg.mxu0
        %v1864 = vsel %vm421, %v1565, 0
        %1866 = vmatpush.msra.mxu0 0.0
        %1867 = vmatpush.msra.mxu0 0.0
        %1868 = vmatpush.msra.mxu0 0.0
        %1869 = vmatpush.msra.mxu0 0.0
        %1870 = vmatpush.msra.mxu0 0.0
        %1871 = vmatpush.msra.mxu0 0.0
        %1872 = vmatpush.msra.mxu0 0.0
        %1873 = vmatpush.msra.mxu0 0.0
        %1874 = vmatpush.msra.mxu0 0.0
        %1875 = vmatpush.msra.mxu0 0.0
        %1876 = vmatpush.msra.mxu0 0.0
        %1877 = vmatpush.msra.mxu0 0.0
        %1878 = vmatpush.msra.mxu0 0.0
        %1879 = vmatpush.msra.mxu0 0.0
        %1880 = vmatpush.msra.mxu0 %v706
        %1881 = vmatpush.msra.mxu0 %v703
        %1882 = vmatmul.f32.gmra.mxu0 %v1864
        %v1883 = vpop.f32.mrf.mxu0
        %v1884 = vadd.f32 0.0, %v1883
        %1885 = vdwg.mxu0
        %v1887 = vsel %vm421, %v1580, 0
        %1889 = vmatpush.msra.mxu0 0.0
        %1890 = vmatpush.msra.mxu0 0.0
        %1891 = vmatpush.msra.mxu0 0.0
        %1892 = vmatpush.msra.mxu0 0.0
        %1893 = vmatpush.msra.mxu0 0.0
        %1894 = vmatpush.msra.mxu0 0.0
        %1895 = vmatpush.msra.mxu0 0.0
        %1896 = vmatpush.msra.mxu0 0.0
        %1897 = vmatpush.msra.mxu0 0.0
        %1898 = vmatpush.msra.mxu0 0.0
        %1899 = vmatpush.msra.mxu0 0.0
        %1900 = vmatpush.msra.mxu0 0.0
        %1901 = vmatpush.msra.mxu0 0.0
        %1902 = vmatpush.msra.mxu0 0.0
        %1903 = vmatpush.msra.mxu0 %v712
        %1904 = vmatpush.msra.mxu0 %v709
        %1905 = vmatmul.f32.gmra.mxu0 %v1887
        %v1906 = vpop.f32.mrf.mxu0
        %v1907 = vadd.f32 0.0, %v1906
        %1908 = vdwg.mxu0
        %v1910 = vsel %vm421, %v1595, 0
        %1912 = vmatpush.msra.mxu0 0.0
        %1913 = vmatpush.msra.mxu0 0.0
        %1914 = vmatpush.msra.mxu0 0.0
        %1915 = vmatpush.msra.mxu0 0.0
        %1916 = vmatpush.msra.mxu0 0.0
        %1917 = vmatpush.msra.mxu0 0.0
        %1918 = vmatpush.msra.mxu0 0.0
        %1919 = vmatpush.msra.mxu0 0.0
        %1920 = vmatpush.msra.mxu0 0.0
        %1921 = vmatpush.msra.mxu0 0.0
        %1922 = vmatpush.msra.mxu0 0.0
        %1923 = vmatpush.msra.mxu0 0.0
        %1924 = vmatpush.msra.mxu0 0.0
        %1925 = vmatpush.msra.mxu0 0.0
        %1926 = vmatpush.msra.mxu0 %v718
        %1927 = vmatpush.msra.mxu0 %v715
        %1928 = vmatmul.f32.gmra.mxu0 %v1910
        %v1929 = vpop.f32.mrf.mxu0
        %v1930 = vadd.f32 0.0, %v1929
        %1931 = vdwg.mxu0
        %v1933 = vsel %vm421, %v1610, 0
        %1935 = vmatpush.msra.mxu0 0.0
        %1936 = vmatpush.msra.mxu0 0.0
        %1937 = vmatpush.msra.mxu0 0.0
        %1938 = vmatpush.msra.mxu0 0.0
        %1939 = vmatpush.msra.mxu0 0.0
        %1940 = vmatpush.msra.mxu0 0.0
        %1941 = vmatpush.msra.mxu0 0.0
        %1942 = vmatpush.msra.mxu0 0.0
        %1943 = vmatpush.msra.mxu0 0.0
        %1944 = vmatpush.msra.mxu0 0.0
        %1945 = vmatpush.msra.mxu0 0.0
        %1946 = vmatpush.msra.mxu0 0.0
        %1947 = vmatpush.msra.mxu0 0.0
        %1948 = vmatpush.msra.mxu0 0.0
        %1949 = vmatpush.msra.mxu0 %v724
        %1950 = vmatpush.msra.mxu0 %v721
        %1951 = vmatmul.f32.gmra.mxu0 %v1933
        %v1952 = vpop.f32.mrf.mxu0
        %v1953 = vadd.f32 0.0, %v1952
        %1954 = vdwg.mxu0
        %v1956 = vsel %vm421, %v1625, 0
        %1958 = vmatpush.msra.mxu0 0.0
        %1959 = vmatpush.msra.mxu0 0.0
        %1960 = vmatpush.msra.mxu0 0.0
        %1961 = vmatpush.msra.mxu0 0.0
        %1962 = vmatpush.msra.mxu0 0.0
        %1963 = vmatpush.msra.mxu0 0.0
        %1964 = vmatpush.msra.mxu0 0.0
        %1965 = vmatpush.msra.mxu0 0.0
        %1966 = vmatpush.msra.mxu0 0.0
        %1967 = vmatpush.msra.mxu0 0.0
        %1968 = vmatpush.msra.mxu0 0.0
        %1969 = vmatpush.msra.mxu0 0.0
        %1970 = vmatpush.msra.mxu0 0.0
        %1971 = vmatpush.msra.mxu0 0.0
        %1972 = vmatpush.msra.mxu0 %v730
        %1973 = vmatpush.msra.mxu0 %v727
        %1974 = vmatmul.f32.gmra.mxu0 %v1956
        %v1975 = vpop.f32.mrf.mxu0
        %v1976 = vadd.f32 0.0, %v1975
        %1977 = vdwg.mxu0
        %v1979 = vsel %vm421, %v1640, 0
        %1981 = vmatpush.msra.mxu0 0.0
        %1982 = vmatpush.msra.mxu0 0.0
        %1983 = vmatpush.msra.mxu0 0.0
        %1984 = vmatpush.msra.mxu0 0.0
        %1985 = vmatpush.msra.mxu0 0.0
        %1986 = vmatpush.msra.mxu0 0.0
        %1987 = vmatpush.msra.mxu0 0.0
        %1988 = vmatpush.msra.mxu0 0.0
        %1989 = vmatpush.msra.mxu0 0.0
        %1990 = vmatpush.msra.mxu0 0.0
        %1991 = vmatpush.msra.mxu0 0.0
        %1992 = vmatpush.msra.mxu0 0.0
        %1993 = vmatpush.msra.mxu0 0.0
        %1994 = vmatpush.msra.mxu0 0.0
        %1995 = vmatpush.msra.mxu0 %v736
        %1996 = vmatpush.msra.mxu0 %v733
        %1997 = vmatmul.f32.gmra.mxu0 %v1979
        %v1998 = vpop.f32.mrf.mxu0
        %v1999 = vadd.f32 0.0, %v1998
        %2000 = vdwg.mxu0
        %v2002 = vsel %vm421, %v1655, 0
        %2004 = vmatpush.msra.mxu0 0.0
        %2005 = vmatpush.msra.mxu0 0.0
        %2006 = vmatpush.msra.mxu0 0.0
        %2007 = vmatpush.msra.mxu0 0.0
        %2008 = vmatpush.msra.mxu0 0.0
        %2009 = vmatpush.msra.mxu0 0.0
        %2010 = vmatpush.msra.mxu0 0.0
        %2011 = vmatpush.msra.mxu0 0.0
        %2012 = vmatpush.msra.mxu0 0.0
        %2013 = vmatpush.msra.mxu0 0.0
        %2014 = vmatpush.msra.mxu0 0.0
        %2015 = vmatpush.msra.mxu0 0.0
        %2016 = vmatpush.msra.mxu0 0.0
        %2017 = vmatpush.msra.mxu0 0.0
        %2018 = vmatpush.msra.mxu0 %v742
        %2019 = vmatpush.msra.mxu0 %v739
        %2020 = vmatmul.f32.gmra.mxu0 %v2002
        %v2021 = vpop.f32.mrf.mxu0
        %v2022 = vadd.f32 0.0, %v2021
        %2023 = vdwg.mxu0
        %2024 = vrot.lane.b32.xlu0 %v374, 112
        %v2025 = vpop.permute.xlu0 %2024
        %2026 = vrot.lane.b32.xlu0 %v536, 112
        %v2027 = vpop.permute.xlu0 %2026
        %2028 = vrot.lane.b32.xlu0 %v539, 112
        %v2029 = vpop.permute.xlu0 %2028
        %v2030 = vsel %vm421, %v2025, 0
        %v2032 = vsel %vm421, %v2027, 0
        %v2034 = vsel %vm421, %v2029, 0
        %2036 = vmatpush.xpose.msra.mxu0 0.0
        %2037 = vmatpush.xpose.msra.mxu0 0.0
        %2038 = vmatpush.xpose.msra.mxu0 0.0
        %2039 = vmatpush.xpose.msra.mxu0 0.0
        %2040 = vmatpush.xpose.msra.mxu0 0.0
        %2041 = vmatpush.xpose.msra.mxu0 0.0
        %2042 = vmatpush.xpose.msra.mxu0 0.0
        %2043 = vmatpush.xpose.msra.mxu0 0.0
        %2044 = vmatpush.xpose.msra.mxu0 0.0
        %2045 = vmatpush.xpose.msra.mxu0 0.0
        %2046 = vmatpush.xpose.msra.mxu0 0.0
        %2047 = vmatpush.xpose.msra.mxu0 0.0
        %2048 = vmatpush.xpose.msra.mxu0 0.0
        %2049 = vmatpush.xpose.msra.mxu0 0.0
        %2050 = vmatpush.xpose.msra.mxu0 %v2034
        %2051 = vmatpush.xpose.msra.mxu0 %v2032
        %2052 = vmatmul.f32.gmra.mxu0 %v2030
        %v2053 = vpop.f32.mrf.mxu0
        %v2054 = vadd.f32 0.0, %v2053
        %2055 = vdwg.mxu0
        %2056 = vrot.lane.b32.xlu0 %v377, 112
        %v2057 = vpop.permute.xlu0 %2056
        %2058 = vrot.lane.b32.xlu0 %v542, 112
        %v2059 = vpop.permute.xlu0 %2058
        %2060 = vrot.lane.b32.xlu0 %v545, 112
        %v2061 = vpop.permute.xlu0 %2060
        %v2062 = vsel %vm421, %v2057, 0
        %v2064 = vsel %vm421, %v2059, 0
        %v2066 = vsel %vm421, %v2061, 0
        %2068 = vmatpush.xpose.msra.mxu0 0.0
        %2069 = vmatpush.xpose.msra.mxu0 0.0
        %2070 = vmatpush.xpose.msra.mxu0 0.0
        %2071 = vmatpush.xpose.msra.mxu0 0.0
        %2072 = vmatpush.xpose.msra.mxu0 0.0
        %2073 = vmatpush.xpose.msra.mxu0 0.0
        %2074 = vmatpush.xpose.msra.mxu0 0.0
        %2075 = vmatpush.xpose.msra.mxu0 0.0
        %2076 = vmatpush.xpose.msra.mxu0 0.0
        %2077 = vmatpush.xpose.msra.mxu0 0.0
        %2078 = vmatpush.xpose.msra.mxu0 0.0
        %2079 = vmatpush.xpose.msra.mxu0 0.0
        %2080 = vmatpush.xpose.msra.mxu0 0.0
        %2081 = vmatpush.xpose.msra.mxu0 0.0
        %2082 = vmatpush.xpose.msra.mxu0 %v2066
        %2083 = vmatpush.xpose.msra.mxu0 %v2064
        %2084 = vmatmul.f32.gmra.mxu0 %v2062
        %v2085 = vpop.f32.mrf.mxu0
        %v2086 = vadd.f32 0.0, %v2085
        %2087 = vdwg.mxu0
        %2088 = vrot.lane.b32.xlu0 %v380, 112
        %v2089 = vpop.permute.xlu0 %2088
        %2090 = vrot.lane.b32.xlu0 %v548, 112
        %v2091 = vpop.permute.xlu0 %2090
        %2092 = vrot.lane.b32.xlu0 %v551, 112
        %v2093 = vpop.permute.xlu0 %2092
        %v2094 = vsel %vm421, %v2089, 0
        %v2096 = vsel %vm421, %v2091, 0
        %v2098 = vsel %vm421, %v2093, 0
        %2100 = vmatpush.xpose.msra.mxu0 0.0
        %2101 = vmatpush.xpose.msra.mxu0 0.0
        %2102 = vmatpush.xpose.msra.mxu0 0.0
        %2103 = vmatpush.xpose.msra.mxu0 0.0
        %2104 = vmatpush.xpose.msra.mxu0 0.0
        %2105 = vmatpush.xpose.msra.mxu0 0.0
        %2106 = vmatpush.xpose.msra.mxu0 0.0
        %2107 = vmatpush.xpose.msra.mxu0 0.0
        %2108 = vmatpush.xpose.msra.mxu0 0.0
        %2109 = vmatpush.xpose.msra.mxu0 0.0
        %2110 = vmatpush.xpose.msra.mxu0 0.0
        %2111 = vmatpush.xpose.msra.mxu0 0.0
        %2112 = vmatpush.xpose.msra.mxu0 0.0
        %2113 = vmatpush.xpose.msra.mxu0 0.0
        %2114 = vmatpush.xpose.msra.mxu0 %v2098
        %2115 = vmatpush.xpose.msra.mxu0 %v2096
        %2116 = vmatmul.f32.gmra.mxu0 %v2094
        %v2117 = vpop.f32.mrf.mxu0
        %v2118 = vadd.f32 0.0, %v2117
        %2119 = vdwg.mxu0
        %2120 = vrot.lane.b32.xlu0 %v383, 112
        %v2121 = vpop.permute.xlu0 %2120
        %2122 = vrot.lane.b32.xlu0 %v554, 112
        %v2123 = vpop.permute.xlu0 %2122
        %2124 = vrot.lane.b32.xlu0 %v557, 112
        %v2125 = vpop.permute.xlu0 %2124
        %v2126 = vsel %vm421, %v2121, 0
        %v2128 = vsel %vm421, %v2123, 0
        %v2130 = vsel %vm421, %v2125, 0
        %2132 = vmatpush.xpose.msra.mxu0 0.0
        %2133 = vmatpush.xpose.msra.mxu0 0.0
        %2134 = vmatpush.xpose.msra.mxu0 0.0
        %2135 = vmatpush.xpose.msra.mxu0 0.0
        %2136 = vmatpush.xpose.msra.mxu0 0.0
        %2137 = vmatpush.xpose.msra.mxu0 0.0
        %2138 = vmatpush.xpose.msra.mxu0 0.0
        %2139 = vmatpush.xpose.msra.mxu0 0.0
        %2140 = vmatpush.xpose.msra.mxu0 0.0
        %2141 = vmatpush.xpose.msra.mxu0 0.0
        %2142 = vmatpush.xpose.msra.mxu0 0.0
        %2143 = vmatpush.xpose.msra.mxu0 0.0
        %2144 = vmatpush.xpose.msra.mxu0 0.0
        %2145 = vmatpush.xpose.msra.mxu0 0.0
        %2146 = vmatpush.xpose.msra.mxu0 %v2130
        %2147 = vmatpush.xpose.msra.mxu0 %v2128
        %2148 = vmatmul.f32.gmra.mxu0 %v2126
        %v2149 = vpop.f32.mrf.mxu0
        %v2150 = vadd.f32 0.0, %v2149
        %2151 = vdwg.mxu0
        %2152 = vrot.lane.b32.xlu0 %v386, 112
        %v2153 = vpop.permute.xlu0 %2152
        %2154 = vrot.lane.b32.xlu0 %v560, 112
        %v2155 = vpop.permute.xlu0 %2154
        %2156 = vrot.lane.b32.xlu0 %v563, 112
        %v2157 = vpop.permute.xlu0 %2156
        %v2158 = vsel %vm421, %v2153, 0
        %v2160 = vsel %vm421, %v2155, 0
        %v2162 = vsel %vm421, %v2157, 0
        %2164 = vmatpush.xpose.msra.mxu0 0.0
        %2165 = vmatpush.xpose.msra.mxu0 0.0
        %2166 = vmatpush.xpose.msra.mxu0 0.0
        %2167 = vmatpush.xpose.msra.mxu0 0.0
        %2168 = vmatpush.xpose.msra.mxu0 0.0
        %2169 = vmatpush.xpose.msra.mxu0 0.0
        %2170 = vmatpush.xpose.msra.mxu0 0.0
        %2171 = vmatpush.xpose.msra.mxu0 0.0
        %2172 = vmatpush.xpose.msra.mxu0 0.0
        %2173 = vmatpush.xpose.msra.mxu0 0.0
        %2174 = vmatpush.xpose.msra.mxu0 0.0
        %2175 = vmatpush.xpose.msra.mxu0 0.0
        %2176 = vmatpush.xpose.msra.mxu0 0.0
        %2177 = vmatpush.xpose.msra.mxu0 0.0
        %2178 = vmatpush.xpose.msra.mxu0 %v2162
        %2179 = vmatpush.xpose.msra.mxu0 %v2160
        %2180 = vmatmul.f32.gmra.mxu0 %v2158
        %v2181 = vpop.f32.mrf.mxu0
        %v2182 = vadd.f32 0.0, %v2181
        %2183 = vdwg.mxu0
        %2184 = vrot.lane.b32.xlu0 %v389, 112
        %v2185 = vpop.permute.xlu0 %2184
        %2186 = vrot.lane.b32.xlu0 %v566, 112
        %v2187 = vpop.permute.xlu0 %2186
        %2188 = vrot.lane.b32.xlu0 %v569, 112
        %v2189 = vpop.permute.xlu0 %2188
        %v2190 = vsel %vm421, %v2185, 0
        %v2192 = vsel %vm421, %v2187, 0
        %v2194 = vsel %vm421, %v2189, 0
        %2196 = vmatpush.xpose.msra.mxu0 0.0
        %2197 = vmatpush.xpose.msra.mxu0 0.0
        %2198 = vmatpush.xpose.msra.mxu0 0.0
        %2199 = vmatpush.xpose.msra.mxu0 0.0
        %2200 = vmatpush.xpose.msra.mxu0 0.0
        %2201 = vmatpush.xpose.msra.mxu0 0.0
        %2202 = vmatpush.xpose.msra.mxu0 0.0
        %2203 = vmatpush.xpose.msra.mxu0 0.0
        %2204 = vmatpush.xpose.msra.mxu0 0.0
        %2205 = vmatpush.xpose.msra.mxu0 0.0
        %2206 = vmatpush.xpose.msra.mxu0 0.0
        %2207 = vmatpush.xpose.msra.mxu0 0.0
        %2208 = vmatpush.xpose.msra.mxu0 0.0
        %2209 = vmatpush.xpose.msra.mxu0 0.0
        %2210 = vmatpush.xpose.msra.mxu0 %v2194
        %2211 = vmatpush.xpose.msra.mxu0 %v2192
        %2212 = vmatmul.f32.gmra.mxu0 %v2190
        %v2213 = vpop.f32.mrf.mxu0
        %v2214 = vadd.f32 0.0, %v2213
        %2215 = vdwg.mxu0
        %2216 = vrot.lane.b32.xlu0 %v392, 112
        %v2217 = vpop.permute.xlu0 %2216
        %2218 = vrot.lane.b32.xlu0 %v572, 112
        %v2219 = vpop.permute.xlu0 %2218
        %2220 = vrot.lane.b32.xlu0 %v575, 112
        %v2221 = vpop.permute.xlu0 %2220
        %v2222 = vsel %vm421, %v2217, 0
        %v2224 = vsel %vm421, %v2219, 0
        %v2226 = vsel %vm421, %v2221, 0
        %2228 = vmatpush.xpose.msra.mxu0 0.0
        %2229 = vmatpush.xpose.msra.mxu0 0.0
        %2230 = vmatpush.xpose.msra.mxu0 0.0
        %2231 = vmatpush.xpose.msra.mxu0 0.0
        %2232 = vmatpush.xpose.msra.mxu0 0.0
        %2233 = vmatpush.xpose.msra.mxu0 0.0
        %2234 = vmatpush.xpose.msra.mxu0 0.0
        %2235 = vmatpush.xpose.msra.mxu0 0.0
        %2236 = vmatpush.xpose.msra.mxu0 0.0
        %2237 = vmatpush.xpose.msra.mxu0 0.0
        %2238 = vmatpush.xpose.msra.mxu0 0.0
        %2239 = vmatpush.xpose.msra.mxu0 0.0
        %2240 = vmatpush.xpose.msra.mxu0 0.0
        %2241 = vmatpush.xpose.msra.mxu0 0.0
        %2242 = vmatpush.xpose.msra.mxu0 %v2226
        %2243 = vmatpush.xpose.msra.mxu0 %v2224
        %2244 = vmatmul.f32.gmra.mxu0 %v2222
        %v2245 = vpop.f32.mrf.mxu0
        %v2246 = vadd.f32 0.0, %v2245
        %2247 = vdwg.mxu0
        %2248 = vrot.lane.b32.xlu0 %v395, 112
        %v2249 = vpop.permute.xlu0 %2248
        %2250 = vrot.lane.b32.xlu0 %v578, 112
        %v2251 = vpop.permute.xlu0 %2250
        %2252 = vrot.lane.b32.xlu0 %v581, 112
        %v2253 = vpop.permute.xlu0 %2252
        %v2254 = vsel %vm421, %v2249, 0
        %v2256 = vsel %vm421, %v2251, 0
        %v2258 = vsel %vm421, %v2253, 0
        %2260 = vmatpush.xpose.msra.mxu0 0.0
        %2261 = vmatpush.xpose.msra.mxu0 0.0
        %2262 = vmatpush.xpose.msra.mxu0 0.0
        %2263 = vmatpush.xpose.msra.mxu0 0.0
        %2264 = vmatpush.xpose.msra.mxu0 0.0
        %2265 = vmatpush.xpose.msra.mxu0 0.0
        %2266 = vmatpush.xpose.msra.mxu0 0.0
        %2267 = vmatpush.xpose.msra.mxu0 0.0
        %2268 = vmatpush.xpose.msra.mxu0 0.0
        %2269 = vmatpush.xpose.msra.mxu0 0.0
        %2270 = vmatpush.xpose.msra.mxu0 0.0
        %2271 = vmatpush.xpose.msra.mxu0 0.0
        %2272 = vmatpush.xpose.msra.mxu0 0.0
        %2273 = vmatpush.xpose.msra.mxu0 0.0
        %2274 = vmatpush.xpose.msra.mxu0 %v2258
        %2275 = vmatpush.xpose.msra.mxu0 %v2256
        %2276 = vmatmul.f32.gmra.mxu0 %v2254
        %v2277 = vpop.f32.mrf.mxu0
        %v2278 = vadd.f32 0.0, %v2277
        %2279 = vdwg.mxu0
        %2280 = vrot.lane.b32.xlu0 %v398, 112
        %v2281 = vpop.permute.xlu0 %2280
        %2282 = vrot.lane.b32.xlu0 %v584, 112
        %v2283 = vpop.permute.xlu0 %2282
        %2284 = vrot.lane.b32.xlu0 %v587, 112
        %v2285 = vpop.permute.xlu0 %2284
        %v2286 = vsel %vm421, %v2281, 0
        %v2288 = vsel %vm421, %v2283, 0
        %v2290 = vsel %vm421, %v2285, 0
        %2292 = vmatpush.xpose.msra.mxu0 0.0
        %2293 = vmatpush.xpose.msra.mxu0 0.0
        %2294 = vmatpush.xpose.msra.mxu0 0.0
        %2295 = vmatpush.xpose.msra.mxu0 0.0
        %2296 = vmatpush.xpose.msra.mxu0 0.0
        %2297 = vmatpush.xpose.msra.mxu0 0.0
        %2298 = vmatpush.xpose.msra.mxu0 0.0
        %2299 = vmatpush.xpose.msra.mxu0 0.0
        %2300 = vmatpush.xpose.msra.mxu0 0.0
        %2301 = vmatpush.xpose.msra.mxu0 0.0
        %2302 = vmatpush.xpose.msra.mxu0 0.0
        %2303 = vmatpush.xpose.msra.mxu0 0.0
        %2304 = vmatpush.xpose.msra.mxu0 0.0
        %2305 = vmatpush.xpose.msra.mxu0 0.0
        %2306 = vmatpush.xpose.msra.mxu0 %v2290
        %2307 = vmatpush.xpose.msra.mxu0 %v2288
        %2308 = vmatmul.f32.gmra.mxu0 %v2286
        %v2309 = vpop.f32.mrf.mxu0
        %v2310 = vadd.f32 0.0, %v2309
        %2311 = vdwg.mxu0
        %2312 = vrot.lane.b32.xlu0 %v401, 112
        %v2313 = vpop.permute.xlu0 %2312
        %2314 = vrot.lane.b32.xlu0 %v590, 112
        %v2315 = vpop.permute.xlu0 %2314
        %2316 = vrot.lane.b32.xlu0 %v593, 112
        %v2317 = vpop.permute.xlu0 %2316
        %v2318 = vsel %vm421, %v2313, 0
        %v2320 = vsel %vm421, %v2315, 0
        %v2322 = vsel %vm421, %v2317, 0
        %2324 = vmatpush.xpose.msra.mxu0 0.0
        %2325 = vmatpush.xpose.msra.mxu0 0.0
        %2326 = vmatpush.xpose.msra.mxu0 0.0
        %2327 = vmatpush.xpose.msra.mxu0 0.0
        %2328 = vmatpush.xpose.msra.mxu0 0.0
        %2329 = vmatpush.xpose.msra.mxu0 0.0
        %2330 = vmatpush.xpose.msra.mxu0 0.0
        %2331 = vmatpush.xpose.msra.mxu0 0.0
        %2332 = vmatpush.xpose.msra.mxu0 0.0
        %2333 = vmatpush.xpose.msra.mxu0 0.0
        %2334 = vmatpush.xpose.msra.mxu0 0.0
        %2335 = vmatpush.xpose.msra.mxu0 0.0
        %2336 = vmatpush.xpose.msra.mxu0 0.0
        %2337 = vmatpush.xpose.msra.mxu0 0.0
        %2338 = vmatpush.xpose.msra.mxu0 %v2322
        %2339 = vmatpush.xpose.msra.mxu0 %v2320
        %2340 = vmatmul.f32.gmra.mxu0 %v2318
        %v2341 = vpop.f32.mrf.mxu0
        %v2342 = vadd.f32 0.0, %v2341
        %2343 = vdwg.mxu0
        %2344 = vrot.lane.b32.xlu0 %v404, 112
        %v2345 = vpop.permute.xlu0 %2344
        %2346 = vrot.lane.b32.xlu0 %v596, 112
        %v2347 = vpop.permute.xlu0 %2346
        %2348 = vrot.lane.b32.xlu0 %v599, 112
        %v2349 = vpop.permute.xlu0 %2348
        %v2350 = vsel %vm421, %v2345, 0
        %v2352 = vsel %vm421, %v2347, 0
        %v2354 = vsel %vm421, %v2349, 0
        %2356 = vmatpush.xpose.msra.mxu0 0.0
        %2357 = vmatpush.xpose.msra.mxu0 0.0
        %2358 = vmatpush.xpose.msra.mxu0 0.0
        %2359 = vmatpush.xpose.msra.mxu0 0.0
        %2360 = vmatpush.xpose.msra.mxu0 0.0
        %2361 = vmatpush.xpose.msra.mxu0 0.0
        %2362 = vmatpush.xpose.msra.mxu0 0.0
        %2363 = vmatpush.xpose.msra.mxu0 0.0
        %2364 = vmatpush.xpose.msra.mxu0 0.0
        %2365 = vmatpush.xpose.msra.mxu0 0.0
        %2366 = vmatpush.xpose.msra.mxu0 0.0
        %2367 = vmatpush.xpose.msra.mxu0 0.0
        %2368 = vmatpush.xpose.msra.mxu0 0.0
        %2369 = vmatpush.xpose.msra.mxu0 0.0
        %2370 = vmatpush.xpose.msra.mxu0 %v2354
        %2371 = vmatpush.xpose.msra.mxu0 %v2352
        %2372 = vmatmul.f32.gmra.mxu0 %v2350
        %v2373 = vpop.f32.mrf.mxu0
        %v2374 = vadd.f32 0.0, %v2373
        %2375 = vdwg.mxu0
        %2376 = vrot.lane.b32.xlu0 %v407, 112
        %v2377 = vpop.permute.xlu0 %2376
        %2378 = vrot.lane.b32.xlu0 %v602, 112
        %v2379 = vpop.permute.xlu0 %2378
        %2380 = vrot.lane.b32.xlu0 %v605, 112
        %v2381 = vpop.permute.xlu0 %2380
        %v2382 = vsel %vm421, %v2377, 0
        %v2384 = vsel %vm421, %v2379, 0
        %v2386 = vsel %vm421, %v2381, 0
        %2388 = vmatpush.xpose.msra.mxu0 0.0
        %2389 = vmatpush.xpose.msra.mxu0 0.0
        %2390 = vmatpush.xpose.msra.mxu0 0.0
        %2391 = vmatpush.xpose.msra.mxu0 0.0
        %2392 = vmatpush.xpose.msra.mxu0 0.0
        %2393 = vmatpush.xpose.msra.mxu0 0.0
        %2394 = vmatpush.xpose.msra.mxu0 0.0
        %2395 = vmatpush.xpose.msra.mxu0 0.0
        %2396 = vmatpush.xpose.msra.mxu0 0.0
        %2397 = vmatpush.xpose.msra.mxu0 0.0
        %2398 = vmatpush.xpose.msra.mxu0 0.0
        %2399 = vmatpush.xpose.msra.mxu0 0.0
        %2400 = vmatpush.xpose.msra.mxu0 0.0
        %2401 = vmatpush.xpose.msra.mxu0 0.0
        %2402 = vmatpush.xpose.msra.mxu0 %v2386
        %2403 = vmatpush.xpose.msra.mxu0 %v2384
        %2404 = vmatmul.f32.gmra.mxu0 %v2382
        %v2405 = vpop.f32.mrf.mxu0
        %v2406 = vadd.f32 0.0, %v2405
        %2407 = vdwg.mxu0
        %2408 = vrot.lane.b32.xlu0 %v410, 112
        %v2409 = vpop.permute.xlu0 %2408
        %2410 = vrot.lane.b32.xlu0 %v608, 112
        %v2411 = vpop.permute.xlu0 %2410
        %2412 = vrot.lane.b32.xlu0 %v611, 112
        %v2413 = vpop.permute.xlu0 %2412
        %v2414 = vsel %vm421, %v2409, 0
        %v2416 = vsel %vm421, %v2411, 0
        %v2418 = vsel %vm421, %v2413, 0
        %2420 = vmatpush.xpose.msra.mxu0 0.0
        %2421 = vmatpush.xpose.msra.mxu0 0.0
        %2422 = vmatpush.xpose.msra.mxu0 0.0
        %2423 = vmatpush.xpose.msra.mxu0 0.0
        %2424 = vmatpush.xpose.msra.mxu0 0.0
        %2425 = vmatpush.xpose.msra.mxu0 0.0
        %2426 = vmatpush.xpose.msra.mxu0 0.0
        %2427 = vmatpush.xpose.msra.mxu0 0.0
        %2428 = vmatpush.xpose.msra.mxu0 0.0
        %2429 = vmatpush.xpose.msra.mxu0 0.0
        %2430 = vmatpush.xpose.msra.mxu0 0.0
        %2431 = vmatpush.xpose.msra.mxu0 0.0
        %2432 = vmatpush.xpose.msra.mxu0 0.0
        %2433 = vmatpush.xpose.msra.mxu0 0.0
        %2434 = vmatpush.xpose.msra.mxu0 %v2418
        %2435 = vmatpush.xpose.msra.mxu0 %v2416
        %2436 = vmatmul.f32.gmra.mxu0 %v2414
        %v2437 = vpop.f32.mrf.mxu0
        %v2438 = vadd.f32 0.0, %v2437
        %2439 = vdwg.mxu0
        %2440 = vrot.lane.b32.xlu0 %v413, 112
        %v2441 = vpop.permute.xlu0 %2440
        %2442 = vrot.lane.b32.xlu0 %v614, 112
        %v2443 = vpop.permute.xlu0 %2442
        %2444 = vrot.lane.b32.xlu0 %v617, 112
        %v2445 = vpop.permute.xlu0 %2444
        %v2446 = vsel %vm421, %v2441, 0
        %v2448 = vsel %vm421, %v2443, 0
        %v2450 = vsel %vm421, %v2445, 0
        %2452 = vmatpush.xpose.msra.mxu0 0.0
        %2453 = vmatpush.xpose.msra.mxu0 0.0
        %2454 = vmatpush.xpose.msra.mxu0 0.0
        %2455 = vmatpush.xpose.msra.mxu0 0.0
        %2456 = vmatpush.xpose.msra.mxu0 0.0
        %2457 = vmatpush.xpose.msra.mxu0 0.0
        %2458 = vmatpush.xpose.msra.mxu0 0.0
        %2459 = vmatpush.xpose.msra.mxu0 0.0
        %2460 = vmatpush.xpose.msra.mxu0 0.0
        %2461 = vmatpush.xpose.msra.mxu0 0.0
        %2462 = vmatpush.xpose.msra.mxu0 0.0
        %2463 = vmatpush.xpose.msra.mxu0 0.0
        %2464 = vmatpush.xpose.msra.mxu0 0.0
        %2465 = vmatpush.xpose.msra.mxu0 0.0
        %2466 = vmatpush.xpose.msra.mxu0 %v2450
        %2467 = vmatpush.xpose.msra.mxu0 %v2448
        %2468 = vmatmul.f32.gmra.mxu0 %v2446
        %v2469 = vpop.f32.mrf.mxu0
        %v2470 = vadd.f32 0.0, %v2469
        %2471 = vdwg.mxu0
        %2472 = vrot.lane.b32.xlu0 %v416, 112
        %v2473 = vpop.permute.xlu0 %2472
        %2474 = vrot.lane.b32.xlu0 %v620, 112
        %v2475 = vpop.permute.xlu0 %2474
        %2476 = vrot.lane.b32.xlu0 %v623, 112
        %v2477 = vpop.permute.xlu0 %2476
        %v2478 = vsel %vm421, %v2473, 0
        %v2480 = vsel %vm421, %v2475, 0
        %v2482 = vsel %vm421, %v2477, 0
        %2484 = vmatpush.xpose.msra.mxu0 0.0
        %2485 = vmatpush.xpose.msra.mxu0 0.0
        %2486 = vmatpush.xpose.msra.mxu0 0.0
        %2487 = vmatpush.xpose.msra.mxu0 0.0
        %2488 = vmatpush.xpose.msra.mxu0 0.0
        %2489 = vmatpush.xpose.msra.mxu0 0.0
        %2490 = vmatpush.xpose.msra.mxu0 0.0
        %2491 = vmatpush.xpose.msra.mxu0 0.0
        %2492 = vmatpush.xpose.msra.mxu0 0.0
        %2493 = vmatpush.xpose.msra.mxu0 0.0
        %2494 = vmatpush.xpose.msra.mxu0 0.0
        %2495 = vmatpush.xpose.msra.mxu0 0.0
        %2496 = vmatpush.xpose.msra.mxu0 0.0
        %2497 = vmatpush.xpose.msra.mxu0 0.0
        %2498 = vmatpush.xpose.msra.mxu0 %v2482
        %2499 = vmatpush.xpose.msra.mxu0 %v2480
        %2500 = vmatmul.f32.gmra.mxu0 %v2478
        %v2501 = vpop.f32.mrf.mxu0
        %v2502 = vadd.f32 0.0, %v2501
        %2503 = vdwg.mxu0
        %2504 = vrot.lane.b32.xlu0 %v419, 112
        %v2505 = vpop.permute.xlu0 %2504
        %2506 = vrot.lane.b32.xlu0 %v626, 112
        %v2507 = vpop.permute.xlu0 %2506
        %2508 = vrot.lane.b32.xlu0 %v629, 112
        %v2509 = vpop.permute.xlu0 %2508
        %v2510 = vsel %vm421, %v2505, 0
        %v2512 = vsel %vm421, %v2507, 0
        %v2514 = vsel %vm421, %v2509, 0
        %2516 = vmatpush.xpose.msra.mxu0 0.0
        %2517 = vmatpush.xpose.msra.mxu0 0.0
        %2518 = vmatpush.xpose.msra.mxu0 0.0
        %2519 = vmatpush.xpose.msra.mxu0 0.0
        %2520 = vmatpush.xpose.msra.mxu0 0.0
        %2521 = vmatpush.xpose.msra.mxu0 0.0
        %2522 = vmatpush.xpose.msra.mxu0 0.0
        %2523 = vmatpush.xpose.msra.mxu0 0.0
        %2524 = vmatpush.xpose.msra.mxu0 0.0
        %2525 = vmatpush.xpose.msra.mxu0 0.0
        %2526 = vmatpush.xpose.msra.mxu0 0.0
        %2527 = vmatpush.xpose.msra.mxu0 0.0
        %2528 = vmatpush.xpose.msra.mxu0 0.0
        %2529 = vmatpush.xpose.msra.mxu0 0.0
        %2530 = vmatpush.xpose.msra.mxu0 %v2514
        %2531 = vmatpush.xpose.msra.mxu0 %v2512
        %2532 = vmatmul.f32.gmra.mxu0 %v2510
        %v2533 = vpop.f32.mrf.mxu0
        %v2534 = vadd.f32 0.0, %v2533
        %2535 = vdwg.mxu0
        %v2536 = vmul.f32 %v2054, 0.25
        %v2537 = vmul.f32 %v2086, 0.25
        %v2538 = vmul.f32 %v2118, 0.25
        %v2539 = vmul.f32 %v2150, 0.25
        %v2540 = vmul.f32 %v2182, 0.25
        %v2541 = vmul.f32 %v2214, 0.25
        %v2542 = vmul.f32 %v2246, 0.25
        %v2543 = vmul.f32 %v2278, 0.25
        %v2544 = vmul.f32 %v2310, 0.25
        %v2545 = vmul.f32 %v2342, 0.25
        %v2546 = vmul.f32 %v2374, 0.25
        %v2547 = vmul.f32 %v2406, 0.25
        %v2548 = vmul.f32 %v2438, 0.25
        %v2549 = vmul.f32 %v2470, 0.25
        %v2550 = vmul.f32 %v2502, 0.25
        %v2551 = vmul.f32 %v2534, 0.25
        %v2552 = vsel %vm1240, %v2536, -1e+09
        %v2553 = vsel %vm1241, %v2537, -1e+09
        %v2554 = vsel %vm1242, %v2538, -1e+09
        %v2555 = vsel %vm1243, %v2539, -1e+09
        %v2556 = vsel %vm1244, %v2540, -1e+09
        %v2557 = vsel %vm1245, %v2541, -1e+09
        %v2558 = vsel %vm1246, %v2542, -1e+09
        %v2559 = vsel %vm1247, %v2543, -1e+09
        %v2560 = vsel %vm1248, %v2544, -1e+09
        %v2561 = vsel %vm1249, %v2545, -1e+09
        %v2562 = vsel %vm1250, %v2546, -1e+09
        %v2563 = vsel %vm1251, %v2547, -1e+09
        %v2564 = vsel %vm1252, %v2548, -1e+09
        %v2565 = vsel %vm1253, %v2549, -1e+09
        %v2566 = vsel %vm1254, %v2550, -1e+09
        %v2567 = vsel %vm1255, %v2551, -1e+09
        %v2568 = vsel %vm421, %v2552, -inf
        %2569 = vmax.xlane.f32.xlu0 %v2568
        %v2570 = vpop.xlane.xlu0 %2569
        %v2571 = vsel %vm421, %v2553, -inf
        %2572 = vmax.xlane.f32.xlu0 %v2571
        %v2573 = vpop.xlane.xlu0 %2572
        %v2574 = vsel %vm421, %v2554, -inf
        %2575 = vmax.xlane.f32.xlu0 %v2574
        %v2576 = vpop.xlane.xlu0 %2575
        %v2577 = vsel %vm421, %v2555, -inf
        %2578 = vmax.xlane.f32.xlu0 %v2577
        %v2579 = vpop.xlane.xlu0 %2578
        %v2580 = vsel %vm421, %v2556, -inf
        %2581 = vmax.xlane.f32.xlu0 %v2580
        %v2582 = vpop.xlane.xlu0 %2581
        %v2583 = vsel %vm421, %v2557, -inf
        %2584 = vmax.xlane.f32.xlu0 %v2583
        %v2585 = vpop.xlane.xlu0 %2584
        %v2586 = vsel %vm421, %v2558, -inf
        %2587 = vmax.xlane.f32.xlu0 %v2586
        %v2588 = vpop.xlane.xlu0 %2587
        %v2589 = vsel %vm421, %v2559, -inf
        %2590 = vmax.xlane.f32.xlu0 %v2589
        %v2591 = vpop.xlane.xlu0 %2590
        %v2592 = vsel %vm421, %v2560, -inf
        %2593 = vmax.xlane.f32.xlu0 %v2592
        %v2594 = vpop.xlane.xlu0 %2593
        %v2595 = vsel %vm421, %v2561, -inf
        %2596 = vmax.xlane.f32.xlu0 %v2595
        %v2597 = vpop.xlane.xlu0 %2596
        %v2598 = vsel %vm421, %v2562, -inf
        %2599 = vmax.xlane.f32.xlu0 %v2598
        %v2600 = vpop.xlane.xlu0 %2599
        %v2601 = vsel %vm421, %v2563, -inf
        %2602 = vmax.xlane.f32.xlu0 %v2601
        %v2603 = vpop.xlane.xlu0 %2602
        %v2604 = vsel %vm421, %v2564, -inf
        %2605 = vmax.xlane.f32.xlu0 %v2604
        %v2606 = vpop.xlane.xlu0 %2605
        %v2607 = vsel %vm421, %v2565, -inf
        %2608 = vmax.xlane.f32.xlu0 %v2607
        %v2609 = vpop.xlane.xlu0 %2608
        %v2610 = vsel %vm421, %v2566, -inf
        %2611 = vmax.xlane.f32.xlu0 %v2610
        %v2612 = vpop.xlane.xlu0 %2611
        %v2613 = vsel %vm421, %v2567, -inf
        %2614 = vmax.xlane.f32.xlu0 %v2613
        %v2615 = vpop.xlane.xlu0 %2614
        %v2616 = vsub.f32 %v2552, %v2570
        %v2617 = vsub.f32 %v2553, %v2573
        %v2618 = vsub.f32 %v2554, %v2576
        %v2619 = vsub.f32 %v2555, %v2579
        %v2620 = vsub.f32 %v2556, %v2582
        %v2621 = vsub.f32 %v2557, %v2585
        %v2622 = vsub.f32 %v2558, %v2588
        %v2623 = vsub.f32 %v2559, %v2591
        %v2624 = vsub.f32 %v2560, %v2594
        %v2625 = vsub.f32 %v2561, %v2597
        %v2626 = vsub.f32 %v2562, %v2600
        %v2627 = vsub.f32 %v2563, %v2603
        %v2628 = vsub.f32 %v2564, %v2606
        %v2629 = vsub.f32 %v2565, %v2609
        %v2630 = vsub.f32 %v2566, %v2612
        %v2631 = vsub.f32 %v2567, %v2615
        %v2632 = vmul.f32 %v2616, 1.442695
        %v2633 = vpow.pop %v2632
        %v2634 = vmul.f32 %v2617, 1.442695
        %v2635 = vpow.pop %v2634
        %v2636 = vmul.f32 %v2618, 1.442695
        %v2637 = vpow.pop %v2636
        %v2638 = vmul.f32 %v2619, 1.442695
        %v2639 = vpow.pop %v2638
        %v2640 = vmul.f32 %v2620, 1.442695
        %v2641 = vpow.pop %v2640
        %v2642 = vmul.f32 %v2621, 1.442695
        %v2643 = vpow.pop %v2642
        %v2644 = vmul.f32 %v2622, 1.442695
        %v2645 = vpow.pop %v2644
        %v2646 = vmul.f32 %v2623, 1.442695
        %v2647 = vpow.pop %v2646
        %v2648 = vmul.f32 %v2624, 1.442695
        %v2649 = vpow.pop %v2648
        %v2650 = vmul.f32 %v2625, 1.442695
        %v2651 = vpow.pop %v2650
        %v2652 = vmul.f32 %v2626, 1.442695
        %v2653 = vpow.pop %v2652
        %v2654 = vmul.f32 %v2627, 1.442695
        %v2655 = vpow.pop %v2654
        %v2656 = vmul.f32 %v2628, 1.442695
        %v2657 = vpow.pop %v2656
        %v2658 = vmul.f32 %v2629, 1.442695
        %v2659 = vpow.pop %v2658
        %v2660 = vmul.f32 %v2630, 1.442695
        %v2661 = vpow.pop %v2660
        %v2662 = vmul.f32 %v2631, 1.442695
        %v2663 = vpow.pop %v2662
        %v2664 = vsel %vm421, %v2633, 0.0
        %2665 = vadd.xlane.f32.xlu0 %v2664
        %v2666 = vpop.xlane.xlu0 %2665
        %v2667 = vsel %vm421, %v2635, 0.0
        %2668 = vadd.xlane.f32.xlu0 %v2667
        %v2669 = vpop.xlane.xlu0 %2668
        %v2670 = vsel %vm421, %v2637, 0.0
        %2671 = vadd.xlane.f32.xlu0 %v2670
        %v2672 = vpop.xlane.xlu0 %2671
        %v2673 = vsel %vm421, %v2639, 0.0
        %2674 = vadd.xlane.f32.xlu0 %v2673
        %v2675 = vpop.xlane.xlu0 %2674
        %v2676 = vsel %vm421, %v2641, 0.0
        %2677 = vadd.xlane.f32.xlu0 %v2676
        %v2678 = vpop.xlane.xlu0 %2677
        %v2679 = vsel %vm421, %v2643, 0.0
        %2680 = vadd.xlane.f32.xlu0 %v2679
        %v2681 = vpop.xlane.xlu0 %2680
        %v2682 = vsel %vm421, %v2645, 0.0
        %2683 = vadd.xlane.f32.xlu0 %v2682
        %v2684 = vpop.xlane.xlu0 %2683
        %v2685 = vsel %vm421, %v2647, 0.0
        %2686 = vadd.xlane.f32.xlu0 %v2685
        %v2687 = vpop.xlane.xlu0 %2686
        %v2688 = vsel %vm421, %v2649, 0.0
        %2689 = vadd.xlane.f32.xlu0 %v2688
        %v2690 = vpop.xlane.xlu0 %2689
        %v2691 = vsel %vm421, %v2651, 0.0
        %2692 = vadd.xlane.f32.xlu0 %v2691
        %v2693 = vpop.xlane.xlu0 %2692
        %v2694 = vsel %vm421, %v2653, 0.0
        %2695 = vadd.xlane.f32.xlu0 %v2694
        %v2696 = vpop.xlane.xlu0 %2695
        %v2697 = vsel %vm421, %v2655, 0.0
        %2698 = vadd.xlane.f32.xlu0 %v2697
        %v2699 = vpop.xlane.xlu0 %2698
        %v2700 = vsel %vm421, %v2657, 0.0
        %2701 = vadd.xlane.f32.xlu0 %v2700
        %v2702 = vpop.xlane.xlu0 %2701
        %v2703 = vsel %vm421, %v2659, 0.0
        %2704 = vadd.xlane.f32.xlu0 %v2703
        %v2705 = vpop.xlane.xlu0 %2704
        %v2706 = vsel %vm421, %v2661, 0.0
        %2707 = vadd.xlane.f32.xlu0 %v2706
        %v2708 = vpop.xlane.xlu0 %2707
        %v2709 = vsel %vm421, %v2663, 0.0
        %2710 = vadd.xlane.f32.xlu0 %v2709
        %v2711 = vpop.xlane.xlu0 %2710
        %v2712 = vrcp.pop %v2666
        %v2713 = vmul.f32 %v2666, %v2712
        %v2714 = vsub.f32 1.0, %v2713
        %v2715 = vmul.f32 %v2712, %v2714
        %v2716 = vadd.f32 %v2712, %v2715
        %vm2717 = vweird.f32 %v2666
        %vm2718 = vweird.f32 %v2712
        %vm2719 = vmor %vm2717, %vm2718
        %v2720 = vsel %vm2719, %v2712, %v2716
        %v2721 = vand.u32 2147483647, %v2666
        %vm2722 = vcmp.eq.f32.partialorder %v2721, 8.507059e+37
        %v2723 = vand.u32 %v2666, 2147483648
        %v2724 = vor.u32 1.1754944e-38, %v2723
        %v2725 = vsel %vm2722, %v2724, %v2720
        %v2726 = vmul.f32 %v2633, %v2725
        %v2727 = vrcp.pop %v2669
        %v2728 = vmul.f32 %v2669, %v2727
        %v2729 = vsub.f32 1.0, %v2728
        %v2730 = vmul.f32 %v2727, %v2729
        %v2731 = vadd.f32 %v2727, %v2730
        %vm2732 = vweird.f32 %v2669
        %vm2733 = vweird.f32 %v2727
        %vm2734 = vmor %vm2732, %vm2733
        %v2735 = vsel %vm2734, %v2727, %v2731
        %v2736 = vand.u32 2147483647, %v2669
        %vm2737 = vcmp.eq.f32.partialorder %v2736, 8.507059e+37
        %v2738 = vand.u32 %v2669, 2147483648
        %v2739 = vor.u32 1.1754944e-38, %v2738
        %v2740 = vsel %vm2737, %v2739, %v2735
        %v2741 = vmul.f32 %v2635, %v2740
        %v2742 = vrcp.pop %v2672
        %v2743 = vmul.f32 %v2672, %v2742
        %v2744 = vsub.f32 1.0, %v2743
        %v2745 = vmul.f32 %v2742, %v2744
        %v2746 = vadd.f32 %v2742, %v2745
        %vm2747 = vweird.f32 %v2672
        %vm2748 = vweird.f32 %v2742
        %vm2749 = vmor %vm2747, %vm2748
        %v2750 = vsel %vm2749, %v2742, %v2746
        %v2751 = vand.u32 2147483647, %v2672
        %vm2752 = vcmp.eq.f32.partialorder %v2751, 8.507059e+37
        %v2753 = vand.u32 %v2672, 2147483648
        %v2754 = vor.u32 1.1754944e-38, %v2753
        %v2755 = vsel %vm2752, %v2754, %v2750
        %v2756 = vmul.f32 %v2637, %v2755
        %v2757 = vrcp.pop %v2675
        %v2758 = vmul.f32 %v2675, %v2757
        %v2759 = vsub.f32 1.0, %v2758
        %v2760 = vmul.f32 %v2757, %v2759
        %v2761 = vadd.f32 %v2757, %v2760
        %vm2762 = vweird.f32 %v2675
        %vm2763 = vweird.f32 %v2757
        %vm2764 = vmor %vm2762, %vm2763
        %v2765 = vsel %vm2764, %v2757, %v2761
        %v2766 = vand.u32 2147483647, %v2675
        %vm2767 = vcmp.eq.f32.partialorder %v2766, 8.507059e+37
        %v2768 = vand.u32 %v2675, 2147483648
        %v2769 = vor.u32 1.1754944e-38, %v2768
        %v2770 = vsel %vm2767, %v2769, %v2765
        %v2771 = vmul.f32 %v2639, %v2770
        %v2772 = vrcp.pop %v2678
        %v2773 = vmul.f32 %v2678, %v2772
        %v2774 = vsub.f32 1.0, %v2773
        %v2775 = vmul.f32 %v2772, %v2774
        %v2776 = vadd.f32 %v2772, %v2775
        %vm2777 = vweird.f32 %v2678
        %vm2778 = vweird.f32 %v2772
        %vm2779 = vmor %vm2777, %vm2778
        %v2780 = vsel %vm2779, %v2772, %v2776
        %v2781 = vand.u32 2147483647, %v2678
        %vm2782 = vcmp.eq.f32.partialorder %v2781, 8.507059e+37
        %v2783 = vand.u32 %v2678, 2147483648
        %v2784 = vor.u32 1.1754944e-38, %v2783
        %v2785 = vsel %vm2782, %v2784, %v2780
        %v2786 = vmul.f32 %v2641, %v2785
        %v2787 = vrcp.pop %v2681
        %v2788 = vmul.f32 %v2681, %v2787
        %v2789 = vsub.f32 1.0, %v2788
        %v2790 = vmul.f32 %v2787, %v2789
        %v2791 = vadd.f32 %v2787, %v2790
        %vm2792 = vweird.f32 %v2681
        %vm2793 = vweird.f32 %v2787
        %vm2794 = vmor %vm2792, %vm2793
        %v2795 = vsel %vm2794, %v2787, %v2791
        %v2796 = vand.u32 2147483647, %v2681
        %vm2797 = vcmp.eq.f32.partialorder %v2796, 8.507059e+37
        %v2798 = vand.u32 %v2681, 2147483648
        %v2799 = vor.u32 1.1754944e-38, %v2798
        %v2800 = vsel %vm2797, %v2799, %v2795
        %v2801 = vmul.f32 %v2643, %v2800
        %v2802 = vrcp.pop %v2684
        %v2803 = vmul.f32 %v2684, %v2802
        %v2804 = vsub.f32 1.0, %v2803
        %v2805 = vmul.f32 %v2802, %v2804
        %v2806 = vadd.f32 %v2802, %v2805
        %vm2807 = vweird.f32 %v2684
        %vm2808 = vweird.f32 %v2802
        %vm2809 = vmor %vm2807, %vm2808
        %v2810 = vsel %vm2809, %v2802, %v2806
        %v2811 = vand.u32 2147483647, %v2684
        %vm2812 = vcmp.eq.f32.partialorder %v2811, 8.507059e+37
        %v2813 = vand.u32 %v2684, 2147483648
        %v2814 = vor.u32 1.1754944e-38, %v2813
        %v2815 = vsel %vm2812, %v2814, %v2810
        %v2816 = vmul.f32 %v2645, %v2815
        %v2817 = vrcp.pop %v2687
        %v2818 = vmul.f32 %v2687, %v2817
        %v2819 = vsub.f32 1.0, %v2818
        %v2820 = vmul.f32 %v2817, %v2819
        %v2821 = vadd.f32 %v2817, %v2820
        %vm2822 = vweird.f32 %v2687
        %vm2823 = vweird.f32 %v2817
        %vm2824 = vmor %vm2822, %vm2823
        %v2825 = vsel %vm2824, %v2817, %v2821
        %v2826 = vand.u32 2147483647, %v2687
        %vm2827 = vcmp.eq.f32.partialorder %v2826, 8.507059e+37
        %v2828 = vand.u32 %v2687, 2147483648
        %v2829 = vor.u32 1.1754944e-38, %v2828
        %v2830 = vsel %vm2827, %v2829, %v2825
        %v2831 = vmul.f32 %v2647, %v2830
        %v2832 = vrcp.pop %v2690
        %v2833 = vmul.f32 %v2690, %v2832
        %v2834 = vsub.f32 1.0, %v2833
        %v2835 = vmul.f32 %v2832, %v2834
        %v2836 = vadd.f32 %v2832, %v2835
        %vm2837 = vweird.f32 %v2690
        %vm2838 = vweird.f32 %v2832
        %vm2839 = vmor %vm2837, %vm2838
        %v2840 = vsel %vm2839, %v2832, %v2836
        %v2841 = vand.u32 2147483647, %v2690
        %vm2842 = vcmp.eq.f32.partialorder %v2841, 8.507059e+37
        %v2843 = vand.u32 %v2690, 2147483648
        %v2844 = vor.u32 1.1754944e-38, %v2843
        %v2845 = vsel %vm2842, %v2844, %v2840
        %v2846 = vmul.f32 %v2649, %v2845
        %v2847 = vrcp.pop %v2693
        %v2848 = vmul.f32 %v2693, %v2847
        %v2849 = vsub.f32 1.0, %v2848
        %v2850 = vmul.f32 %v2847, %v2849
        %v2851 = vadd.f32 %v2847, %v2850
        %vm2852 = vweird.f32 %v2693
        %vm2853 = vweird.f32 %v2847
        %vm2854 = vmor %vm2852, %vm2853
        %v2855 = vsel %vm2854, %v2847, %v2851
        %v2856 = vand.u32 2147483647, %v2693
        %vm2857 = vcmp.eq.f32.partialorder %v2856, 8.507059e+37
        %v2858 = vand.u32 %v2693, 2147483648
        %v2859 = vor.u32 1.1754944e-38, %v2858
        %v2860 = vsel %vm2857, %v2859, %v2855
        %v2861 = vmul.f32 %v2651, %v2860
        %v2862 = vrcp.pop %v2696
        %v2863 = vmul.f32 %v2696, %v2862
        %v2864 = vsub.f32 1.0, %v2863
        %v2865 = vmul.f32 %v2862, %v2864
        %v2866 = vadd.f32 %v2862, %v2865
        %vm2867 = vweird.f32 %v2696
        %vm2868 = vweird.f32 %v2862
        %vm2869 = vmor %vm2867, %vm2868
        %v2870 = vsel %vm2869, %v2862, %v2866
        %v2871 = vand.u32 2147483647, %v2696
        %vm2872 = vcmp.eq.f32.partialorder %v2871, 8.507059e+37
        %v2873 = vand.u32 %v2696, 2147483648
        %v2874 = vor.u32 1.1754944e-38, %v2873
        %v2875 = vsel %vm2872, %v2874, %v2870
        %v2876 = vmul.f32 %v2653, %v2875
        %v2877 = vrcp.pop %v2699
        %v2878 = vmul.f32 %v2699, %v2877
        %v2879 = vsub.f32 1.0, %v2878
        %v2880 = vmul.f32 %v2877, %v2879
        %v2881 = vadd.f32 %v2877, %v2880
        %vm2882 = vweird.f32 %v2699
        %vm2883 = vweird.f32 %v2877
        %vm2884 = vmor %vm2882, %vm2883
        %v2885 = vsel %vm2884, %v2877, %v2881
        %v2886 = vand.u32 2147483647, %v2699
        %vm2887 = vcmp.eq.f32.partialorder %v2886, 8.507059e+37
        %v2888 = vand.u32 %v2699, 2147483648
        %v2889 = vor.u32 1.1754944e-38, %v2888
        %v2890 = vsel %vm2887, %v2889, %v2885
        %v2891 = vmul.f32 %v2655, %v2890
        %v2892 = vrcp.pop %v2702
        %v2893 = vmul.f32 %v2702, %v2892
        %v2894 = vsub.f32 1.0, %v2893
        %v2895 = vmul.f32 %v2892, %v2894
        %v2896 = vadd.f32 %v2892, %v2895
        %vm2897 = vweird.f32 %v2702
        %vm2898 = vweird.f32 %v2892
        %vm2899 = vmor %vm2897, %vm2898
        %v2900 = vsel %vm2899, %v2892, %v2896
        %v2901 = vand.u32 2147483647, %v2702
        %vm2902 = vcmp.eq.f32.partialorder %v2901, 8.507059e+37
        %v2903 = vand.u32 %v2702, 2147483648
        %v2904 = vor.u32 1.1754944e-38, %v2903
        %v2905 = vsel %vm2902, %v2904, %v2900
        %v2906 = vmul.f32 %v2657, %v2905
        %v2907 = vrcp.pop %v2705
        %v2908 = vmul.f32 %v2705, %v2907
        %v2909 = vsub.f32 1.0, %v2908
        %v2910 = vmul.f32 %v2907, %v2909
        %v2911 = vadd.f32 %v2907, %v2910
        %vm2912 = vweird.f32 %v2705
        %vm2913 = vweird.f32 %v2907
        %vm2914 = vmor %vm2912, %vm2913
        %v2915 = vsel %vm2914, %v2907, %v2911
        %v2916 = vand.u32 2147483647, %v2705
        %vm2917 = vcmp.eq.f32.partialorder %v2916, 8.507059e+37
        %v2918 = vand.u32 %v2705, 2147483648
        %v2919 = vor.u32 1.1754944e-38, %v2918
        %v2920 = vsel %vm2917, %v2919, %v2915
        %v2921 = vmul.f32 %v2659, %v2920
        %v2922 = vrcp.pop %v2708
        %v2923 = vmul.f32 %v2708, %v2922
        %v2924 = vsub.f32 1.0, %v2923
        %v2925 = vmul.f32 %v2922, %v2924
        %v2926 = vadd.f32 %v2922, %v2925
        %vm2927 = vweird.f32 %v2708
        %vm2928 = vweird.f32 %v2922
        %vm2929 = vmor %vm2927, %vm2928
        %v2930 = vsel %vm2929, %v2922, %v2926
        %v2931 = vand.u32 2147483647, %v2708
        %vm2932 = vcmp.eq.f32.partialorder %v2931, 8.507059e+37
        %v2933 = vand.u32 %v2708, 2147483648
        %v2934 = vor.u32 1.1754944e-38, %v2933
        %v2935 = vsel %vm2932, %v2934, %v2930
        %v2936 = vmul.f32 %v2661, %v2935
        %v2937 = vrcp.pop %v2711
        %v2938 = vmul.f32 %v2711, %v2937
        %v2939 = vsub.f32 1.0, %v2938
        %v2940 = vmul.f32 %v2937, %v2939
        %v2941 = vadd.f32 %v2937, %v2940
        %vm2942 = vweird.f32 %v2711
        %vm2943 = vweird.f32 %v2937
        %vm2944 = vmor %vm2942, %vm2943
        %v2945 = vsel %vm2944, %v2937, %v2941
        %v2946 = vand.u32 2147483647, %v2711
        %vm2947 = vcmp.eq.f32.partialorder %v2946, 8.507059e+37
        %v2948 = vand.u32 %v2711, 2147483648
        %v2949 = vor.u32 1.1754944e-38, %v2948
        %v2950 = vsel %vm2947, %v2949, %v2945
        %v2951 = vmul.f32 %v2663, %v2950
        %2954 = vrot.lane.b32.xlu0 %v649, 112
        %v2955 = vpop.permute.xlu0 %2954
        %2956 = vrot.lane.b32.xlu0 %v652, 112
        %v2957 = vpop.permute.xlu0 %2956
        %v2961 = vsel %vm421, %v2726, 0
        %2963 = vmatpush.msra.mxu0 0.0
        %2964 = vmatpush.msra.mxu0 0.0
        %2965 = vmatpush.msra.mxu0 0.0
        %2966 = vmatpush.msra.mxu0 0.0
        %2967 = vmatpush.msra.mxu0 0.0
        %2968 = vmatpush.msra.mxu0 0.0
        %2969 = vmatpush.msra.mxu0 0.0
        %2970 = vmatpush.msra.mxu0 0.0
        %2971 = vmatpush.msra.mxu0 0.0
        %2972 = vmatpush.msra.mxu0 0.0
        %2973 = vmatpush.msra.mxu0 0.0
        %2974 = vmatpush.msra.mxu0 0.0
        %2975 = vmatpush.msra.mxu0 0.0
        %2976 = vmatpush.msra.mxu0 0.0
        %2977 = vmatpush.msra.mxu0 %v2957
        %2978 = vmatpush.msra.mxu0 %v2955
        %2979 = vmatmul.f32.gmra.mxu0 %v2961
        %v2980 = vpop.f32.mrf.mxu0
        %v2981 = vadd.f32 0.0, %v2980
        %2982 = vdwg.mxu0
        %2985 = vrot.lane.b32.xlu0 %v655, 112
        %v2986 = vpop.permute.xlu0 %2985
        %2987 = vrot.lane.b32.xlu0 %v658, 112
        %v2988 = vpop.permute.xlu0 %2987
        %v2992 = vsel %vm421, %v2741, 0
        %2994 = vmatpush.msra.mxu0 0.0
        %2995 = vmatpush.msra.mxu0 0.0
        %2996 = vmatpush.msra.mxu0 0.0
        %2997 = vmatpush.msra.mxu0 0.0
        %2998 = vmatpush.msra.mxu0 0.0
        %2999 = vmatpush.msra.mxu0 0.0
        %3000 = vmatpush.msra.mxu0 0.0
        %3001 = vmatpush.msra.mxu0 0.0
        %3002 = vmatpush.msra.mxu0 0.0
        %3003 = vmatpush.msra.mxu0 0.0
        %3004 = vmatpush.msra.mxu0 0.0
        %3005 = vmatpush.msra.mxu0 0.0
        %3006 = vmatpush.msra.mxu0 0.0
        %3007 = vmatpush.msra.mxu0 0.0
        %3008 = vmatpush.msra.mxu0 %v2988
        %3009 = vmatpush.msra.mxu0 %v2986
        %3010 = vmatmul.f32.gmra.mxu0 %v2992
        %v3011 = vpop.f32.mrf.mxu0
        %v3012 = vadd.f32 0.0, %v3011
        %3013 = vdwg.mxu0
        %3016 = vrot.lane.b32.xlu0 %v661, 112
        %v3017 = vpop.permute.xlu0 %3016
        %3018 = vrot.lane.b32.xlu0 %v664, 112
        %v3019 = vpop.permute.xlu0 %3018
        %v3023 = vsel %vm421, %v2756, 0
        %3025 = vmatpush.msra.mxu0 0.0
        %3026 = vmatpush.msra.mxu0 0.0
        %3027 = vmatpush.msra.mxu0 0.0
        %3028 = vmatpush.msra.mxu0 0.0
        %3029 = vmatpush.msra.mxu0 0.0
        %3030 = vmatpush.msra.mxu0 0.0
        %3031 = vmatpush.msra.mxu0 0.0
        %3032 = vmatpush.msra.mxu0 0.0
        %3033 = vmatpush.msra.mxu0 0.0
        %3034 = vmatpush.msra.mxu0 0.0
        %3035 = vmatpush.msra.mxu0 0.0
        %3036 = vmatpush.msra.mxu0 0.0
        %3037 = vmatpush.msra.mxu0 0.0
        %3038 = vmatpush.msra.mxu0 0.0
        %3039 = vmatpush.msra.mxu0 %v3019
        %3040 = vmatpush.msra.mxu0 %v3017
        %3041 = vmatmul.f32.gmra.mxu0 %v3023
        %v3042 = vpop.f32.mrf.mxu0
        %v3043 = vadd.f32 0.0, %v3042
        %3044 = vdwg.mxu0
        %3047 = vrot.lane.b32.xlu0 %v667, 112
        %v3048 = vpop.permute.xlu0 %3047
        %3049 = vrot.lane.b32.xlu0 %v670, 112
        %v3050 = vpop.permute.xlu0 %3049
        %v3054 = vsel %vm421, %v2771, 0
        %3056 = vmatpush.msra.mxu0 0.0
        %3057 = vmatpush.msra.mxu0 0.0
        %3058 = vmatpush.msra.mxu0 0.0
        %3059 = vmatpush.msra.mxu0 0.0
        %3060 = vmatpush.msra.mxu0 0.0
        %3061 = vmatpush.msra.mxu0 0.0
        %3062 = vmatpush.msra.mxu0 0.0
        %3063 = vmatpush.msra.mxu0 0.0
        %3064 = vmatpush.msra.mxu0 0.0
        %3065 = vmatpush.msra.mxu0 0.0
        %3066 = vmatpush.msra.mxu0 0.0
        %3067 = vmatpush.msra.mxu0 0.0
        %3068 = vmatpush.msra.mxu0 0.0
        %3069 = vmatpush.msra.mxu0 0.0
        %3070 = vmatpush.msra.mxu0 %v3050
        %3071 = vmatpush.msra.mxu0 %v3048
        %3072 = vmatmul.f32.gmra.mxu0 %v3054
        %v3073 = vpop.f32.mrf.mxu0
        %v3074 = vadd.f32 0.0, %v3073
        %3075 = vdwg.mxu0
        %3078 = vrot.lane.b32.xlu0 %v673, 112
        %v3079 = vpop.permute.xlu0 %3078
        %3080 = vrot.lane.b32.xlu0 %v676, 112
        %v3081 = vpop.permute.xlu0 %3080
        %v3085 = vsel %vm421, %v2786, 0
        %3087 = vmatpush.msra.mxu0 0.0
        %3088 = vmatpush.msra.mxu0 0.0
        %3089 = vmatpush.msra.mxu0 0.0
        %3090 = vmatpush.msra.mxu0 0.0
        %3091 = vmatpush.msra.mxu0 0.0
        %3092 = vmatpush.msra.mxu0 0.0
        %3093 = vmatpush.msra.mxu0 0.0
        %3094 = vmatpush.msra.mxu0 0.0
        %3095 = vmatpush.msra.mxu0 0.0
        %3096 = vmatpush.msra.mxu0 0.0
        %3097 = vmatpush.msra.mxu0 0.0
        %3098 = vmatpush.msra.mxu0 0.0
        %3099 = vmatpush.msra.mxu0 0.0
        %3100 = vmatpush.msra.mxu0 0.0
        %3101 = vmatpush.msra.mxu0 %v3081
        %3102 = vmatpush.msra.mxu0 %v3079
        %3103 = vmatmul.f32.gmra.mxu0 %v3085
        %v3104 = vpop.f32.mrf.mxu0
        %v3105 = vadd.f32 0.0, %v3104
        %3106 = vdwg.mxu0
        %3109 = vrot.lane.b32.xlu0 %v679, 112
        %v3110 = vpop.permute.xlu0 %3109
        %3111 = vrot.lane.b32.xlu0 %v682, 112
        %v3112 = vpop.permute.xlu0 %3111
        %v3116 = vsel %vm421, %v2801, 0
        %3118 = vmatpush.msra.mxu0 0.0
        %3119 = vmatpush.msra.mxu0 0.0
        %3120 = vmatpush.msra.mxu0 0.0
        %3121 = vmatpush.msra.mxu0 0.0
        %3122 = vmatpush.msra.mxu0 0.0
        %3123 = vmatpush.msra.mxu0 0.0
        %3124 = vmatpush.msra.mxu0 0.0
        %3125 = vmatpush.msra.mxu0 0.0
        %3126 = vmatpush.msra.mxu0 0.0
        %3127 = vmatpush.msra.mxu0 0.0
        %3128 = vmatpush.msra.mxu0 0.0
        %3129 = vmatpush.msra.mxu0 0.0
        %3130 = vmatpush.msra.mxu0 0.0
        %3131 = vmatpush.msra.mxu0 0.0
        %3132 = vmatpush.msra.mxu0 %v3112
        %3133 = vmatpush.msra.mxu0 %v3110
        %3134 = vmatmul.f32.gmra.mxu0 %v3116
        %v3135 = vpop.f32.mrf.mxu0
        %v3136 = vadd.f32 0.0, %v3135
        %3137 = vdwg.mxu0
        %3140 = vrot.lane.b32.xlu0 %v685, 112
        %v3141 = vpop.permute.xlu0 %3140
        %3142 = vrot.lane.b32.xlu0 %v688, 112
        %v3143 = vpop.permute.xlu0 %3142
        %v3147 = vsel %vm421, %v2816, 0
        %3149 = vmatpush.msra.mxu0 0.0
        %3150 = vmatpush.msra.mxu0 0.0
        %3151 = vmatpush.msra.mxu0 0.0
        %3152 = vmatpush.msra.mxu0 0.0
        %3153 = vmatpush.msra.mxu0 0.0
        %3154 = vmatpush.msra.mxu0 0.0
        %3155 = vmatpush.msra.mxu0 0.0
        %3156 = vmatpush.msra.mxu0 0.0
        %3157 = vmatpush.msra.mxu0 0.0
        %3158 = vmatpush.msra.mxu0 0.0
        %3159 = vmatpush.msra.mxu0 0.0
        %3160 = vmatpush.msra.mxu0 0.0
        %3161 = vmatpush.msra.mxu0 0.0
        %3162 = vmatpush.msra.mxu0 0.0
        %3163 = vmatpush.msra.mxu0 %v3143
        %3164 = vmatpush.msra.mxu0 %v3141
        %3165 = vmatmul.f32.gmra.mxu0 %v3147
        %v3166 = vpop.f32.mrf.mxu0
        %v3167 = vadd.f32 0.0, %v3166
        %3168 = vdwg.mxu0
        %3171 = vrot.lane.b32.xlu0 %v691, 112
        %v3172 = vpop.permute.xlu0 %3171
        %3173 = vrot.lane.b32.xlu0 %v694, 112
        %v3174 = vpop.permute.xlu0 %3173
        %v3178 = vsel %vm421, %v2831, 0
        %3180 = vmatpush.msra.mxu0 0.0
        %3181 = vmatpush.msra.mxu0 0.0
        %3182 = vmatpush.msra.mxu0 0.0
        %3183 = vmatpush.msra.mxu0 0.0
        %3184 = vmatpush.msra.mxu0 0.0
        %3185 = vmatpush.msra.mxu0 0.0
        %3186 = vmatpush.msra.mxu0 0.0
        %3187 = vmatpush.msra.mxu0 0.0
        %3188 = vmatpush.msra.mxu0 0.0
        %3189 = vmatpush.msra.mxu0 0.0
        %3190 = vmatpush.msra.mxu0 0.0
        %3191 = vmatpush.msra.mxu0 0.0
        %3192 = vmatpush.msra.mxu0 0.0
        %3193 = vmatpush.msra.mxu0 0.0
        %3194 = vmatpush.msra.mxu0 %v3174
        %3195 = vmatpush.msra.mxu0 %v3172
        %3196 = vmatmul.f32.gmra.mxu0 %v3178
        %v3197 = vpop.f32.mrf.mxu0
        %v3198 = vadd.f32 0.0, %v3197
        %3199 = vdwg.mxu0
        %3202 = vrot.lane.b32.xlu0 %v697, 112
        %v3203 = vpop.permute.xlu0 %3202
        %3204 = vrot.lane.b32.xlu0 %v700, 112
        %v3205 = vpop.permute.xlu0 %3204
        %v3209 = vsel %vm421, %v2846, 0
        %3211 = vmatpush.msra.mxu0 0.0
        %3212 = vmatpush.msra.mxu0 0.0
        %3213 = vmatpush.msra.mxu0 0.0
        %3214 = vmatpush.msra.mxu0 0.0
        %3215 = vmatpush.msra.mxu0 0.0
        %3216 = vmatpush.msra.mxu0 0.0
        %3217 = vmatpush.msra.mxu0 0.0
        %3218 = vmatpush.msra.mxu0 0.0
        %3219 = vmatpush.msra.mxu0 0.0
        %3220 = vmatpush.msra.mxu0 0.0
        %3221 = vmatpush.msra.mxu0 0.0
        %3222 = vmatpush.msra.mxu0 0.0
        %3223 = vmatpush.msra.mxu0 0.0
        %3224 = vmatpush.msra.mxu0 0.0
        %3225 = vmatpush.msra.mxu0 %v3205
        %3226 = vmatpush.msra.mxu0 %v3203
        %3227 = vmatmul.f32.gmra.mxu0 %v3209
        %v3228 = vpop.f32.mrf.mxu0
        %v3229 = vadd.f32 0.0, %v3228
        %3230 = vdwg.mxu0
        %3233 = vrot.lane.b32.xlu0 %v703, 112
        %v3234 = vpop.permute.xlu0 %3233
        %3235 = vrot.lane.b32.xlu0 %v706, 112
        %v3236 = vpop.permute.xlu0 %3235
        %v3240 = vsel %vm421, %v2861, 0
        %3242 = vmatpush.msra.mxu0 0.0
        %3243 = vmatpush.msra.mxu0 0.0
        %3244 = vmatpush.msra.mxu0 0.0
        %3245 = vmatpush.msra.mxu0 0.0
        %3246 = vmatpush.msra.mxu0 0.0
        %3247 = vmatpush.msra.mxu0 0.0
        %3248 = vmatpush.msra.mxu0 0.0
        %3249 = vmatpush.msra.mxu0 0.0
        %3250 = vmatpush.msra.mxu0 0.0
        %3251 = vmatpush.msra.mxu0 0.0
        %3252 = vmatpush.msra.mxu0 0.0
        %3253 = vmatpush.msra.mxu0 0.0
        %3254 = vmatpush.msra.mxu0 0.0
        %3255 = vmatpush.msra.mxu0 0.0
        %3256 = vmatpush.msra.mxu0 %v3236
        %3257 = vmatpush.msra.mxu0 %v3234
        %3258 = vmatmul.f32.gmra.mxu0 %v3240
        %v3259 = vpop.f32.mrf.mxu0
        %v3260 = vadd.f32 0.0, %v3259
        %3261 = vdwg.mxu0
        %3264 = vrot.lane.b32.xlu0 %v709, 112
        %v3265 = vpop.permute.xlu0 %3264
        %3266 = vrot.lane.b32.xlu0 %v712, 112
        %v3267 = vpop.permute.xlu0 %3266
        %v3271 = vsel %vm421, %v2876, 0
        %3273 = vmatpush.msra.mxu0 0.0
        %3274 = vmatpush.msra.mxu0 0.0
        %3275 = vmatpush.msra.mxu0 0.0
        %3276 = vmatpush.msra.mxu0 0.0
        %3277 = vmatpush.msra.mxu0 0.0
        %3278 = vmatpush.msra.mxu0 0.0
        %3279 = vmatpush.msra.mxu0 0.0
        %3280 = vmatpush.msra.mxu0 0.0
        %3281 = vmatpush.msra.mxu0 0.0
        %3282 = vmatpush.msra.mxu0 0.0
        %3283 = vmatpush.msra.mxu0 0.0
        %3284 = vmatpush.msra.mxu0 0.0
        %3285 = vmatpush.msra.mxu0 0.0
        %3286 = vmatpush.msra.mxu0 0.0
        %3287 = vmatpush.msra.mxu0 %v3267
        %3288 = vmatpush.msra.mxu0 %v3265
        %3289 = vmatmul.f32.gmra.mxu0 %v3271
        %v3290 = vpop.f32.mrf.mxu0
        %v3291 = vadd.f32 0.0, %v3290
        %3292 = vdwg.mxu0
        %3295 = vrot.lane.b32.xlu0 %v715, 112
        %v3296 = vpop.permute.xlu0 %3295
        %3297 = vrot.lane.b32.xlu0 %v718, 112
        %v3298 = vpop.permute.xlu0 %3297
        %v3302 = vsel %vm421, %v2891, 0
        %3304 = vmatpush.msra.mxu0 0.0
        %3305 = vmatpush.msra.mxu0 0.0
        %3306 = vmatpush.msra.mxu0 0.0
        %3307 = vmatpush.msra.mxu0 0.0
        %3308 = vmatpush.msra.mxu0 0.0
        %3309 = vmatpush.msra.mxu0 0.0
        %3310 = vmatpush.msra.mxu0 0.0
        %3311 = vmatpush.msra.mxu0 0.0
        %3312 = vmatpush.msra.mxu0 0.0
        %3313 = vmatpush.msra.mxu0 0.0
        %3314 = vmatpush.msra.mxu0 0.0
        %3315 = vmatpush.msra.mxu0 0.0
        %3316 = vmatpush.msra.mxu0 0.0
        %3317 = vmatpush.msra.mxu0 0.0
        %3318 = vmatpush.msra.mxu0 %v3298
        %3319 = vmatpush.msra.mxu0 %v3296
        %3320 = vmatmul.f32.gmra.mxu0 %v3302
        %v3321 = vpop.f32.mrf.mxu0
        %v3322 = vadd.f32 0.0, %v3321
        %3323 = vdwg.mxu0
        %3326 = vrot.lane.b32.xlu0 %v721, 112
        %v3327 = vpop.permute.xlu0 %3326
        %3328 = vrot.lane.b32.xlu0 %v724, 112
        %v3329 = vpop.permute.xlu0 %3328
        %v3333 = vsel %vm421, %v2906, 0
        %3335 = vmatpush.msra.mxu0 0.0
        %3336 = vmatpush.msra.mxu0 0.0
        %3337 = vmatpush.msra.mxu0 0.0
        %3338 = vmatpush.msra.mxu0 0.0
        %3339 = vmatpush.msra.mxu0 0.0
        %3340 = vmatpush.msra.mxu0 0.0
        %3341 = vmatpush.msra.mxu0 0.0
        %3342 = vmatpush.msra.mxu0 0.0
        %3343 = vmatpush.msra.mxu0 0.0
        %3344 = vmatpush.msra.mxu0 0.0
        %3345 = vmatpush.msra.mxu0 0.0
        %3346 = vmatpush.msra.mxu0 0.0
        %3347 = vmatpush.msra.mxu0 0.0
        %3348 = vmatpush.msra.mxu0 0.0
        %3349 = vmatpush.msra.mxu0 %v3329
        %3350 = vmatpush.msra.mxu0 %v3327
        %3351 = vmatmul.f32.gmra.mxu0 %v3333
        %v3352 = vpop.f32.mrf.mxu0
        %v3353 = vadd.f32 0.0, %v3352
        %3354 = vdwg.mxu0
        %3357 = vrot.lane.b32.xlu0 %v727, 112
        %v3358 = vpop.permute.xlu0 %3357
        %3359 = vrot.lane.b32.xlu0 %v730, 112
        %v3360 = vpop.permute.xlu0 %3359
        %v3364 = vsel %vm421, %v2921, 0
        %3366 = vmatpush.msra.mxu0 0.0
        %3367 = vmatpush.msra.mxu0 0.0
        %3368 = vmatpush.msra.mxu0 0.0
        %3369 = vmatpush.msra.mxu0 0.0
        %3370 = vmatpush.msra.mxu0 0.0
        %3371 = vmatpush.msra.mxu0 0.0
        %3372 = vmatpush.msra.mxu0 0.0
        %3373 = vmatpush.msra.mxu0 0.0
        %3374 = vmatpush.msra.mxu0 0.0
        %3375 = vmatpush.msra.mxu0 0.0
        %3376 = vmatpush.msra.mxu0 0.0
        %3377 = vmatpush.msra.mxu0 0.0
        %3378 = vmatpush.msra.mxu0 0.0
        %3379 = vmatpush.msra.mxu0 0.0
        %3380 = vmatpush.msra.mxu0 %v3360
        %3381 = vmatpush.msra.mxu0 %v3358
        %3382 = vmatmul.f32.gmra.mxu0 %v3364
        %v3383 = vpop.f32.mrf.mxu0
        %v3384 = vadd.f32 0.0, %v3383
        %3385 = vdwg.mxu0
        %3388 = vrot.lane.b32.xlu0 %v733, 112
        %v3389 = vpop.permute.xlu0 %3388
        %3390 = vrot.lane.b32.xlu0 %v736, 112
        %v3391 = vpop.permute.xlu0 %3390
        %v3395 = vsel %vm421, %v2936, 0
        %3397 = vmatpush.msra.mxu0 0.0
        %3398 = vmatpush.msra.mxu0 0.0
        %3399 = vmatpush.msra.mxu0 0.0
        %3400 = vmatpush.msra.mxu0 0.0
        %3401 = vmatpush.msra.mxu0 0.0
        %3402 = vmatpush.msra.mxu0 0.0
        %3403 = vmatpush.msra.mxu0 0.0
        %3404 = vmatpush.msra.mxu0 0.0
        %3405 = vmatpush.msra.mxu0 0.0
        %3406 = vmatpush.msra.mxu0 0.0
        %3407 = vmatpush.msra.mxu0 0.0
        %3408 = vmatpush.msra.mxu0 0.0
        %3409 = vmatpush.msra.mxu0 0.0
        %3410 = vmatpush.msra.mxu0 0.0
        %3411 = vmatpush.msra.mxu0 %v3391
        %3412 = vmatpush.msra.mxu0 %v3389
        %3413 = vmatmul.f32.gmra.mxu0 %v3395
        %v3414 = vpop.f32.mrf.mxu0
        %v3415 = vadd.f32 0.0, %v3414
        %3416 = vdwg.mxu0
        %3419 = vrot.lane.b32.xlu0 %v739, 112
        %v3420 = vpop.permute.xlu0 %3419
        %3421 = vrot.lane.b32.xlu0 %v742, 112
        %v3422 = vpop.permute.xlu0 %3421
        %v3426 = vsel %vm421, %v2951, 0
        %3428 = vmatpush.msra.mxu0 0.0
        %3429 = vmatpush.msra.mxu0 0.0
        %3430 = vmatpush.msra.mxu0 0.0
        %3431 = vmatpush.msra.mxu0 0.0
        %3432 = vmatpush.msra.mxu0 0.0
        %3433 = vmatpush.msra.mxu0 0.0
        %3434 = vmatpush.msra.mxu0 0.0
        %3435 = vmatpush.msra.mxu0 0.0
        %3436 = vmatpush.msra.mxu0 0.0
        %3437 = vmatpush.msra.mxu0 0.0
        %3438 = vmatpush.msra.mxu0 0.0
        %3439 = vmatpush.msra.mxu0 0.0
        %3440 = vmatpush.msra.mxu0 0.0
        %3441 = vmatpush.msra.mxu0 0.0
        %3442 = vmatpush.msra.mxu0 %v3422
        %3443 = vmatpush.msra.mxu0 %v3420
        %3444 = vmatmul.f32.gmra.mxu0 %v3426
        %v3445 = vpop.f32.mrf.mxu0
        %v3446 = vadd.f32 0.0, %v3445
        %3447 = vdwg.mxu0
        %v3449 = vsel %vm421, %v2981, 0
        %v3452 = vsel %vm421, %v3012, 0
        %v3455 = vsel %vm421, %v3043, 0
        %v3458 = vsel %vm421, %v3074, 0
        %v3461 = vsel %vm421, %v3105, 0
        %v3464 = vsel %vm421, %v3136, 0
        %v3467 = vsel %vm421, %v3167, 0
        %v3470 = vsel %vm421, %v3198, 0
        %v3473 = vsel %vm421, %v3229, 0
        %v3476 = vsel %vm421, %v3260, 0
        %v3479 = vsel %vm421, %v3291, 0
        %v3482 = vsel %vm421, %v3322, 0
        %v3485 = vsel %vm421, %v3353, 0
        %v3488 = vsel %vm421, %v3384, 0
        %v3491 = vsel %vm421, %v3415, 0
        %v3494 = vsel %vm421, %v3446, 0
        %3496 = vmatpush.msra.mxu0 0.0
        %3497 = vmatpush.msra.mxu0 0.0
        %3498 = vmatpush.msra.mxu0 0.0
        %3499 = vmatpush.msra.mxu0 0.0
        %3500 = vmatpush.msra.mxu0 0.0
        %3501 = vmatpush.msra.mxu0 0.0
        %3502 = vmatpush.msra.mxu0 0.0
        %3503 = vmatpush.msra.mxu0 0.0
        %3504 = vmatpush.msra.mxu0 0.0
        %3505 = vmatpush.msra.mxu0 0.0
        %3506 = vmatpush.msra.mxu0 0.0
        %3507 = vmatpush.msra.mxu0 0.0
        %3508 = vmatpush.msra.mxu0 0.0
        %3509 = vmatpush.msra.mxu0 0.0
        %3510 = vmatpush.msra.mxu0 %v257
        %3511 = vmatpush.msra.mxu0 %v256
        %3512 = vmatmul.f32.gmra.mxu0 %v3449
        %v3513 = vpop.f32.mrf.mxu0
        %v3514 = vadd.f32 0.0, %v3513
        %3515 = vmatmul.f32.gmra.mxu0 %v3452
        %v3516 = vpop.f32.mrf.mxu0
        %v3517 = vadd.f32 0.0, %v3516
        %3518 = vmatmul.f32.gmra.mxu0 %v3455
        %v3519 = vpop.f32.mrf.mxu0
        %v3520 = vadd.f32 0.0, %v3519
        %3521 = vmatmul.f32.gmra.mxu0 %v3458
        %v3522 = vpop.f32.mrf.mxu0
        %v3523 = vadd.f32 0.0, %v3522
        %3524 = vmatmul.f32.gmra.mxu0 %v3461
        %v3525 = vpop.f32.mrf.mxu0
        %v3526 = vadd.f32 0.0, %v3525
        %3527 = vmatmul.f32.gmra.mxu0 %v3464
        %v3528 = vpop.f32.mrf.mxu0
        %v3529 = vadd.f32 0.0, %v3528
        %3530 = vmatmul.f32.gmra.mxu0 %v3467
        %v3531 = vpop.f32.mrf.mxu0
        %v3532 = vadd.f32 0.0, %v3531
        %3533 = vmatmul.f32.gmra.mxu0 %v3470
        %v3534 = vpop.f32.mrf.mxu0
        %v3535 = vadd.f32 0.0, %v3534
        %3536 = vmatmul.f32.gmra.mxu0 %v3473
        %v3537 = vpop.f32.mrf.mxu0
        %v3538 = vadd.f32 0.0, %v3537
        %3539 = vmatmul.f32.gmra.mxu0 %v3476
        %v3540 = vpop.f32.mrf.mxu0
        %v3541 = vadd.f32 0.0, %v3540
        %3542 = vmatmul.f32.gmra.mxu0 %v3479
        %v3543 = vpop.f32.mrf.mxu0
        %v3544 = vadd.f32 0.0, %v3543
        %3545 = vmatmul.f32.gmra.mxu0 %v3482
        %v3546 = vpop.f32.mrf.mxu0
        %v3547 = vadd.f32 0.0, %v3546
        %3548 = vmatmul.f32.gmra.mxu0 %v3485
        %v3549 = vpop.f32.mrf.mxu0
        %v3550 = vadd.f32 0.0, %v3549
        %3551 = vmatmul.f32.gmra.mxu0 %v3488
        %v3552 = vpop.f32.mrf.mxu0
        %v3553 = vadd.f32 0.0, %v3552
        %3554 = vmatmul.f32.gmra.mxu0 %v3491
        %v3555 = vpop.f32.mrf.mxu0
        %v3556 = vadd.f32 0.0, %v3555
        %3557 = vmatmul.f32.gmra.mxu0 %v3494
        %v3558 = vpop.f32.mrf.mxu0
        %v3559 = vadd.f32 0.0, %v3558
        %3560 = vdwg.mxu0
        %v3562 = vsel %vm421, %v1677, 0
        %v3565 = vsel %vm421, %v1700, 0
        %v3568 = vsel %vm421, %v1723, 0
        %v3571 = vsel %vm421, %v1746, 0
        %v3574 = vsel %vm421, %v1769, 0
        %v3577 = vsel %vm421, %v1792, 0
        %v3580 = vsel %vm421, %v1815, 0
        %v3583 = vsel %vm421, %v1838, 0
        %v3586 = vsel %vm421, %v1861, 0
        %v3589 = vsel %vm421, %v1884, 0
        %v3592 = vsel %vm421, %v1907, 0
        %v3595 = vsel %vm421, %v1930, 0
        %v3598 = vsel %vm421, %v1953, 0
        %v3601 = vsel %vm421, %v1976, 0
        %v3604 = vsel %vm421, %v1999, 0
        %v3607 = vsel %vm421, %v2022, 0
        %3609 = vmatpush.msra.mxu0 0.0
        %3610 = vmatpush.msra.mxu0 0.0
        %3611 = vmatpush.msra.mxu0 0.0
        %3612 = vmatpush.msra.mxu0 0.0
        %3613 = vmatpush.msra.mxu0 0.0
        %3614 = vmatpush.msra.mxu0 0.0
        %3615 = vmatpush.msra.mxu0 0.0
        %3616 = vmatpush.msra.mxu0 0.0
        %3617 = vmatpush.msra.mxu0 0.0
        %3618 = vmatpush.msra.mxu0 0.0
        %3619 = vmatpush.msra.mxu0 0.0
        %3620 = vmatpush.msra.mxu0 0.0
        %3621 = vmatpush.msra.mxu0 0.0
        %3622 = vmatpush.msra.mxu0 0.0
        %3623 = vmatpush.msra.mxu0 %v255
        %3624 = vmatpush.msra.mxu0 %v254
        %3625 = vmatmul.f32.gmra.mxu0 %v3562
        %v3626 = vpop.f32.mrf.mxu0
        %v3627 = vadd.f32 %v3514, %v3626
        %3628 = vmatmul.f32.gmra.mxu0 %v3565
        %v3629 = vpop.f32.mrf.mxu0
        %v3630 = vadd.f32 %v3517, %v3629
        %3631 = vmatmul.f32.gmra.mxu0 %v3568
        %v3632 = vpop.f32.mrf.mxu0
        %v3633 = vadd.f32 %v3520, %v3632
        %3634 = vmatmul.f32.gmra.mxu0 %v3571
        %v3635 = vpop.f32.mrf.mxu0
        %v3636 = vadd.f32 %v3523, %v3635
        %3637 = vmatmul.f32.gmra.mxu0 %v3574
        %v3638 = vpop.f32.mrf.mxu0
        %v3639 = vadd.f32 %v3526, %v3638
        %3640 = vmatmul.f32.gmra.mxu0 %v3577
        %v3641 = vpop.f32.mrf.mxu0
        %v3642 = vadd.f32 %v3529, %v3641
        %3643 = vmatmul.f32.gmra.mxu0 %v3580
        %v3644 = vpop.f32.mrf.mxu0
        %v3645 = vadd.f32 %v3532, %v3644
        %3646 = vmatmul.f32.gmra.mxu0 %v3583
        %v3647 = vpop.f32.mrf.mxu0
        %v3648 = vadd.f32 %v3535, %v3647
        %3649 = vmatmul.f32.gmra.mxu0 %v3586
        %v3650 = vpop.f32.mrf.mxu0
        %v3651 = vadd.f32 %v3538, %v3650
        %3652 = vmatmul.f32.gmra.mxu0 %v3589
        %v3653 = vpop.f32.mrf.mxu0
        %v3654 = vadd.f32 %v3541, %v3653
        %3655 = vmatmul.f32.gmra.mxu0 %v3592
        %v3656 = vpop.f32.mrf.mxu0
        %v3657 = vadd.f32 %v3544, %v3656
        %3658 = vmatmul.f32.gmra.mxu0 %v3595
        %v3659 = vpop.f32.mrf.mxu0
        %v3660 = vadd.f32 %v3547, %v3659
        %3661 = vmatmul.f32.gmra.mxu0 %v3598
        %v3662 = vpop.f32.mrf.mxu0
        %v3663 = vadd.f32 %v3550, %v3662
        %3664 = vmatmul.f32.gmra.mxu0 %v3601
        %v3665 = vpop.f32.mrf.mxu0
        %v3666 = vadd.f32 %v3553, %v3665
        %3667 = vmatmul.f32.gmra.mxu0 %v3604
        %v3668 = vpop.f32.mrf.mxu0
        %v3669 = vadd.f32 %v3556, %v3668
        %3670 = vmatmul.f32.gmra.mxu0 %v3607
        %v3671 = vpop.f32.mrf.mxu0
        %v3672 = vadd.f32 %v3559, %v3671
        %3673 = vdwg.mxu0
        %v3674 = vperm.slane %v258, 0
        %v3675 = vadd.f32 %v3627, %v3674
        %v3676 = vadd.f32 %v3630, %v3674
        %v3677 = vadd.f32 %v3633, %v3674
        %v3678 = vadd.f32 %v3636, %v3674
        %v3679 = vadd.f32 %v3639, %v3674
        %v3680 = vadd.f32 %v3642, %v3674
        %v3681 = vadd.f32 %v3645, %v3674
        %v3682 = vadd.f32 %v3648, %v3674
        %v3683 = vadd.f32 %v3651, %v3674
        %v3684 = vadd.f32 %v3654, %v3674
        %v3685 = vadd.f32 %v3657, %v3674
        %v3686 = vadd.f32 %v3660, %v3674
        %v3687 = vadd.f32 %v3663, %v3674
        %v3688 = vadd.f32 %v3666, %v3674
        %v3689 = vadd.f32 %v3669, %v3674
        %v3690 = vadd.f32 %v3672, %v3674
        %3691 = vst.msk [vmem:[%s225] sm:$0xff] %vm307, %v3675
        %3692 = vst.msk [vmem:[%s225 + $0x8] sm:$0xff] %vm307, %v3676
        %3693 = vst.msk [vmem:[%s225 + $0x10] sm:$0xff] %vm307, %v3677
        %3694 = vst.msk [vmem:[%s225 + $0x18] sm:$0xff] %vm307, %v3678
        %3695 = vst.msk [vmem:[%s225 + $0x20] sm:$0xff] %vm307, %v3679
        %3696 = vst.msk [vmem:[%s225 + $0x28] sm:$0xff] %vm307, %v3680
        %3697 = vst.msk [vmem:[%s225 + $0x30] sm:$0xff] %vm307, %v3681
        %3698 = vst.msk [vmem:[%s225 + $0x38] sm:$0xff] %vm307, %v3682
        %3699 = vst.msk [vmem:[%s225 + $0x40] sm:$0xff] %vm307, %v3683
        %3700 = vst.msk [vmem:[%s225 + $0x48] sm:$0xff] %vm307, %v3684
        %3701 = vst.msk [vmem:[%s225 + $0x50] sm:$0xff] %vm307, %v3685
        %3702 = vst.msk [vmem:[%s225 + $0x58] sm:$0xff] %vm307, %v3686
        %3703 = vst.msk [vmem:[%s225 + $0x60] sm:$0xff] %vm307, %v3687
        %3704 = vst.msk [vmem:[%s225 + $0x68] sm:$0xff] %vm307, %v3688
        %3705 = vst.msk [vmem:[%s225 + $0x70] sm:$0xff] %vm307, %v3689
        %3706 = vst.msk [vmem:[%s225 + $0x78] sm:$0xff] %vm307, %v3690
        %s3707 = sand.u32 %s125, 1
        %s3708 = scalar_lea.sflag [#allocation3], %s3707
        %s3709 = sand.u32 %s125, 1
        %s3710 = smul.addr %s3709, 128
        %s3711 = scalar_lea.vmem [#allocation2], %s3710
        // Predicated region
        $region37: #{tpu_custom_call.1} parent=35 // pred_check
          %p3712 = pneg %p135
        $region38: #{tpu_custom_call.1} parent=35 // pred_check_branch
          %3714 = sbr.rel (%p3712) target = $region40
        $region39: #{tpu_custom_call.1} parent=35 // pred_region
          %s3715 = smul.u32 16, %s18
          %3717 = vsyncadd %s3708, 0
          %s3718 = smul.addr %s3715, 8
          %s3719 = scalar_lea.hbm %s4, %s3718
          %s3720 = sshll.u32 %s3711, 4
          %s3721 = int_to_ptr.vmem [resolvable:$true] %s3720
          %s3722 = sshll.u32 %s3719, 4
          %s3723 = int_to_ptr.hbm [resolvable:$true] %s3722
          %3728 = dma.vmem_to_hbm [thread:$0]  %s3721, 2048, %s3723, %s3708, 128, 128, 8
        $region40: #{tpu_custom_call.1} parent=35 // pred_fallthru
          _
      $region36: #{tpu_custom_call.1} parent=5 // pred_fallthru
        _
      %p3729 = scmp.le.s32.totalorder 2, %s13
      // Predicated region
      $region41: #{tpu_custom_call.1} parent=5 // pred_check
        %p3730 = pneg %p3729
      $region42: #{tpu_custom_call.1} parent=5 // pred_check_branch
        %3732 = sbr.rel (%p3730) target = $region44
      $region43: #{tpu_custom_call.1} parent=5 // pred_region
        %s3733 = ssub.s32 %s13, 2
        // Predicated region
        $region45: #{tpu_custom_call.1} parent=43 // pred_check
          %p3734 = pneg %p141
        $region46: #{tpu_custom_call.1} parent=43 // pred_check_branch
          %3736 = sbr.rel (%p3734) target = $region48
        $region47: #{tpu_custom_call.1} parent=43 // pred_region
          %s3737 = sand.u32 %s126, 1
          %s3738 = scalar_lea.sflag [#allocation3], %s3737
          %s3739 = sand.u32 %s126, 1
          %s3740 = smul.addr %s3739, 128
          %s3741 = scalar_lea.vmem [#allocation2], %s3740
          %3743 = dma.done %s3738, 2048
        $region48: #{tpu_custom_call.1} parent=43 // pred_fallthru
          _
      $region44: #{tpu_custom_call.1} parent=5 // pred_fallthru
        _
    $region6: #{tpu_custom_call.1} parent=1 // loop_footer
      %s17 = sadd.s32 1, %s13
    $region7: #{tpu_custom_call.1} parent=1 // loop_footer_branch
      %12 = sbr.rel target = $region3
    $region8: #{tpu_custom_call.1} parent=1 // loop_exit
      _
    %3744 = vsyncpa [#allocation3], 1
    %s3745 = scalar_lea.sflag [#allocation3], 1
    %3746 = vsyncpa %s3745, 1

</llo_original>
